<compile_context>
chip_gen: v5e
topology: v5e:2x2
jax: 0.10.0
libtpu: 0.0.40
codegen_flags: <defaults>
</compile_context>

<pallas_src>
import jax
import jax.numpy as jnp
from jax import lax
from jax.experimental import pallas as pl
from jax.experimental.pallas import tpu as pltpu


VMEM_LIMIT_BYTES = 32 * 1024 * 1024   # explicit; safe on v5e/v6e/v7x (<= 64 MiB)
DEFAULT_BATCH_TILE = 8                # images per grid step (sweepable)


# ---------------------------------------------------------------------------
# Fused Pallas kernel: whole CNN forward for one batch tile
# ---------------------------------------------------------------------------
def fused_cnn_kernel(x_ref, w1_ref, b1_ref, w2_ref, b2_ref,
                     fw1_ref, fb1_ref, fw2_ref, fb2_ref, o_ref,
                     xpad_ref, x2pad_ref, pool1_ref, pool2_ref):
    """x_ref: (Bt, H, W, Cin) f32 NHWC.  o_ref: (Bt, 128) f32 logits (padded).

    All intermediate activations stay in VMEM; only logits are written to HBM.
    """
    Bt, H, W, Cin = x_ref.shape
    Hp, Wp = H // 2, W // 2            # spatial after pool1
    Hq, Wq = Hp // 2, Wp // 2          # spatial after pool2
    C1 = w1_ref.shape[-1]              # 32
    C2 = w2_ref.shape[-1]              # 64

    # ---- conv1 input: zero-padded copy built in VMEM (no HBM pad pass) -----
    # Halo memset is VMEM-only and tiny; redone every step so the batch grid
    # axis is order-independent (safe for per-core splitting).
    xpad_ref[...] = jnp.zeros_like(xpad_ref)
    xpad_ref[:, 1:H + 1, 1:W + 1, :] = x_ref[...]
    x1 = xpad_ref[...]                                     # (Bt, H+2, W+2, Cin)

    # ---- conv1: in-VMEM im2col, single MXU matmul (K = 9*Cin) --------------
    taps = [x1[:, kh:kh + H, kw:kw + W, :]
            for kh in range(3) for kw in range(3)]         # tap order (kh, kw, c)
    p1 = jnp.concatenate(taps, axis=-1)                    # (Bt, H, W, 9*Cin)
    p1 = p1.reshape(Bt * H * W, 9 * Cin).astype(jnp.bfloat16)
    a1 = jnp.dot(p1, w1_ref[...], preferred_element_type=jnp.float32)

    # ---- 2x2/2 max-pool on the raw accumulator, then bias+ReLU once --------
    # (max / +bias / ReLU are monotone, so this equals pool(relu(conv + b))).
    z1 = a1.reshape(Bt * Hp, 2 * W, C1)
    pool1_ref[...] = jnp.maximum(z1[:, :W, :], z1[:, W:, :])     # pool over H
    y1 = jnp.maximum(pool1_ref[:, pl.ds(0, Wp, 2), :],           # pool over W
                     pool1_ref[:, pl.ds(1, Wp, 2), :])           # (Bt*Hp, Wp, C1)
    y1 = jnp.maximum(y1 + b1_ref[...], 0.0)

    # ---- conv2 input: zero-padded in VMEM, never touches HBM ---------------
    x2pad_ref[...] = jnp.zeros_like(x2pad_ref)
    x2pad_ref[:, 1:Hp + 1, 1:Wp + 1, :] = y1.reshape(Bt, Hp, Wp, C1)
    x2 = x2pad_ref[...]                                    # (Bt, Hp+2, Wp+2, C1)

    taps = [x2[:, kh:kh + Hp, kw:kw + Wp, :]
            for kh in range(3) for kw in range(3)]
    p2 = jnp.concatenate(taps, axis=-1)                    # (Bt, Hp, Wp, 9*C1)
    p2 = p2.reshape(Bt * Hp * Wp, 9 * C1).astype(jnp.bfloat16)
    a2 = jnp.dot(p2, w2_ref[...], preferred_element_type=jnp.float32)

    z2 = a2.reshape(Bt * Hq, 2 * Wp, C2)
    pool2_ref[...] = jnp.maximum(z2[:, :Wp, :], z2[:, Wp:, :])
    y2 = jnp.maximum(pool2_ref[:, pl.ds(0, Wq, 2), :],
                     pool2_ref[:, pl.ds(1, Wq, 2), :])           # (Bt*Hq, Wq, C2)
    y2 = jnp.maximum(y2 + b2_ref[...], 0.0)
    y2 = y2.reshape(Bt, Hq, Wq, C2)

    # ---- flatten (NHWC order) via lane concat; fc1 columns pre-permuted ----
    flat = jnp.concatenate(
        [y2[:, i, j, :] for i in range(Hq) for j in range(Wq)],
        axis=-1).astype(jnp.bfloat16)                      # (Bt, Hq*Wq*C2)

    # ---- fc1 + ReLU + fc2 (fc2 pre-padded to 128 lane-dense output cols) ---
    h = jnp.dot(flat, fw1_ref[...], preferred_element_type=jnp.float32)
    h = jnp.maximum(h + fb1_ref[...], 0.0).astype(jnp.bfloat16)
    o_ref[...] = jnp.dot(h, fw2_ref[...],
                         preferred_element_type=jnp.float32) + fb2_ref[...]


# ---------------------------------------------------------------------------
# Wrapper
# ---------------------------------------------------------------------------
def fused_cnn(x_nhwc, p, *, block_b):
    B, H, W, Cin = x_nhwc.shape
    assert B % block_b == 0 and H % 4 == 0 and W % 4 == 0
    Bt = block_b
    Hp, Wp = H // 2, W // 2
    Hq, Wq = Hp // 2, Wp // 2
    C1 = p["w1"].shape[-1]
    C2 = p["w2"].shape[-1]
    FC_IN = p["fcw1"].shape[0]                 # Hq*Wq*C2
    NOUT = p["fcw2"].shape[-1]                 # 128 (zero-padded)
    inv = lambda b: (0, 0)                     # grid-invariant weight blocks

    return pl.pallas_call(
        fused_cnn_kernel,
        out_shape=jax.ShapeDtypeStruct((B, NOUT), jnp.float32),
        grid_spec=pltpu.PrefetchScalarGridSpec(
            num_scalar_prefetch=0,
            grid=(B // Bt,),                   # Bt images per step
            in_specs=[
                pl.BlockSpec((Bt, H, W, Cin), lambda b: (b, 0, 0, 0)),
                pl.BlockSpec((9 * Cin, C1), inv),
                pl.BlockSpec((1, C1), inv),
                pl.BlockSpec((9 * C1, C2), inv),
                pl.BlockSpec((1, C2), inv),
                pl.BlockSpec((FC_IN, 128), inv),
                pl.BlockSpec((1, 128), inv),
                pl.BlockSpec((128, NOUT), inv),
                pl.BlockSpec((1, NOUT), inv),
            ],
            out_specs=pl.BlockSpec((Bt, NOUT), lambda b: (b, 0)),
            scratch_shapes=[
                pltpu.VMEM((Bt, H + 2, W + 2, Cin), jnp.float32),   # conv1 pad
                pltpu.VMEM((Bt, Hp + 2, Wp + 2, C1), jnp.float32),  # conv2 pad
                pltpu.VMEM((Bt * Hp, W, C1), jnp.float32),          # pool1 rows
                pltpu.VMEM((Bt * Hq, Wp, C2), jnp.float32),         # pool2 rows
            ],
        ),
        compiler_params=pltpu.CompilerParams(
            dimension_semantics=("parallel",),
            vmem_limit_bytes=VMEM_LIMIT_BYTES),
    )(x_nhwc, p["w1"], p["b1"], p["w2"], p["b2"],
      p["fcw1"], p["fcb1"], p["fcw2"], p["fcb2"])


def simple_cnn_forward(x_nchw, p, *, block_b=DEFAULT_BATCH_TILE):
    B = x_nchw.shape[0]
    # NCHW -> NHWC stays a single XLA op in the jit; everything else is fused.
    x = jnp.transpose(x_nchw, (0, 2, 3, 1))
    Bt = min(B, block_b)
    Bpad = pl.cdiv(B, Bt) * Bt
    if Bpad != B:
        x = jnp.pad(x, ((0, Bpad - B), (0, 0), (0, 0), (0, 0)))
    logits = fused_cnn(x, p, block_b=Bt)        # (Bpad, 128)
    return logits[:B, :10]


# ---------------------------------------------------------------------------
# Parameter handling
# ---------------------------------------------------------------------------
def init_params(key, input_shape):
    """Deterministic synthetic params, same shapes as the torch module."""
    cin, h, w = input_shape
    fc_in = (h // 4) * (w // 4) * 64
    ks = jax.random.split(key, 8)

    def u(k, shape, fan_in):
        bound = 1.0 / jnp.sqrt(float(fan_in))
        return jax.random.uniform(k, shape, jnp.float32, -bound, bound)

    return {
        "w1": u(ks[0], (32, cin, 3, 3), cin * 9),
        "b1": u(ks[1], (32,), cin * 9),
        "w2": u(ks[2], (64, 32, 3, 3), 32 * 9),
        "b2": u(ks[3], (64,), 32 * 9),
        "fcw1": u(ks[4], (128, fc_in), fc_in),
        "fcb1": u(ks[5], (128,), fc_in),
        "fcw2": u(ks[6], (10, 128), 128),
        "fcb2": u(ks[7], (10,), 128),
    }


def prepare_params(params, input_shape):
    """One-time layout/dtype prep (module-init time, not in the fwd path)."""
    _, h, w = input_shape
    h4, w4 = h // 4, w // 4

    def conv_w(wt):   # torch (Cout, Cin, 3, 3) -> (9*Cin, Cout), rows = (kh, kw, cin)
        cout = wt.shape[0]
        return jnp.transpose(wt, (2, 3, 1, 0)).reshape(-1, cout).astype(jnp.bfloat16)

    # fc1: permute columns from NCHW-flatten to NHWC-flatten order and
    # pre-transpose to (fc_in, 128).
    fcw1 = params["fcw1"].reshape(128, 64, h4, w4)
    fcw1 = jnp.transpose(fcw1, (2, 3, 1, 0)).reshape(-1, 128)

    # fc2: zero-pad 10 -> 128 output columns for lane-dense stores.
    fcw2 = jnp.zeros((128, 128), jnp.float32).at[:, :10].set(params["fcw2"].T)
    fcb2 = jnp.zeros((1, 128), jnp.float32).at[:, :10].set(params["fcb2"])

    return {
        "w1": conv_w(params["w1"]), "b1": params["b1"].reshape(1, -1),
        "w2": conv_w(params["w2"]), "b2": params["b2"].reshape(1, -1),
        "fcw1": fcw1.astype(jnp.bfloat16), "fcb1": params["fcb1"].reshape(1, -1),
        "fcw2": fcw2.astype(jnp.bfloat16), "fcb2": fcb2,
    }


# ---------------------------------------------------------------------------
# Pure-JAX reference (correctness check only)
# ---------------------------------------------------------------------------
def reference_forward(x_nchw, params):
    def conv(x, w, b):
        y = lax.conv_general_dilated(
            x, w, (1, 1), ((1, 1), (1, 1)),
            dimension_numbers=("NCHW", "OIHW", "NCHW"))
        return y + b.reshape(1, -1, 1, 1)

    def pool(x):
        return lax.reduce_window(x, -jnp.inf, lax.max,
                                 (1, 1, 2, 2), (1, 1, 2, 2), "VALID")

    x = pool(jnp.maximum(conv(x_nchw, params["w1"], params["b1"]), 0.0))
    x = pool(jnp.maximum(conv(x, params["w2"], params["b2"]), 0.0))
    x = x.reshape(x.shape[0], -1)
    x = jnp.maximum(x @ params["fcw1"].T + params["fcb1"], 0.0)
    return x @ params["fcw2"].T + params["fcb2"]


if __name__ == "__main__":
    key = jax.random.PRNGKey(0)
    kx, kp = jax.random.split(key)

    input_shape = (4, 16, 16)                  # (Cin, H, W) as in SimpleCNN(input_shape)
    x = jax.random.normal(kx, (2,) + input_shape, jnp.float32)   # NCHW, batch=2
    params = init_params(kp, input_shape)
    prepped = prepare_params(params, input_shape)

    fwd = jax.jit(simple_cnn_forward)
    out = jax.block_until_ready(fwd(x, prepped))
    assert out.shape == (2, 10), out.shape

    ref = reference_forward(x, params)
    max_err = float(jnp.max(jnp.abs(out - ref)))
    assert jnp.allclose(out, ref, rtol=1e-2, atol=1e-2), (
        f"mismatch vs JAX reference (max abs err {max_err})")

    print("KERNEL_OK")
</pallas_src>

<mosaic_0001>
module attributes {stable_mosaic.version = 11 : i64} {
  func.func @fused_cnn_kernel(%arg0: i32, %arg1: memref<2x16x16x4xf32, #tpu.memory_space<vmem>>, %arg2: memref<36x32xbf16, #tpu.memory_space<vmem>>, %arg3: memref<1x32xf32, #tpu.memory_space<vmem>>, %arg4: memref<288x64xbf16, #tpu.memory_space<vmem>>, %arg5: memref<1x64xf32, #tpu.memory_space<vmem>>, %arg6: memref<1024x128xbf16, #tpu.memory_space<vmem>>, %arg7: memref<1x128xf32, #tpu.memory_space<vmem>>, %arg8: memref<128x128xbf16, #tpu.memory_space<vmem>>, %arg9: memref<1x128xf32, #tpu.memory_space<vmem>>, %arg10: memref<2x128xf32, #tpu.memory_space<vmem>>, %arg11: memref<2x18x18x4xf32, #tpu.memory_space<vmem>>, %arg12: memref<2x10x10x32xf32, #tpu.memory_space<vmem>>, %arg13: memref<16x16x32xf32, #tpu.memory_space<vmem>>, %arg14: memref<8x8x64xf32, #tpu.memory_space<vmem>>) attributes {dimension_semantics = [#tpu.dimension_semantics<parallel>], iteration_bounds = array<i64: 1>, scalar_prefetch = 0 : i64, scratch_operands = 4 : i64, tpu.core_type = #tpu.core_type<tc>, window_params = [{transform_indices = @transform_0, window_bounds = array<i64: 2, 16, 16, 4>}, {pipeline_mode = #tpu.pipeline_mode<synchronous>, transform_indices = @transform_1, window_bounds = array<i64: 36, 32>}, {pipeline_mode = #tpu.pipeline_mode<synchronous>, transform_indices = @transform_2, window_bounds = array<i64: 1, 32>}, {pipeline_mode = #tpu.pipeline_mode<synchronous>, transform_indices = @transform_3, window_bounds = array<i64: 288, 64>}, {pipeline_mode = #tpu.pipeline_mode<synchronous>, transform_indices = @transform_4, window_bounds = array<i64: 1, 64>}, {pipeline_mode = #tpu.pipeline_mode<synchronous>, transform_indices = @transform_5, window_bounds = array<i64: 1024, 128>}, {pipeline_mode = #tpu.pipeline_mode<synchronous>, transform_indices = @transform_6, window_bounds = array<i64: 1, 128>}, {pipeline_mode = #tpu.pipeline_mode<synchronous>, transform_indices = @transform_7, window_bounds = array<i64: 128, 128>}, {pipeline_mode = #tpu.pipeline_mode<synchronous>, transform_indices = @transform_8, window_bounds = array<i64: 1, 128>}, {transform_indices = @transform_9, window_bounds = array<i64: 2, 128>}]} {
    %cst = arith.constant 0.000000e+00 : f32
    %0 = vector.broadcast %cst : f32 to vector<2x18x18x4xf32>
    %c0 = arith.constant 0 : index
    %c0_0 = arith.constant 0 : index
    %c0_1 = arith.constant 0 : index
    %c0_2 = arith.constant 0 : index
    %1 = vector.load %arg11[%c0, %c0_0, %c0_1, %c0_2] : memref<2x18x18x4xf32, #tpu.memory_space<vmem>>, vector<2x18x18x4xf32>
    tpu.vector_store %arg11[%c0, %c0_0, %c0_1, %c0_2], %0 {strides = array<i32>} : memref<2x18x18x4xf32, #tpu.memory_space<vmem>>, vector<2x18x18x4xf32>,
    %c0_3 = arith.constant 0 : index
    %c0_4 = arith.constant 0 : index
    %c0_5 = arith.constant 0 : index
    %c0_6 = arith.constant 0 : index
    %2 = vector.load %arg1[%c0_3, %c0_4, %c0_5, %c0_6] : memref<2x16x16x4xf32, #tpu.memory_space<vmem>>, vector<2x16x16x4xf32>
    %c0_7 = arith.constant 0 : index
    %c1 = arith.constant 1 : index
    %c1_8 = arith.constant 1 : index
    %c0_9 = arith.constant 0 : index
    %3 = vector.load %arg11[%c0_7, %c1, %c1_8, %c0_9] : memref<2x18x18x4xf32, #tpu.memory_space<vmem>>, vector<2x16x16x4xf32>
    tpu.vector_store %arg11[%c0_7, %c1, %c1_8, %c0_9], %2 {strides = array<i32>} : memref<2x18x18x4xf32, #tpu.memory_space<vmem>>, vector<2x16x16x4xf32>,
    %c0_10 = arith.constant 0 : index
    %c0_11 = arith.constant 0 : index
    %c0_12 = arith.constant 0 : index
    %c0_13 = arith.constant 0 : index
    %4 = vector.load %arg11[%c0_10, %c0_11, %c0_12, %c0_13] : memref<2x18x18x4xf32, #tpu.memory_space<vmem>>, vector<2x18x18x4xf32>
    %5 = vector.extract_strided_slice %4 {offsets = [0, 0, 0, 0], sizes = [2, 16, 16, 4], strides = [1, 1, 1, 1]} : vector<2x18x18x4xf32> to vector<2x16x16x4xf32>
    %6 = vector.extract_strided_slice %4 {offsets = [0, 0, 1, 0], sizes = [2, 16, 16, 4], strides = [1, 1, 1, 1]} : vector<2x18x18x4xf32> to vector<2x16x16x4xf32>
    %7 = vector.extract_strided_slice %4 {offsets = [0, 0, 2, 0], sizes = [2, 16, 16, 4], strides = [1, 1, 1, 1]} : vector<2x18x18x4xf32> to vector<2x16x16x4xf32>
    %8 = vector.extract_strided_slice %4 {offsets = [0, 1, 0, 0], sizes = [2, 16, 16, 4], strides = [1, 1, 1, 1]} : vector<2x18x18x4xf32> to vector<2x16x16x4xf32>
    %9 = vector.extract_strided_slice %4 {offsets = [0, 1, 1, 0], sizes = [2, 16, 16, 4], strides = [1, 1, 1, 1]} : vector<2x18x18x4xf32> to vector<2x16x16x4xf32>
    %10 = vector.extract_strided_slice %4 {offsets = [0, 1, 2, 0], sizes = [2, 16, 16, 4], strides = [1, 1, 1, 1]} : vector<2x18x18x4xf32> to vector<2x16x16x4xf32>
    %11 = vector.extract_strided_slice %4 {offsets = [0, 2, 0, 0], sizes = [2, 16, 16, 4], strides = [1, 1, 1, 1]} : vector<2x18x18x4xf32> to vector<2x16x16x4xf32>
    %12 = vector.extract_strided_slice %4 {offsets = [0, 2, 1, 0], sizes = [2, 16, 16, 4], strides = [1, 1, 1, 1]} : vector<2x18x18x4xf32> to vector<2x16x16x4xf32>
    %13 = vector.extract_strided_slice %4 {offsets = [0, 2, 2, 0], sizes = [2, 16, 16, 4], strides = [1, 1, 1, 1]} : vector<2x18x18x4xf32> to vector<2x16x16x4xf32>
    %14 = tpu.concatenate %5, %6, %7, %8, %9, %10, %11, %12, %13 in 3 : vector<2x16x16x4xf32>, vector<2x16x16x4xf32>, vector<2x16x16x4xf32>, vector<2x16x16x4xf32>, vector<2x16x16x4xf32>, vector<2x16x16x4xf32>, vector<2x16x16x4xf32>, vector<2x16x16x4xf32>, vector<2x16x16x4xf32> -> vector<2x16x16x36xf32>
    %15 = vector.shape_cast %14 : vector<2x16x16x36xf32> to vector<512x36xf32>
    %16 = arith.truncf %15 : vector<512x36xf32> to vector<512x36xbf16>
    %c0_14 = arith.constant 0 : index
    %c0_15 = arith.constant 0 : index
    %17 = vector.load %arg2[%c0_14, %c0_15] : memref<36x32xbf16, #tpu.memory_space<vmem>>, vector<36x32xbf16>
    %cst_16 = arith.constant dense<0.000000e+00> : vector<512x32xf32>
    %18 = tpu.matmul %16, %17, %cst_16 {dimension_numbers = #tpu.dot_dimension_numbers<[1], [0], [0], [1], [0, 0, 1, 1], [], []>} : vector<512x36xbf16>, vector<36x32xbf16>, vector<512x32xf32> -> vector<512x32xf32>
    %19 = vector.shape_cast %18 : vector<512x32xf32> to vector<16x32x32xf32>
    %20 = vector.extract_strided_slice %19 {offsets = [0, 0, 0], sizes = [16, 16, 32], strides = [1, 1, 1]} : vector<16x32x32xf32> to vector<16x16x32xf32>
    %21 = vector.extract_strided_slice %19 {offsets = [0, 16, 0], sizes = [16, 16, 32], strides = [1, 1, 1]} : vector<16x32x32xf32> to vector<16x16x32xf32>
    %22 = arith.maximumf %20, %21 : vector<16x16x32xf32>
    %c0_17 = arith.constant 0 : index
    %c0_18 = arith.constant 0 : index
    %c0_19 = arith.constant 0 : index
    %23 = vector.load %arg13[%c0_17, %c0_18, %c0_19] : memref<16x16x32xf32, #tpu.memory_space<vmem>>, vector<16x16x32xf32>
    tpu.vector_store %arg13[%c0_17, %c0_18, %c0_19], %22 {strides = array<i32>} : memref<16x16x32xf32, #tpu.memory_space<vmem>>, vector<16x16x32xf32>,
    %c0_20 = arith.constant 0 : index
    %c0_21 = arith.constant 0 : index
    %c0_22 = arith.constant 0 : index
    %24 = tpu.strided_load %arg13[%c0_20, %c0_21, %c0_22] {strides = array<i32: 1, 2, 1>} : memref<16x16x32xf32, #tpu.memory_space<vmem>>, vector<16x8x32xf32>
    %c0_23 = arith.constant 0 : index
    %c1_24 = arith.constant 1 : index
    %c0_25 = arith.constant 0 : index
    %25 = tpu.strided_load %arg13[%c0_23, %c1_24, %c0_25] {strides = array<i32: 1, 2, 1>} : memref<16x16x32xf32, #tpu.memory_space<vmem>>, vector<16x8x32xf32>
    %26 = arith.maximumf %24, %25 : vector<16x8x32xf32>
    %c0_26 = arith.constant 0 : index
    %c0_27 = arith.constant 0 : index
    %27 = vector.load %arg3[%c0_26, %c0_27] : memref<1x32xf32, #tpu.memory_space<vmem>>, vector<1x32xf32>
    %28 = vector.shape_cast %27 : vector<1x32xf32> to vector<1x1x32xf32>
    %29 = vector.broadcast %28 : vector<1x1x32xf32> to vector<16x8x32xf32>
    %30 = arith.addf %26, %29 : vector<16x8x32xf32>
    %cst_28 = arith.constant 0.000000e+00 : f32
    %31 = vector.broadcast %cst_28 : f32 to vector<16x8x32xf32>
    %32 = arith.maximumf %30, %31 : vector<16x8x32xf32>
    %cst_29 = arith.constant 0.000000e+00 : f32
    %33 = vector.broadcast %cst_29 : f32 to vector<2x10x10x32xf32>
    %c0_30 = arith.constant 0 : index
    %c0_31 = arith.constant 0 : index
    %c0_32 = arith.constant 0 : index
    %c0_33 = arith.constant 0 : index
    %34 = vector.load %arg12[%c0_30, %c0_31, %c0_32, %c0_33] : memref<2x10x10x32xf32, #tpu.memory_space<vmem>>, vector<2x10x10x32xf32>
    tpu.vector_store %arg12[%c0_30, %c0_31, %c0_32, %c0_33], %33 {strides = array<i32>} : memref<2x10x10x32xf32, #tpu.memory_space<vmem>>, vector<2x10x10x32xf32>,
    %35 = vector.shape_cast %32 : vector<16x8x32xf32> to vector<2x8x8x32xf32>
    %c0_34 = arith.constant 0 : index
    %c1_35 = arith.constant 1 : index
    %c1_36 = arith.constant 1 : index
    %c0_37 = arith.constant 0 : index
    %36 = vector.load %arg12[%c0_34, %c1_35, %c1_36, %c0_37] : memref<2x10x10x32xf32, #tpu.memory_space<vmem>>, vector<2x8x8x32xf32>
    tpu.vector_store %arg12[%c0_34, %c1_35, %c1_36, %c0_37], %35 {strides = array<i32>} : memref<2x10x10x32xf32, #tpu.memory_space<vmem>>, vector<2x8x8x32xf32>,
    %c0_38 = arith.constant 0 : index
    %c0_39 = arith.constant 0 : index
    %c0_40 = arith.constant 0 : index
    %c0_41 = arith.constant 0 : index
    %37 = vector.load %arg12[%c0_38, %c0_39, %c0_40, %c0_41] : memref<2x10x10x32xf32, #tpu.memory_space<vmem>>, vector<2x10x10x32xf32>
    %38 = vector.extract_strided_slice %37 {offsets = [0, 0, 0, 0], sizes = [2, 8, 8, 32], strides = [1, 1, 1, 1]} : vector<2x10x10x32xf32> to vector<2x8x8x32xf32>
    %39 = vector.extract_strided_slice %37 {offsets = [0, 0, 1, 0], sizes = [2, 8, 8, 32], strides = [1, 1, 1, 1]} : vector<2x10x10x32xf32> to vector<2x8x8x32xf32>
    %40 = vector.extract_strided_slice %37 {offsets = [0, 0, 2, 0], sizes = [2, 8, 8, 32], strides = [1, 1, 1, 1]} : vector<2x10x10x32xf32> to vector<2x8x8x32xf32>
    %41 = vector.extract_strided_slice %37 {offsets = [0, 1, 0, 0], sizes = [2, 8, 8, 32], strides = [1, 1, 1, 1]} : vector<2x10x10x32xf32> to vector<2x8x8x32xf32>
    %42 = vector.extract_strided_slice %37 {offsets = [0, 1, 1, 0], sizes = [2, 8, 8, 32], strides = [1, 1, 1, 1]} : vector<2x10x10x32xf32> to vector<2x8x8x32xf32>
    %43 = vector.extract_strided_slice %37 {offsets = [0, 1, 2, 0], sizes = [2, 8, 8, 32], strides = [1, 1, 1, 1]} : vector<2x10x10x32xf32> to vector<2x8x8x32xf32>
    %44 = vector.extract_strided_slice %37 {offsets = [0, 2, 0, 0], sizes = [2, 8, 8, 32], strides = [1, 1, 1, 1]} : vector<2x10x10x32xf32> to vector<2x8x8x32xf32>
    %45 = vector.extract_strided_slice %37 {offsets = [0, 2, 1, 0], sizes = [2, 8, 8, 32], strides = [1, 1, 1, 1]} : vector<2x10x10x32xf32> to vector<2x8x8x32xf32>
    %46 = vector.extract_strided_slice %37 {offsets = [0, 2, 2, 0], sizes = [2, 8, 8, 32], strides = [1, 1, 1, 1]} : vector<2x10x10x32xf32> to vector<2x8x8x32xf32>
    %47 = tpu.concatenate %38, %39, %40, %41, %42, %43, %44, %45, %46 in 3 : vector<2x8x8x32xf32>, vector<2x8x8x32xf32>, vector<2x8x8x32xf32>, vector<2x8x8x32xf32>, vector<2x8x8x32xf32>, vector<2x8x8x32xf32>, vector<2x8x8x32xf32>, vector<2x8x8x32xf32>, vector<2x8x8x32xf32> -> vector<2x8x8x288xf32>
    %48 = vector.shape_cast %47 : vector<2x8x8x288xf32> to vector<128x288xf32>
    %49 = arith.truncf %48 : vector<128x288xf32> to vector<128x288xbf16>
    %c0_42 = arith.constant 0 : index
    %c0_43 = arith.constant 0 : index
    %50 = vector.load %arg4[%c0_42, %c0_43] : memref<288x64xbf16, #tpu.memory_space<vmem>>, vector<288x64xbf16>
    %cst_44 = arith.constant dense<0.000000e+00> : vector<128x64xf32>
    %51 = tpu.matmul %49, %50, %cst_44 {dimension_numbers = #tpu.dot_dimension_numbers<[1], [0], [0], [1], [0, 0, 1, 1], [], []>} : vector<128x288xbf16>, vector<288x64xbf16>, vector<128x64xf32> -> vector<128x64xf32>
    %52 = vector.shape_cast %51 : vector<128x64xf32> to vector<8x16x64xf32>
    %53 = vector.extract_strided_slice %52 {offsets = [0, 0, 0], sizes = [8, 8, 64], strides = [1, 1, 1]} : vector<8x16x64xf32> to vector<8x8x64xf32>
    %54 = vector.extract_strided_slice %52 {offsets = [0, 8, 0], sizes = [8, 8, 64], strides = [1, 1, 1]} : vector<8x16x64xf32> to vector<8x8x64xf32>
    %55 = arith.maximumf %53, %54 : vector<8x8x64xf32>
    %c0_45 = arith.constant 0 : index
    %c0_46 = arith.constant 0 : index
    %c0_47 = arith.constant 0 : index
    %56 = vector.load %arg14[%c0_45, %c0_46, %c0_47] : memref<8x8x64xf32, #tpu.memory_space<vmem>>, vector<8x8x64xf32>
    tpu.vector_store %arg14[%c0_45, %c0_46, %c0_47], %55 {strides = array<i32>} : memref<8x8x64xf32, #tpu.memory_space<vmem>>, vector<8x8x64xf32>,
    %c0_48 = arith.constant 0 : index
    %c0_49 = arith.constant 0 : index
    %c0_50 = arith.constant 0 : index
    %57 = tpu.strided_load %arg14[%c0_48, %c0_49, %c0_50] {strides = array<i32: 1, 2, 1>} : memref<8x8x64xf32, #tpu.memory_space<vmem>>, vector<8x4x64xf32>
    %c0_51 = arith.constant 0 : index
    %c1_52 = arith.constant 1 : index
    %c0_53 = arith.constant 0 : index
    %58 = tpu.strided_load %arg14[%c0_51, %c1_52, %c0_53] {strides = array<i32: 1, 2, 1>} : memref<8x8x64xf32, #tpu.memory_space<vmem>>, vector<8x4x64xf32>
    %59 = arith.maximumf %57, %58 : vector<8x4x64xf32>
    %c0_54 = arith.constant 0 : index
    %c0_55 = arith.constant 0 : index
    %60 = vector.load %arg5[%c0_54, %c0_55] : memref<1x64xf32, #tpu.memory_space<vmem>>, vector<1x64xf32>
    %61 = vector.shape_cast %60 : vector<1x64xf32> to vector<1x1x64xf32>
    %62 = vector.broadcast %61 : vector<1x1x64xf32> to vector<8x4x64xf32>
    %63 = arith.addf %59, %62 : vector<8x4x64xf32>
    %cst_56 = arith.constant 0.000000e+00 : f32
    %64 = vector.broadcast %cst_56 : f32 to vector<8x4x64xf32>
    %65 = arith.maximumf %63, %64 : vector<8x4x64xf32>
    %66 = vector.shape_cast %65 : vector<8x4x64xf32> to vector<2x4x4x64xf32>
    %67 = vector.extract_strided_slice %66 {offsets = [0, 0, 0, 0], sizes = [2, 1, 1, 64], strides = [1, 1, 1, 1]} : vector<2x4x4x64xf32> to vector<2x1x1x64xf32>
    %68 = vector.shape_cast %67 : vector<2x1x1x64xf32> to vector<2x64xf32>
    %69 = vector.extract_strided_slice %66 {offsets = [0, 0, 1, 0], sizes = [2, 1, 1, 64], strides = [1, 1, 1, 1]} : vector<2x4x4x64xf32> to vector<2x1x1x64xf32>
    %70 = vector.shape_cast %69 : vector<2x1x1x64xf32> to vector<2x64xf32>
    %71 = vector.extract_strided_slice %66 {offsets = [0, 0, 2, 0], sizes = [2, 1, 1, 64], strides = [1, 1, 1, 1]} : vector<2x4x4x64xf32> to vector<2x1x1x64xf32>
    %72 = vector.shape_cast %71 : vector<2x1x1x64xf32> to vector<2x64xf32>
    %73 = vector.extract_strided_slice %66 {offsets = [0, 0, 3, 0], sizes = [2, 1, 1, 64], strides = [1, 1, 1, 1]} : vector<2x4x4x64xf32> to vector<2x1x1x64xf32>
    %74 = vector.shape_cast %73 : vector<2x1x1x64xf32> to vector<2x64xf32>
    %75 = vector.extract_strided_slice %66 {offsets = [0, 1, 0, 0], sizes = [2, 1, 1, 64], strides = [1, 1, 1, 1]} : vector<2x4x4x64xf32> to vector<2x1x1x64xf32>
    %76 = vector.shape_cast %75 : vector<2x1x1x64xf32> to vector<2x64xf32>
    %77 = vector.extract_strided_slice %66 {offsets = [0, 1, 1, 0], sizes = [2, 1, 1, 64], strides = [1, 1, 1, 1]} : vector<2x4x4x64xf32> to vector<2x1x1x64xf32>
    %78 = vector.shape_cast %77 : vector<2x1x1x64xf32> to vector<2x64xf32>
    %79 = vector.extract_strided_slice %66 {offsets = [0, 1, 2, 0], sizes = [2, 1, 1, 64], strides = [1, 1, 1, 1]} : vector<2x4x4x64xf32> to vector<2x1x1x64xf32>
    %80 = vector.shape_cast %79 : vector<2x1x1x64xf32> to vector<2x64xf32>
    %81 = vector.extract_strided_slice %66 {offsets = [0, 1, 3, 0], sizes = [2, 1, 1, 64], strides = [1, 1, 1, 1]} : vector<2x4x4x64xf32> to vector<2x1x1x64xf32>
    %82 = vector.shape_cast %81 : vector<2x1x1x64xf32> to vector<2x64xf32>
    %83 = vector.extract_strided_slice %66 {offsets = [0, 2, 0, 0], sizes = [2, 1, 1, 64], strides = [1, 1, 1, 1]} : vector<2x4x4x64xf32> to vector<2x1x1x64xf32>
    %84 = vector.shape_cast %83 : vector<2x1x1x64xf32> to vector<2x64xf32>
    %85 = vector.extract_strided_slice %66 {offsets = [0, 2, 1, 0], sizes = [2, 1, 1, 64], strides = [1, 1, 1, 1]} : vector<2x4x4x64xf32> to vector<2x1x1x64xf32>
    %86 = vector.shape_cast %85 : vector<2x1x1x64xf32> to vector<2x64xf32>
    %87 = vector.extract_strided_slice %66 {offsets = [0, 2, 2, 0], sizes = [2, 1, 1, 64], strides = [1, 1, 1, 1]} : vector<2x4x4x64xf32> to vector<2x1x1x64xf32>
    %88 = vector.shape_cast %87 : vector<2x1x1x64xf32> to vector<2x64xf32>
    %89 = vector.extract_strided_slice %66 {offsets = [0, 2, 3, 0], sizes = [2, 1, 1, 64], strides = [1, 1, 1, 1]} : vector<2x4x4x64xf32> to vector<2x1x1x64xf32>
    %90 = vector.shape_cast %89 : vector<2x1x1x64xf32> to vector<2x64xf32>
    %91 = vector.extract_strided_slice %66 {offsets = [0, 3, 0, 0], sizes = [2, 1, 1, 64], strides = [1, 1, 1, 1]} : vector<2x4x4x64xf32> to vector<2x1x1x64xf32>
    %92 = vector.shape_cast %91 : vector<2x1x1x64xf32> to vector<2x64xf32>
    %93 = vector.extract_strided_slice %66 {offsets = [0, 3, 1, 0], sizes = [2, 1, 1, 64], strides = [1, 1, 1, 1]} : vector<2x4x4x64xf32> to vector<2x1x1x64xf32>
    %94 = vector.shape_cast %93 : vector<2x1x1x64xf32> to vector<2x64xf32>
    %95 = vector.extract_strided_slice %66 {offsets = [0, 3, 2, 0], sizes = [2, 1, 1, 64], strides = [1, 1, 1, 1]} : vector<2x4x4x64xf32> to vector<2x1x1x64xf32>
    %96 = vector.shape_cast %95 : vector<2x1x1x64xf32> to vector<2x64xf32>
    %97 = vector.extract_strided_slice %66 {offsets = [0, 3, 3, 0], sizes = [2, 1, 1, 64], strides = [1, 1, 1, 1]} : vector<2x4x4x64xf32> to vector<2x1x1x64xf32>
    %98 = vector.shape_cast %97 : vector<2x1x1x64xf32> to vector<2x64xf32>
    %99 = tpu.concatenate %68, %70, %72, %74, %76, %78, %80, %82, %84, %86, %88, %90, %92, %94, %96, %98 in 1 : vector<2x64xf32>, vector<2x64xf32>, vector<2x64xf32>, vector<2x64xf32>, vector<2x64xf32>, vector<2x64xf32>, vector<2x64xf32>, vector<2x64xf32>, vector<2x64xf32>, vector<2x64xf32>, vector<2x64xf32>, vector<2x64xf32>, vector<2x64xf32>, vector<2x64xf32>, vector<2x64xf32>, vector<2x64xf32> -> vector<2x1024xf32>
    %100 = arith.truncf %99 : vector<2x1024xf32> to vector<2x1024xbf16>
    %c0_57 = arith.constant 0 : index
    %c0_58 = arith.constant 0 : index
    %101 = vector.load %arg6[%c0_57, %c0_58] : memref<1024x128xbf16, #tpu.memory_space<vmem>>, vector<1024x128xbf16>
    %cst_59 = arith.constant dense<0.000000e+00> : vector<2x128xf32>
    %102 = tpu.matmul %100, %101, %cst_59 {dimension_numbers = #tpu.dot_dimension_numbers<[1], [0], [0], [1], [0, 0, 1, 1], [], []>} : vector<2x1024xbf16>, vector<1024x128xbf16>, vector<2x128xf32> -> vector<2x128xf32>
    %c0_60 = arith.constant 0 : index
    %c0_61 = arith.constant 0 : index
    %103 = vector.load %arg7[%c0_60, %c0_61] : memref<1x128xf32, #tpu.memory_space<vmem>>, vector<1x128xf32>
    %104 = vector.broadcast %103 : vector<1x128xf32> to vector<2x128xf32>
    %105 = arith.addf %102, %104 : vector<2x128xf32>
    %cst_62 = arith.constant 0.000000e+00 : f32
    %106 = vector.broadcast %cst_62 : f32 to vector<2x128xf32>
    %107 = arith.maximumf %105, %106 : vector<2x128xf32>
    %108 = arith.truncf %107 : vector<2x128xf32> to vector<2x128xbf16>
    %c0_63 = arith.constant 0 : index
    %c0_64 = arith.constant 0 : index
    %109 = vector.load %arg8[%c0_63, %c0_64] : memref<128x128xbf16, #tpu.memory_space<vmem>>, vector<128x128xbf16>
    %cst_65 = arith.constant dense<0.000000e+00> : vector<2x128xf32>
    %110 = tpu.matmul %108, %109, %cst_65 {dimension_numbers = #tpu.dot_dimension_numbers<[1], [0], [0], [1], [0, 0, 1, 1], [], []>} : vector<2x128xbf16>, vector<128x128xbf16>, vector<2x128xf32> -> vector<2x128xf32>
    %c0_66 = arith.constant 0 : index
    %c0_67 = arith.constant 0 : index
    %111 = vector.load %arg9[%c0_66, %c0_67] : memref<1x128xf32, #tpu.memory_space<vmem>>, vector<1x128xf32>
    %112 = vector.broadcast %111 : vector<1x128xf32> to vector<2x128xf32>
    %113 = arith.addf %110, %112 : vector<2x128xf32>
    %c0_68 = arith.constant 0 : index
    %c0_69 = arith.constant 0 : index
    %114 = vector.load %arg10[%c0_68, %c0_69] : memref<2x128xf32, #tpu.memory_space<vmem>>, vector<2x128xf32>
    tpu.vector_store %arg10[%c0_68, %c0_69], %113 {strides = array<i32>} : memref<2x128xf32, #tpu.memory_space<vmem>>, vector<2x128xf32>,
    return
  }
  func.func @transform_0(%arg0: i32) -> (i32, i32, i32, i32) {
    %c0_i32 = arith.constant 0 : i32
    %c0_i32_0 = arith.constant 0 : i32
    %c0_i32_1 = arith.constant 0 : i32
    %c0_i32_2 = arith.constant 0 : i32
    return %arg0, %c0_i32, %c0_i32_0, %c0_i32_1 : i32, i32, i32, i32
  }
  func.func @transform_1(%arg0: i32) -> (i32, i32) {
    %c0_i32 = arith.constant 0 : i32
    %c0_i32_0 = arith.constant 0 : i32
    %c0_i32_1 = arith.constant 0 : i32
    return %c0_i32, %c0_i32_0 : i32, i32
  }
  func.func @transform_2(%arg0: i32) -> (i32, i32) {
    %c0_i32 = arith.constant 0 : i32
    %c0_i32_0 = arith.constant 0 : i32
    %c0_i32_1 = arith.constant 0 : i32
    return %c0_i32, %c0_i32_0 : i32, i32
  }
  func.func @transform_3(%arg0: i32) -> (i32, i32) {
    %c0_i32 = arith.constant 0 : i32
    %c0_i32_0 = arith.constant 0 : i32
    %c0_i32_1 = arith.constant 0 : i32
    return %c0_i32, %c0_i32_0 : i32, i32
  }
  func.func @transform_4(%arg0: i32) -> (i32, i32) {
    %c0_i32 = arith.constant 0 : i32
    %c0_i32_0 = arith.constant 0 : i32
    %c0_i32_1 = arith.constant 0 : i32
    return %c0_i32, %c0_i32_0 : i32, i32
  }
  func.func @transform_5(%arg0: i32) -> (i32, i32) {
    %c0_i32 = arith.constant 0 : i32
    %c0_i32_0 = arith.constant 0 : i32
    %c0_i32_1 = arith.constant 0 : i32
    return %c0_i32, %c0_i32_0 : i32, i32
  }
  func.func @transform_6(%arg0: i32) -> (i32, i32) {
    %c0_i32 = arith.constant 0 : i32
    %c0_i32_0 = arith.constant 0 : i32
    %c0_i32_1 = arith.constant 0 : i32
    return %c0_i32, %c0_i32_0 : i32, i32
  }
  func.func @transform_7(%arg0: i32) -> (i32, i32) {
    %c0_i32 = arith.constant 0 : i32
    %c0_i32_0 = arith.constant 0 : i32
    %c0_i32_1 = arith.constant 0 : i32
    return %c0_i32, %c0_i32_0 : i32, i32
  }
  func.func @transform_8(%arg0: i32) -> (i32, i32) {
    %c0_i32 = arith.constant 0 : i32
    %c0_i32_0 = arith.constant 0 : i32
    %c0_i32_1 = arith.constant 0 : i32
    return %c0_i32, %c0_i32_0 : i32, i32
  }
  func.func @transform_9(%arg0: i32) -> (i32, i32) {
    %c0_i32 = arith.constant 0 : i32
    %c0_i32_0 = arith.constant 0 : i32
    return %arg0, %c0_i32 : i32, i32
  }
}

</mosaic_0001>

<llo_original>
// kernel: simple_cnn_forward.1
$region0: #{simple_cnn_forward.1}
  #allocation0 [shape = 'u32[]', space=smem, size = 0x4, offset = 0x4, fixed_abs, tag = 'smem constant byte address 0x4 - core index']
  #allocation1 [shape = 'u32[72,128]{1,0:T(1,128)}', space=vmem, size = 0x9000, scoped, tag = 'internal scratch']
  #allocation2 [shape = 'f32[2,18,18,4]{3,2,1,0:T(8,128)}', space=vmem, size = 0x6c000, scoped, tag = 'scratch operand']
  #allocation3 [shape = 'f32[2,10,10,32]{3,2,1,0:T(8,128)}', space=vmem, size = 0x28000, scoped, tag = 'scratch operand']
  #allocation4 [shape = 'f32[16,16,32]{2,1,0:T(8,128)}', space=vmem, size = 0x20000, scoped, tag = 'scratch operand']
  #allocation5 [shape = 'f32[8,8,64]{2,1,0:T(8,128)}', space=vmem, size = 0x8000, scoped, tag = 'scratch operand']
  %s0 = inlined_call_operand.vmem [shape: f32[2,16,16,4], index: 0, kind: input, shape index: {}]
  %s1 = inlined_call_operand.vmem [shape: bf16[36,32], index: 1, kind: input, shape index: {}]
  %s2 = inlined_call_operand.vmem [shape: f32[1,32], index: 2, kind: input, shape index: {}]
  %s3 = inlined_call_operand.vmem [shape: bf16[288,64], index: 3, kind: input, shape index: {}]
  %s4 = inlined_call_operand.vmem [shape: f32[1,64], index: 4, kind: input, shape index: {}]
  %s5 = inlined_call_operand.vmem [shape: bf16[1024,128], index: 5, kind: input, shape index: {}]
  %s6 = inlined_call_operand.vmem [shape: f32[1,128], index: 6, kind: input, shape index: {}]
  %s7 = inlined_call_operand.vmem [shape: bf16[128,128], index: 7, kind: input, shape index: {}]
  %s8 = inlined_call_operand.vmem [shape: f32[1,128], index: 8, kind: input, shape index: {}]
  %s9 = inlined_call_operand.hbm [shape: f32[2,128], index: 9, kind: output, shape index: {}]
  %s10 = sld [smem:[#allocation0]]
  $region46: #{simple_cnn_forward.1} parent=0
    _
  %s12 = ssub.s32 1, %s10
  %s13 = scalar_select 0, %s12, %s10
  $region1: #{simple_cnn_forward.1} parent=0
    #allocation6 [shape = 'u8[1024]{0}', space=vmem, size = 0x400, scoped, tag = 'output window, operand 0, single buffered']
    #allocation7 [shape = 's32[1]{0}', space=sflag, size = 0x4, scoped, tag = 'scoped memory for simple_cnn_forward.1']
    %14 = vsyncpa [#allocation7], 0
    // Predicated region
    $region2: #{simple_cnn_forward.1} parent=1 // pred_check
      _
    $region3: #{simple_cnn_forward.1} parent=1 // pred_check_branch
      %16 = sbr.rel (0) target = $region5
    $region4: #{simple_cnn_forward.1} parent=1 // pred_region
      _
    $region5: #{simple_cnn_forward.1} parent=1 // pred_fallthru
      _
    // Predicated region
    $region6: #{simple_cnn_forward.1} parent=1 // pred_check
      _
    $region7: #{simple_cnn_forward.1} parent=1 // pred_check_branch
      %18 = sbr.rel (0) target = $region9
    $region8: #{simple_cnn_forward.1} parent=1 // pred_region
      _
    $region9: #{simple_cnn_forward.1} parent=1 // pred_fallthru
      _
    // Predicated region
    $region10: #{simple_cnn_forward.1} parent=1 // pred_check
      _
    $region11: #{simple_cnn_forward.1} parent=1 // pred_check_branch
      %20 = sbr.rel (0) target = $region13
    $region12: #{simple_cnn_forward.1} parent=1 // pred_region
      _
    $region13: #{simple_cnn_forward.1} parent=1 // pred_fallthru
      _
    // Predicated region
    $region14: #{simple_cnn_forward.1} parent=1 // pred_check
      _
    $region15: #{simple_cnn_forward.1} parent=1 // pred_check_branch
      %22 = sbr.rel (0) target = $region17
    $region16: #{simple_cnn_forward.1} parent=1 // pred_region
      _
    $region17: #{simple_cnn_forward.1} parent=1 // pred_fallthru
      _
    // Predicated region
    $region18: #{simple_cnn_forward.1} parent=1 // pred_check
      _
    $region19: #{simple_cnn_forward.1} parent=1 // pred_check_branch
      %24 = sbr.rel (0) target = $region21
    $region20: #{simple_cnn_forward.1} parent=1 // pred_region
      _
    $region21: #{simple_cnn_forward.1} parent=1 // pred_fallthru
      _
    // Predicated region
    $region22: #{simple_cnn_forward.1} parent=1 // pred_check
      _
    $region23: #{simple_cnn_forward.1} parent=1 // pred_check_branch
      %26 = sbr.rel (0) target = $region25
    $region24: #{simple_cnn_forward.1} parent=1 // pred_region
      _
    $region25: #{simple_cnn_forward.1} parent=1 // pred_fallthru
      _
    // Predicated region
    $region26: #{simple_cnn_forward.1} parent=1 // pred_check
      _
    $region27: #{simple_cnn_forward.1} parent=1 // pred_check_branch
      %28 = sbr.rel (0) target = $region29
    $region28: #{simple_cnn_forward.1} parent=1 // pred_region
      _
    $region29: #{simple_cnn_forward.1} parent=1 // pred_fallthru
      _
    // Predicated region
    $region30: #{simple_cnn_forward.1} parent=1 // pred_check
      _
    $region31: #{simple_cnn_forward.1} parent=1 // pred_check_branch
      %30 = sbr.rel (0) target = $region33
    $region32: #{simple_cnn_forward.1} parent=1 // pred_region
      _
    $region33: #{simple_cnn_forward.1} parent=1 // pred_fallthru
      _
    // Predicated region
    $region34: #{simple_cnn_forward.1} parent=1 // pred_check
      _
    $region35: #{simple_cnn_forward.1} parent=1 // pred_check_branch
      %32 = sbr.rel (0) target = $region37
    $region36: #{simple_cnn_forward.1} parent=1 // pred_region
      _
    $region37: #{simple_cnn_forward.1} parent=1 // pred_fallthru
      _
    %vm34 = vcmask 31744
    %35 = vst.msk [vmem:[#allocation2] sm:$0xff] %vm34, 0.0
    %36 = vst.msk [vmem:[#allocation2 + $0x8] sm:$0xff] %vm34, 0.0
    %vm37 = vcmask 25600
    %38 = vst.msk [vmem:[#allocation2 + $0x10] sm:$0x3] %vm37, 0.0
    %39 = vst.msk [vmem:[#allocation2 + $0x18] sm:$0xff] %vm34, 0.0
    %40 = vst.msk [vmem:[#allocation2 + $0x20] sm:$0xff] %vm34, 0.0
    %41 = vst.msk [vmem:[#allocation2 + $0x28] sm:$0x3] %vm37, 0.0
    %42 = vst.msk [vmem:[#allocation2 + $0x30] sm:$0xff] %vm34, 0.0
    %43 = vst.msk [vmem:[#allocation2 + $0x38] sm:$0xff] %vm34, 0.0
    %44 = vst.msk [vmem:[#allocation2 + $0x40] sm:$0x3] %vm37, 0.0
    %45 = vst.msk [vmem:[#allocation2 + $0x48] sm:$0xff] %vm34, 0.0
    %46 = vst.msk [vmem:[#allocation2 + $0x50] sm:$0xff] %vm34, 0.0
    %47 = vst.msk [vmem:[#allocation2 + $0x58] sm:$0x3] %vm37, 0.0
    %48 = vst.msk [vmem:[#allocation2 + $0x60] sm:$0xff] %vm34, 0.0
    %49 = vst.msk [vmem:[#allocation2 + $0x68] sm:$0xff] %vm34, 0.0
    %50 = vst.msk [vmem:[#allocation2 + $0x70] sm:$0x3] %vm37, 0.0
    %51 = vst.msk [vmem:[#allocation2 + $0x78] sm:$0xff] %vm34, 0.0
    %52 = vst.msk [vmem:[#allocation2 + $0x80] sm:$0xff] %vm34, 0.0
    %53 = vst.msk [vmem:[#allocation2 + $0x88] sm:$0x3] %vm37, 0.0
    %54 = vst.msk [vmem:[#allocation2 + $0x90] sm:$0xff] %vm34, 0.0
    %55 = vst.msk [vmem:[#allocation2 + $0x98] sm:$0xff] %vm34, 0.0
    %56 = vst.msk [vmem:[#allocation2 + $0xa0] sm:$0x3] %vm37, 0.0
    %57 = vst.msk [vmem:[#allocation2 + $0xa8] sm:$0xff] %vm34, 0.0
    %58 = vst.msk [vmem:[#allocation2 + $0xb0] sm:$0xff] %vm34, 0.0
    %59 = vst.msk [vmem:[#allocation2 + $0xb8] sm:$0x3] %vm37, 0.0
    %60 = vst.msk [vmem:[#allocation2 + $0xc0] sm:$0xff] %vm34, 0.0
    %61 = vst.msk [vmem:[#allocation2 + $0xc8] sm:$0xff] %vm34, 0.0
    %62 = vst.msk [vmem:[#allocation2 + $0xd0] sm:$0x3] %vm37, 0.0
    %63 = vst.msk [vmem:[#allocation2 + $0xd8] sm:$0xff] %vm34, 0.0
    %64 = vst.msk [vmem:[#allocation2 + $0xe0] sm:$0xff] %vm34, 0.0
    %65 = vst.msk [vmem:[#allocation2 + $0xe8] sm:$0x3] %vm37, 0.0
    %66 = vst.msk [vmem:[#allocation2 + $0xf0] sm:$0xff] %vm34, 0.0
    %67 = vst.msk [vmem:[#allocation2 + $0xf8] sm:$0xff] %vm34, 0.0
    %68 = vst.msk [vmem:[#allocation2 + $0x100] sm:$0x3] %vm37, 0.0
    %69 = vst.msk [vmem:[#allocation2 + $0x108] sm:$0xff] %vm34, 0.0
    %70 = vst.msk [vmem:[#allocation2 + $0x110] sm:$0xff] %vm34, 0.0
    %71 = vst.msk [vmem:[#allocation2 + $0x118] sm:$0x3] %vm37, 0.0
    %72 = vst.msk [vmem:[#allocation2 + $0x120] sm:$0xff] %vm34, 0.0
    %73 = vst.msk [vmem:[#allocation2 + $0x128] sm:$0xff] %vm34, 0.0
    %74 = vst.msk [vmem:[#allocation2 + $0x130] sm:$0x3] %vm37, 0.0
    %75 = vst.msk [vmem:[#allocation2 + $0x138] sm:$0xff] %vm34, 0.0
    %76 = vst.msk [vmem:[#allocation2 + $0x140] sm:$0xff] %vm34, 0.0
    %77 = vst.msk [vmem:[#allocation2 + $0x148] sm:$0x3] %vm37, 0.0
    %78 = vst.msk [vmem:[#allocation2 + $0x150] sm:$0xff] %vm34, 0.0
    %79 = vst.msk [vmem:[#allocation2 + $0x158] sm:$0xff] %vm34, 0.0
    %80 = vst.msk [vmem:[#allocation2 + $0x160] sm:$0x3] %vm37, 0.0
    %81 = vst.msk [vmem:[#allocation2 + $0x168] sm:$0xff] %vm34, 0.0
    %82 = vst.msk [vmem:[#allocation2 + $0x170] sm:$0xff] %vm34, 0.0
    %83 = vst.msk [vmem:[#allocation2 + $0x178] sm:$0x3] %vm37, 0.0
    %84 = vst.msk [vmem:[#allocation2 + $0x180] sm:$0xff] %vm34, 0.0
    %85 = vst.msk [vmem:[#allocation2 + $0x188] sm:$0xff] %vm34, 0.0
    %86 = vst.msk [vmem:[#allocation2 + $0x190] sm:$0x3] %vm37, 0.0
    %87 = vst.msk [vmem:[#allocation2 + $0x198] sm:$0xff] %vm34, 0.0
    %88 = vst.msk [vmem:[#allocation2 + $0x1a0] sm:$0xff] %vm34, 0.0
    %89 = vst.msk [vmem:[#allocation2 + $0x1a8] sm:$0x3] %vm37, 0.0
    %90 = vst.msk [vmem:[#allocation2 + $0x1b0] sm:$0xff] %vm34, 0.0
    %91 = vst.msk [vmem:[#allocation2 + $0x1b8] sm:$0xff] %vm34, 0.0
    %92 = vst.msk [vmem:[#allocation2 + $0x1c0] sm:$0x3] %vm37, 0.0
    %93 = vst.msk [vmem:[#allocation2 + $0x1c8] sm:$0xff] %vm34, 0.0
    %94 = vst.msk [vmem:[#allocation2 + $0x1d0] sm:$0xff] %vm34, 0.0
    %95 = vst.msk [vmem:[#allocation2 + $0x1d8] sm:$0x3] %vm37, 0.0
    %96 = vst.msk [vmem:[#allocation2 + $0x1e0] sm:$0xff] %vm34, 0.0
    %97 = vst.msk [vmem:[#allocation2 + $0x1e8] sm:$0xff] %vm34, 0.0
    %98 = vst.msk [vmem:[#allocation2 + $0x1f0] sm:$0x3] %vm37, 0.0
    %99 = vst.msk [vmem:[#allocation2 + $0x1f8] sm:$0xff] %vm34, 0.0
    %100 = vst.msk [vmem:[#allocation2 + $0x200] sm:$0xff] %vm34, 0.0
    %101 = vst.msk [vmem:[#allocation2 + $0x208] sm:$0x3] %vm37, 0.0
    %102 = vst.msk [vmem:[#allocation2 + $0x210] sm:$0xff] %vm34, 0.0
    %103 = vst.msk [vmem:[#allocation2 + $0x218] sm:$0xff] %vm34, 0.0
    %104 = vst.msk [vmem:[#allocation2 + $0x220] sm:$0x3] %vm37, 0.0
    %105 = vst.msk [vmem:[#allocation2 + $0x228] sm:$0xff] %vm34, 0.0
    %106 = vst.msk [vmem:[#allocation2 + $0x230] sm:$0xff] %vm34, 0.0
    %107 = vst.msk [vmem:[#allocation2 + $0x238] sm:$0x3] %vm37, 0.0
    %108 = vst.msk [vmem:[#allocation2 + $0x240] sm:$0xff] %vm34, 0.0
    %109 = vst.msk [vmem:[#allocation2 + $0x248] sm:$0xff] %vm34, 0.0
    %110 = vst.msk [vmem:[#allocation2 + $0x250] sm:$0x3] %vm37, 0.0
    %111 = vst.msk [vmem:[#allocation2 + $0x258] sm:$0xff] %vm34, 0.0
    %112 = vst.msk [vmem:[#allocation2 + $0x260] sm:$0xff] %vm34, 0.0
    %113 = vst.msk [vmem:[#allocation2 + $0x268] sm:$0x3] %vm37, 0.0
    %114 = vst.msk [vmem:[#allocation2 + $0x270] sm:$0xff] %vm34, 0.0
    %115 = vst.msk [vmem:[#allocation2 + $0x278] sm:$0xff] %vm34, 0.0
    %116 = vst.msk [vmem:[#allocation2 + $0x280] sm:$0x3] %vm37, 0.0
    %117 = vst.msk [vmem:[#allocation2 + $0x288] sm:$0xff] %vm34, 0.0
    %118 = vst.msk [vmem:[#allocation2 + $0x290] sm:$0xff] %vm34, 0.0
    %119 = vst.msk [vmem:[#allocation2 + $0x298] sm:$0x3] %vm37, 0.0
    %120 = vst.msk [vmem:[#allocation2 + $0x2a0] sm:$0xff] %vm34, 0.0
    %121 = vst.msk [vmem:[#allocation2 + $0x2a8] sm:$0xff] %vm34, 0.0
    %122 = vst.msk [vmem:[#allocation2 + $0x2b0] sm:$0x3] %vm37, 0.0
    %123 = vst.msk [vmem:[#allocation2 + $0x2b8] sm:$0xff] %vm34, 0.0
    %124 = vst.msk [vmem:[#allocation2 + $0x2c0] sm:$0xff] %vm34, 0.0
    %125 = vst.msk [vmem:[#allocation2 + $0x2c8] sm:$0x3] %vm37, 0.0
    %126 = vst.msk [vmem:[#allocation2 + $0x2d0] sm:$0xff] %vm34, 0.0
    %127 = vst.msk [vmem:[#allocation2 + $0x2d8] sm:$0xff] %vm34, 0.0
    %128 = vst.msk [vmem:[#allocation2 + $0x2e0] sm:$0x3] %vm37, 0.0
    %129 = vst.msk [vmem:[#allocation2 + $0x2e8] sm:$0xff] %vm34, 0.0
    %130 = vst.msk [vmem:[#allocation2 + $0x2f0] sm:$0xff] %vm34, 0.0
    %131 = vst.msk [vmem:[#allocation2 + $0x2f8] sm:$0x3] %vm37, 0.0
    %132 = vst.msk [vmem:[#allocation2 + $0x300] sm:$0xff] %vm34, 0.0
    %133 = vst.msk [vmem:[#allocation2 + $0x308] sm:$0xff] %vm34, 0.0
    %134 = vst.msk [vmem:[#allocation2 + $0x310] sm:$0x3] %vm37, 0.0
    %135 = vst.msk [vmem:[#allocation2 + $0x318] sm:$0xff] %vm34, 0.0
    %136 = vst.msk [vmem:[#allocation2 + $0x320] sm:$0xff] %vm34, 0.0
    %137 = vst.msk [vmem:[#allocation2 + $0x328] sm:$0x3] %vm37, 0.0
    %138 = vst.msk [vmem:[#allocation2 + $0x330] sm:$0xff] %vm34, 0.0
    %139 = vst.msk [vmem:[#allocation2 + $0x338] sm:$0xff] %vm34, 0.0
    %140 = vst.msk [vmem:[#allocation2 + $0x340] sm:$0x3] %vm37, 0.0
    %141 = vst.msk [vmem:[#allocation2 + $0x348] sm:$0xff] %vm34, 0.0
    %142 = vst.msk [vmem:[#allocation2 + $0x350] sm:$0xff] %vm34, 0.0
    %143 = vst.msk [vmem:[#allocation2 + $0x358] sm:$0x3] %vm37, 0.0
    %v144 = vld [vmem:[%s0] sm:$0xff]
    %v145 = vld [vmem:[%s0 + $0x8] sm:$0xff]
    %v146 = vld [vmem:[%s0 + $0x10] sm:$0xff]
    %v147 = vld [vmem:[%s0 + $0x18] sm:$0xff]
    %v148 = vld [vmem:[%s0 + $0x20] sm:$0xff]
    %v149 = vld [vmem:[%s0 + $0x28] sm:$0xff]
    %v150 = vld [vmem:[%s0 + $0x30] sm:$0xff]
    %v151 = vld [vmem:[%s0 + $0x38] sm:$0xff]
    %v152 = vld [vmem:[%s0 + $0x40] sm:$0xff]
    %v153 = vld [vmem:[%s0 + $0x48] sm:$0xff]
    %v154 = vld [vmem:[%s0 + $0x50] sm:$0xff]
    %v155 = vld [vmem:[%s0 + $0x58] sm:$0xff]
    %v156 = vld [vmem:[%s0 + $0x60] sm:$0xff]
    %v157 = vld [vmem:[%s0 + $0x68] sm:$0xff]
    %v158 = vld [vmem:[%s0 + $0x70] sm:$0xff]
    %v159 = vld [vmem:[%s0 + $0x78] sm:$0xff]
    %v160 = vld [vmem:[%s0 + $0x80] sm:$0xff]
    %v161 = vld [vmem:[%s0 + $0x88] sm:$0xff]
    %v162 = vld [vmem:[%s0 + $0x90] sm:$0xff]
    %v163 = vld [vmem:[%s0 + $0x98] sm:$0xff]
    %v164 = vld [vmem:[%s0 + $0xa0] sm:$0xff]
    %v165 = vld [vmem:[%s0 + $0xa8] sm:$0xff]
    %v166 = vld [vmem:[%s0 + $0xb0] sm:$0xff]
    %v167 = vld [vmem:[%s0 + $0xb8] sm:$0xff]
    %v168 = vld [vmem:[%s0 + $0xc0] sm:$0xff]
    %v169 = vld [vmem:[%s0 + $0xc8] sm:$0xff]
    %v170 = vld [vmem:[%s0 + $0xd0] sm:$0xff]
    %v171 = vld [vmem:[%s0 + $0xd8] sm:$0xff]
    %v172 = vld [vmem:[%s0 + $0xe0] sm:$0xff]
    %v173 = vld [vmem:[%s0 + $0xe8] sm:$0xff]
    %v174 = vld [vmem:[%s0 + $0xf0] sm:$0xff]
    %v175 = vld [vmem:[%s0 + $0xf8] sm:$0xff]
    %v176 = vld [vmem:[%s0 + $0x100] sm:$0xff]
    %v177 = vld [vmem:[%s0 + $0x108] sm:$0xff]
    %v178 = vld [vmem:[%s0 + $0x110] sm:$0xff]
    %v179 = vld [vmem:[%s0 + $0x118] sm:$0xff]
    %v180 = vld [vmem:[%s0 + $0x120] sm:$0xff]
    %v181 = vld [vmem:[%s0 + $0x128] sm:$0xff]
    %v182 = vld [vmem:[%s0 + $0x130] sm:$0xff]
    %v183 = vld [vmem:[%s0 + $0x138] sm:$0xff]
    %v184 = vld [vmem:[%s0 + $0x140] sm:$0xff]
    %v185 = vld [vmem:[%s0 + $0x148] sm:$0xff]
    %v186 = vld [vmem:[%s0 + $0x150] sm:$0xff]
    %v187 = vld [vmem:[%s0 + $0x158] sm:$0xff]
    %v188 = vld [vmem:[%s0 + $0x160] sm:$0xff]
    %v189 = vld [vmem:[%s0 + $0x168] sm:$0xff]
    %v190 = vld [vmem:[%s0 + $0x170] sm:$0xff]
    %v191 = vld [vmem:[%s0 + $0x178] sm:$0xff]
    %v192 = vld [vmem:[%s0 + $0x180] sm:$0xff]
    %v193 = vld [vmem:[%s0 + $0x188] sm:$0xff]
    %v194 = vld [vmem:[%s0 + $0x190] sm:$0xff]
    %v195 = vld [vmem:[%s0 + $0x198] sm:$0xff]
    %v196 = vld [vmem:[%s0 + $0x1a0] sm:$0xff]
    %v197 = vld [vmem:[%s0 + $0x1a8] sm:$0xff]
    %v198 = vld [vmem:[%s0 + $0x1b0] sm:$0xff]
    %v199 = vld [vmem:[%s0 + $0x1b8] sm:$0xff]
    %v200 = vld [vmem:[%s0 + $0x1c0] sm:$0xff]
    %v201 = vld [vmem:[%s0 + $0x1c8] sm:$0xff]
    %v202 = vld [vmem:[%s0 + $0x1d0] sm:$0xff]
    %v203 = vld [vmem:[%s0 + $0x1d8] sm:$0xff]
    %v204 = vld [vmem:[%s0 + $0x1e0] sm:$0xff]
    %v205 = vld [vmem:[%s0 + $0x1e8] sm:$0xff]
    %v206 = vld [vmem:[%s0 + $0x1f0] sm:$0xff]
    %v207 = vld [vmem:[%s0 + $0x1f8] sm:$0xff]
    %s208 = scalar_lea.vmem [#allocation2], 24
    %209 = vst.msk [vmem:[%s208 + $0x1] sm:$0xff] %vm34, %v144
    %210 = vst.msk [vmem:[%s208 + $0x9] sm:$0xff] %vm34, %v145
    %211 = vst.msk [vmem:[%s208 + $0x19] sm:$0xff] %vm34, %v146
    %212 = vst.msk [vmem:[%s208 + $0x21] sm:$0xff] %vm34, %v147
    %213 = vst.msk [vmem:[%s208 + $0x31] sm:$0xff] %vm34, %v148
    %214 = vst.msk [vmem:[%s208 + $0x39] sm:$0xff] %vm34, %v149
    %215 = vst.msk [vmem:[%s208 + $0x49] sm:$0xff] %vm34, %v150
    %216 = vst.msk [vmem:[%s208 + $0x51] sm:$0xff] %vm34, %v151
    %217 = vst.msk [vmem:[%s208 + $0x61] sm:$0xff] %vm34, %v152
    %218 = vst.msk [vmem:[%s208 + $0x69] sm:$0xff] %vm34, %v153
    %219 = vst.msk [vmem:[%s208 + $0x79] sm:$0xff] %vm34, %v154
    %220 = vst.msk [vmem:[%s208 + $0x81] sm:$0xff] %vm34, %v155
    %221 = vst.msk [vmem:[%s208 + $0x91] sm:$0xff] %vm34, %v156
    %222 = vst.msk [vmem:[%s208 + $0x99] sm:$0xff] %vm34, %v157
    %223 = vst.msk [vmem:[%s208 + $0xa9] sm:$0xff] %vm34, %v158
    %224 = vst.msk [vmem:[%s208 + $0xb1] sm:$0xff] %vm34, %v159
    %225 = vst.msk [vmem:[%s208 + $0xc1] sm:$0xff] %vm34, %v160
    %226 = vst.msk [vmem:[%s208 + $0xc9] sm:$0xff] %vm34, %v161
    %227 = vst.msk [vmem:[%s208 + $0xd9] sm:$0xff] %vm34, %v162
    %228 = vst.msk [vmem:[%s208 + $0xe1] sm:$0xff] %vm34, %v163
    %229 = vst.msk [vmem:[%s208 + $0xf1] sm:$0xff] %vm34, %v164
    %230 = vst.msk [vmem:[%s208 + $0xf9] sm:$0xff] %vm34, %v165
    %231 = vst.msk [vmem:[%s208 + $0x109] sm:$0xff] %vm34, %v166
    %232 = vst.msk [vmem:[%s208 + $0x111] sm:$0xff] %vm34, %v167
    %233 = vst.msk [vmem:[%s208 + $0x121] sm:$0xff] %vm34, %v168
    %234 = vst.msk [vmem:[%s208 + $0x129] sm:$0xff] %vm34, %v169
    %235 = vst.msk [vmem:[%s208 + $0x139] sm:$0xff] %vm34, %v170
    %236 = vst.msk [vmem:[%s208 + $0x141] sm:$0xff] %vm34, %v171
    %237 = vst.msk [vmem:[%s208 + $0x151] sm:$0xff] %vm34, %v172
    %238 = vst.msk [vmem:[%s208 + $0x159] sm:$0xff] %vm34, %v173
    %239 = vst.msk [vmem:[%s208 + $0x169] sm:$0xff] %vm34, %v174
    %240 = vst.msk [vmem:[%s208 + $0x171] sm:$0xff] %vm34, %v175
    %241 = vst.msk [vmem:[%s208 + $0x1b1] sm:$0xff] %vm34, %v176
    %242 = vst.msk [vmem:[%s208 + $0x1b9] sm:$0xff] %vm34, %v177
    %243 = vst.msk [vmem:[%s208 + $0x1c9] sm:$0xff] %vm34, %v178
    %244 = vst.msk [vmem:[%s208 + $0x1d1] sm:$0xff] %vm34, %v179
    %245 = vst.msk [vmem:[%s208 + $0x1e1] sm:$0xff] %vm34, %v180
    %246 = vst.msk [vmem:[%s208 + $0x1e9] sm:$0xff] %vm34, %v181
    %247 = vst.msk [vmem:[%s208 + $0x1f9] sm:$0xff] %vm34, %v182
    %248 = vst.msk [vmem:[%s208 + $0x201] sm:$0xff] %vm34, %v183
    %249 = vst.msk [vmem:[%s208 + $0x211] sm:$0xff] %vm34, %v184
    %250 = vst.msk [vmem:[%s208 + $0x219] sm:$0xff] %vm34, %v185
    %251 = vst.msk [vmem:[%s208 + $0x229] sm:$0xff] %vm34, %v186
    %252 = vst.msk [vmem:[%s208 + $0x231] sm:$0xff] %vm34, %v187
    %253 = vst.msk [vmem:[%s208 + $0x241] sm:$0xff] %vm34, %v188
    %254 = vst.msk [vmem:[%s208 + $0x249] sm:$0xff] %vm34, %v189
    %255 = vst.msk [vmem:[%s208 + $0x259] sm:$0xff] %vm34, %v190
    %256 = vst.msk [vmem:[%s208 + $0x261] sm:$0xff] %vm34, %v191
    %257 = vst.msk [vmem:[%s208 + $0x271] sm:$0xff] %vm34, %v192
    %258 = vst.msk [vmem:[%s208 + $0x279] sm:$0xff] %vm34, %v193
    %259 = vst.msk [vmem:[%s208 + $0x289] sm:$0xff] %vm34, %v194
    %260 = vst.msk [vmem:[%s208 + $0x291] sm:$0xff] %vm34, %v195
    %261 = vst.msk [vmem:[%s208 + $0x2a1] sm:$0xff] %vm34, %v196
    %262 = vst.msk [vmem:[%s208 + $0x2a9] sm:$0xff] %vm34, %v197
    %263 = vst.msk [vmem:[%s208 + $0x2b9] sm:$0xff] %vm34, %v198
    %264 = vst.msk [vmem:[%s208 + $0x2c1] sm:$0xff] %vm34, %v199
    %265 = vst.msk [vmem:[%s208 + $0x2d1] sm:$0xff] %vm34, %v200
    %266 = vst.msk [vmem:[%s208 + $0x2d9] sm:$0xff] %vm34, %v201
    %267 = vst.msk [vmem:[%s208 + $0x2e9] sm:$0xff] %vm34, %v202
    %268 = vst.msk [vmem:[%s208 + $0x2f1] sm:$0xff] %vm34, %v203
    %269 = vst.msk [vmem:[%s208 + $0x301] sm:$0xff] %vm34, %v204
    %270 = vst.msk [vmem:[%s208 + $0x309] sm:$0xff] %vm34, %v205
    %271 = vst.msk [vmem:[%s208 + $0x319] sm:$0xff] %vm34, %v206
    %272 = vst.msk [vmem:[%s208 + $0x321] sm:$0xff] %vm34, %v207
    %v273 = vld [vmem:[#allocation2] sm:$0xff]
    %v274 = vld [vmem:[#allocation2 + $0x8] sm:$0xff]
    %v275 = vld [vmem:[#allocation2 + $0x10] sm:$0x3]
    %v276 = vld [vmem:[#allocation2 + $0x18] sm:$0xff]
    %v277 = vld [vmem:[#allocation2 + $0x20] sm:$0xff]
    %v278 = vld [vmem:[#allocation2 + $0x28] sm:$0x3]
    %v279 = vld [vmem:[#allocation2 + $0x30] sm:$0xff]
    %v280 = vld [vmem:[#allocation2 + $0x38] sm:$0xff]
    %v281 = vld [vmem:[#allocation2 + $0x40] sm:$0x3]
    %v282 = vld [vmem:[#allocation2 + $0x48] sm:$0xff]
    %v283 = vld [vmem:[#allocation2 + $0x50] sm:$0xff]
    %v284 = vld [vmem:[#allocation2 + $0x58] sm:$0x3]
    %v285 = vld [vmem:[#allocation2 + $0x60] sm:$0xff]
    %v286 = vld [vmem:[#allocation2 + $0x68] sm:$0xff]
    %v287 = vld [vmem:[#allocation2 + $0x70] sm:$0x3]
    %v288 = vld [vmem:[#allocation2 + $0x78] sm:$0xff]
    %v289 = vld [vmem:[#allocation2 + $0x80] sm:$0xff]
    %v290 = vld [vmem:[#allocation2 + $0x88] sm:$0x3]
    %v291 = vld [vmem:[#allocation2 + $0x90] sm:$0xff]
    %v292 = vld [vmem:[#allocation2 + $0x98] sm:$0xff]
    %v293 = vld [vmem:[#allocation2 + $0xa0] sm:$0x3]
    %v294 = vld [vmem:[#allocation2 + $0xa8] sm:$0xff]
    %v295 = vld [vmem:[#allocation2 + $0xb0] sm:$0xff]
    %v296 = vld [vmem:[#allocation2 + $0xb8] sm:$0x3]
    %v297 = vld [vmem:[#allocation2 + $0xc0] sm:$0xff]
    %v298 = vld [vmem:[#allocation2 + $0xc8] sm:$0xff]
    %v299 = vld [vmem:[#allocation2 + $0xd0] sm:$0x3]
    %v300 = vld [vmem:[#allocation2 + $0xd8] sm:$0xff]
    %v301 = vld [vmem:[#allocation2 + $0xe0] sm:$0xff]
    %v302 = vld [vmem:[#allocation2 + $0xe8] sm:$0x3]
    %v303 = vld [vmem:[#allocation2 + $0xf0] sm:$0xff]
    %v304 = vld [vmem:[#allocation2 + $0xf8] sm:$0xff]
    %v305 = vld [vmem:[#allocation2 + $0x100] sm:$0x3]
    %v306 = vld [vmem:[#allocation2 + $0x108] sm:$0xff]
    %v307 = vld [vmem:[#allocation2 + $0x110] sm:$0xff]
    %v308 = vld [vmem:[#allocation2 + $0x118] sm:$0x3]
    %v309 = vld [vmem:[#allocation2 + $0x120] sm:$0xff]
    %v310 = vld [vmem:[#allocation2 + $0x128] sm:$0xff]
    %v311 = vld [vmem:[#allocation2 + $0x130] sm:$0x3]
    %v312 = vld [vmem:[#allocation2 + $0x138] sm:$0xff]
    %v313 = vld [vmem:[#allocation2 + $0x140] sm:$0xff]
    %v314 = vld [vmem:[#allocation2 + $0x148] sm:$0x3]
    %v315 = vld [vmem:[#allocation2 + $0x150] sm:$0xff]
    %v316 = vld [vmem:[#allocation2 + $0x158] sm:$0xff]
    %v317 = vld [vmem:[#allocation2 + $0x160] sm:$0x3]
    %v318 = vld [vmem:[#allocation2 + $0x168] sm:$0xff]
    %v319 = vld [vmem:[#allocation2 + $0x170] sm:$0xff]
    %v320 = vld [vmem:[#allocation2 + $0x178] sm:$0x3]
    %v321 = vld [vmem:[#allocation2 + $0x180] sm:$0xff]
    %v322 = vld [vmem:[#allocation2 + $0x188] sm:$0xff]
    %v323 = vld [vmem:[#allocation2 + $0x190] sm:$0x3]
    %v324 = vld [vmem:[#allocation2 + $0x198] sm:$0xff]
    %v325 = vld [vmem:[#allocation2 + $0x1a0] sm:$0xff]
    %v326 = vld [vmem:[#allocation2 + $0x1a8] sm:$0x3]
    %v327 = vld [vmem:[#allocation2 + $0x1b0] sm:$0xff]
    %v328 = vld [vmem:[#allocation2 + $0x1b8] sm:$0xff]
    %v329 = vld [vmem:[#allocation2 + $0x1c0] sm:$0x3]
    %v330 = vld [vmem:[#allocation2 + $0x1c8] sm:$0xff]
    %v331 = vld [vmem:[#allocation2 + $0x1d0] sm:$0xff]
    %v332 = vld [vmem:[#allocation2 + $0x1d8] sm:$0x3]
    %v333 = vld [vmem:[#allocation2 + $0x1e0] sm:$0xff]
    %v334 = vld [vmem:[#allocation2 + $0x1e8] sm:$0xff]
    %v335 = vld [vmem:[#allocation2 + $0x1f0] sm:$0x3]
    %v336 = vld [vmem:[#allocation2 + $0x1f8] sm:$0xff]
    %v337 = vld [vmem:[#allocation2 + $0x200] sm:$0xff]
    %v338 = vld [vmem:[#allocation2 + $0x208] sm:$0x3]
    %v339 = vld [vmem:[#allocation2 + $0x210] sm:$0xff]
    %v340 = vld [vmem:[#allocation2 + $0x218] sm:$0xff]
    %v341 = vld [vmem:[#allocation2 + $0x220] sm:$0x3]
    %v342 = vld [vmem:[#allocation2 + $0x228] sm:$0xff]
    %v343 = vld [vmem:[#allocation2 + $0x230] sm:$0xff]
    %v344 = vld [vmem:[#allocation2 + $0x238] sm:$0x3]
    %v345 = vld [vmem:[#allocation2 + $0x240] sm:$0xff]
    %v346 = vld [vmem:[#allocation2 + $0x248] sm:$0xff]
    %v347 = vld [vmem:[#allocation2 + $0x250] sm:$0x3]
    %v348 = vld [vmem:[#allocation2 + $0x258] sm:$0xff]
    %v349 = vld [vmem:[#allocation2 + $0x260] sm:$0xff]
    %v350 = vld [vmem:[#allocation2 + $0x268] sm:$0x3]
    %v351 = vld [vmem:[#allocation2 + $0x270] sm:$0xff]
    %v352 = vld [vmem:[#allocation2 + $0x278] sm:$0xff]
    %v353 = vld [vmem:[#allocation2 + $0x280] sm:$0x3]
    %v354 = vld [vmem:[#allocation2 + $0x288] sm:$0xff]
    %v355 = vld [vmem:[#allocation2 + $0x290] sm:$0xff]
    %v356 = vld [vmem:[#allocation2 + $0x298] sm:$0x3]
    %v357 = vld [vmem:[#allocation2 + $0x2a0] sm:$0xff]
    %v358 = vld [vmem:[#allocation2 + $0x2a8] sm:$0xff]
    %v359 = vld [vmem:[#allocation2 + $0x2b0] sm:$0x3]
    %v360 = vld [vmem:[#allocation2 + $0x2b8] sm:$0xff]
    %v361 = vld [vmem:[#allocation2 + $0x2c0] sm:$0xff]
    %v362 = vld [vmem:[#allocation2 + $0x2c8] sm:$0x3]
    %v363 = vld [vmem:[#allocation2 + $0x2d0] sm:$0xff]
    %v364 = vld [vmem:[#allocation2 + $0x2d8] sm:$0xff]
    %v365 = vld [vmem:[#allocation2 + $0x2e0] sm:$0x3]
    %v366 = vld [vmem:[#allocation2 + $0x2e8] sm:$0xff]
    %v367 = vld [vmem:[#allocation2 + $0x2f0] sm:$0xff]
    %v368 = vld [vmem:[#allocation2 + $0x2f8] sm:$0x3]
    %v369 = vld [vmem:[#allocation2 + $0x300] sm:$0xff]
    %v370 = vld [vmem:[#allocation2 + $0x308] sm:$0xff]
    %v371 = vld [vmem:[#allocation2 + $0x310] sm:$0x3]
    %v372 = vld [vmem:[#allocation2 + $0x318] sm:$0xff]
    %v373 = vld [vmem:[#allocation2 + $0x320] sm:$0xff]
    %v374 = vld [vmem:[#allocation2 + $0x328] sm:$0x3]
    %v375 = vld [vmem:[#allocation2 + $0x330] sm:$0xff]
    %v376 = vld [vmem:[#allocation2 + $0x338] sm:$0xff]
    %v377 = vld [vmem:[#allocation2 + $0x340] sm:$0x3]
    %v378 = vld [vmem:[#allocation2 + $0x348] sm:$0xff]
    %v379 = vld [vmem:[#allocation2 + $0x350] sm:$0xff]
    %v380 = vld [vmem:[#allocation2 + $0x358] sm:$0x3]
    %vm477 = vcmask 1046528
    %v478 = vrot.slane %v273, 1
    %v479 = vrot.slane %v274, 1
    %v480 = vsel %vm477, %v478, %v479
    %v481 = vrot.slane %v275, 1
    %v482 = vsel %vm477, %v479, %v481
    %v483 = vrot.slane %v276, 1
    %v484 = vrot.slane %v277, 1
    %v485 = vsel %vm477, %v483, %v484
    %v486 = vrot.slane %v278, 1
    %v487 = vsel %vm477, %v484, %v486
    %v488 = vrot.slane %v279, 1
    %v489 = vrot.slane %v280, 1
    %v490 = vsel %vm477, %v488, %v489
    %v491 = vrot.slane %v281, 1
    %v492 = vsel %vm477, %v489, %v491
    %v493 = vrot.slane %v282, 1
    %v494 = vrot.slane %v283, 1
    %v495 = vsel %vm477, %v493, %v494
    %v496 = vrot.slane %v284, 1
    %v497 = vsel %vm477, %v494, %v496
    %v498 = vrot.slane %v285, 1
    %v499 = vrot.slane %v286, 1
    %v500 = vsel %vm477, %v498, %v499
    %v501 = vrot.slane %v287, 1
    %v502 = vsel %vm477, %v499, %v501
    %v503 = vrot.slane %v288, 1
    %v504 = vrot.slane %v289, 1
    %v505 = vsel %vm477, %v503, %v504
    %v506 = vrot.slane %v290, 1
    %v507 = vsel %vm477, %v504, %v506
    %v508 = vrot.slane %v291, 1
    %v509 = vrot.slane %v292, 1
    %v510 = vsel %vm477, %v508, %v509
    %v511 = vrot.slane %v293, 1
    %v512 = vsel %vm477, %v509, %v511
    %v513 = vrot.slane %v294, 1
    %v514 = vrot.slane %v295, 1
    %v515 = vsel %vm477, %v513, %v514
    %v516 = vrot.slane %v296, 1
    %v517 = vsel %vm477, %v514, %v516
    %v518 = vrot.slane %v297, 1
    %v519 = vrot.slane %v298, 1
    %v520 = vsel %vm477, %v518, %v519
    %v521 = vrot.slane %v299, 1
    %v522 = vsel %vm477, %v519, %v521
    %v523 = vrot.slane %v300, 1
    %v524 = vrot.slane %v301, 1
    %v525 = vsel %vm477, %v523, %v524
    %v526 = vrot.slane %v302, 1
    %v527 = vsel %vm477, %v524, %v526
    %v528 = vrot.slane %v303, 1
    %v529 = vrot.slane %v304, 1
    %v530 = vsel %vm477, %v528, %v529
    %v531 = vrot.slane %v305, 1
    %v532 = vsel %vm477, %v529, %v531
    %v533 = vrot.slane %v306, 1
    %v534 = vrot.slane %v307, 1
    %v535 = vsel %vm477, %v533, %v534
    %v536 = vrot.slane %v308, 1
    %v537 = vsel %vm477, %v534, %v536
    %v538 = vrot.slane %v309, 1
    %v539 = vrot.slane %v310, 1
    %v540 = vsel %vm477, %v538, %v539
    %v541 = vrot.slane %v311, 1
    %v542 = vsel %vm477, %v539, %v541
    %v543 = vrot.slane %v312, 1
    %v544 = vrot.slane %v313, 1
    %v545 = vsel %vm477, %v543, %v544
    %v546 = vrot.slane %v314, 1
    %v547 = vsel %vm477, %v544, %v546
    %v548 = vrot.slane %v315, 1
    %v549 = vrot.slane %v316, 1
    %v550 = vsel %vm477, %v548, %v549
    %v551 = vrot.slane %v317, 1
    %v552 = vsel %vm477, %v549, %v551
    %v553 = vrot.slane %v318, 1
    %v554 = vrot.slane %v319, 1
    %v555 = vsel %vm477, %v553, %v554
    %v556 = vrot.slane %v320, 1
    %v557 = vsel %vm477, %v554, %v556
    %v558 = vrot.slane %v327, 1
    %v559 = vrot.slane %v328, 1
    %v560 = vsel %vm477, %v558, %v559
    %v561 = vrot.slane %v329, 1
    %v562 = vsel %vm477, %v559, %v561
    %v563 = vrot.slane %v330, 1
    %v564 = vrot.slane %v331, 1
    %v565 = vsel %vm477, %v563, %v564
    %v566 = vrot.slane %v332, 1
    %v567 = vsel %vm477, %v564, %v566
    %v568 = vrot.slane %v333, 1
    %v569 = vrot.slane %v334, 1
    %v570 = vsel %vm477, %v568, %v569
    %v571 = vrot.slane %v335, 1
    %v572 = vsel %vm477, %v569, %v571
    %v573 = vrot.slane %v336, 1
    %v574 = vrot.slane %v337, 1
    %v575 = vsel %vm477, %v573, %v574
    %v576 = vrot.slane %v338, 1
    %v577 = vsel %vm477, %v574, %v576
    %v578 = vrot.slane %v339, 1
    %v579 = vrot.slane %v340, 1
    %v580 = vsel %vm477, %v578, %v579
    %v581 = vrot.slane %v341, 1
    %v582 = vsel %vm477, %v579, %v581
    %v583 = vrot.slane %v342, 1
    %v584 = vrot.slane %v343, 1
    %v585 = vsel %vm477, %v583, %v584
    %v586 = vrot.slane %v344, 1
    %v587 = vsel %vm477, %v584, %v586
    %v588 = vrot.slane %v345, 1
    %v589 = vrot.slane %v346, 1
    %v590 = vsel %vm477, %v588, %v589
    %v591 = vrot.slane %v347, 1
    %v592 = vsel %vm477, %v589, %v591
    %v593 = vrot.slane %v348, 1
    %v594 = vrot.slane %v349, 1
    %v595 = vsel %vm477, %v593, %v594
    %v596 = vrot.slane %v350, 1
    %v597 = vsel %vm477, %v594, %v596
    %v598 = vrot.slane %v351, 1
    %v599 = vrot.slane %v352, 1
    %v600 = vsel %vm477, %v598, %v599
    %v601 = vrot.slane %v353, 1
    %v602 = vsel %vm477, %v599, %v601
    %v603 = vrot.slane %v354, 1
    %v604 = vrot.slane %v355, 1
    %v605 = vsel %vm477, %v603, %v604
    %v606 = vrot.slane %v356, 1
    %v607 = vsel %vm477, %v604, %v606
    %v608 = vrot.slane %v357, 1
    %v609 = vrot.slane %v358, 1
    %v610 = vsel %vm477, %v608, %v609
    %v611 = vrot.slane %v359, 1
    %v612 = vsel %vm477, %v609, %v611
    %v613 = vrot.slane %v360, 1
    %v614 = vrot.slane %v361, 1
    %v615 = vsel %vm477, %v613, %v614
    %v616 = vrot.slane %v362, 1
    %v617 = vsel %vm477, %v614, %v616
    %v618 = vrot.slane %v363, 1
    %v619 = vrot.slane %v364, 1
    %v620 = vsel %vm477, %v618, %v619
    %v621 = vrot.slane %v365, 1
    %v622 = vsel %vm477, %v619, %v621
    %v623 = vrot.slane %v366, 1
    %v624 = vrot.slane %v367, 1
    %v625 = vsel %vm477, %v623, %v624
    %v626 = vrot.slane %v368, 1
    %v627 = vsel %vm477, %v624, %v626
    %v628 = vrot.slane %v369, 1
    %v629 = vrot.slane %v370, 1
    %v630 = vsel %vm477, %v628, %v629
    %v631 = vrot.slane %v371, 1
    %v632 = vsel %vm477, %v629, %v631
    %v633 = vrot.slane %v372, 1
    %v634 = vrot.slane %v373, 1
    %v635 = vsel %vm477, %v633, %v634
    %v636 = vrot.slane %v374, 1
    %v637 = vsel %vm477, %v634, %v636
    %638 = vrot.lane.b32.xlu0 %v480, 4
    %v639 = vpop.permute.xlu0 %638
    %640 = vrot.lane.b32.xlu0 %v482, 4
    %v641 = vpop.permute.xlu0 %640
    %642 = vrot.lane.b32.xlu0 %v485, 4
    %v643 = vpop.permute.xlu0 %642
    %644 = vrot.lane.b32.xlu0 %v487, 4
    %v645 = vpop.permute.xlu0 %644
    %646 = vrot.lane.b32.xlu0 %v490, 4
    %v647 = vpop.permute.xlu0 %646
    %648 = vrot.lane.b32.xlu0 %v492, 4
    %v649 = vpop.permute.xlu0 %648
    %650 = vrot.lane.b32.xlu0 %v495, 4
    %v651 = vpop.permute.xlu0 %650
    %652 = vrot.lane.b32.xlu0 %v497, 4
    %v653 = vpop.permute.xlu0 %652
    %654 = vrot.lane.b32.xlu0 %v500, 4
    %v655 = vpop.permute.xlu0 %654
    %656 = vrot.lane.b32.xlu0 %v502, 4
    %v657 = vpop.permute.xlu0 %656
    %658 = vrot.lane.b32.xlu0 %v505, 4
    %v659 = vpop.permute.xlu0 %658
    %660 = vrot.lane.b32.xlu0 %v507, 4
    %v661 = vpop.permute.xlu0 %660
    %662 = vrot.lane.b32.xlu0 %v510, 4
    %v663 = vpop.permute.xlu0 %662
    %664 = vrot.lane.b32.xlu0 %v512, 4
    %v665 = vpop.permute.xlu0 %664
    %666 = vrot.lane.b32.xlu0 %v515, 4
    %v667 = vpop.permute.xlu0 %666
    %668 = vrot.lane.b32.xlu0 %v517, 4
    %v669 = vpop.permute.xlu0 %668
    %670 = vrot.lane.b32.xlu0 %v520, 4
    %v671 = vpop.permute.xlu0 %670
    %672 = vrot.lane.b32.xlu0 %v522, 4
    %v673 = vpop.permute.xlu0 %672
    %674 = vrot.lane.b32.xlu0 %v525, 4
    %v675 = vpop.permute.xlu0 %674
    %676 = vrot.lane.b32.xlu0 %v527, 4
    %v677 = vpop.permute.xlu0 %676
    %678 = vrot.lane.b32.xlu0 %v530, 4
    %v679 = vpop.permute.xlu0 %678
    %680 = vrot.lane.b32.xlu0 %v532, 4
    %v681 = vpop.permute.xlu0 %680
    %682 = vrot.lane.b32.xlu0 %v535, 4
    %v683 = vpop.permute.xlu0 %682
    %684 = vrot.lane.b32.xlu0 %v537, 4
    %v685 = vpop.permute.xlu0 %684
    %686 = vrot.lane.b32.xlu0 %v540, 4
    %v687 = vpop.permute.xlu0 %686
    %688 = vrot.lane.b32.xlu0 %v542, 4
    %v689 = vpop.permute.xlu0 %688
    %690 = vrot.lane.b32.xlu0 %v545, 4
    %v691 = vpop.permute.xlu0 %690
    %692 = vrot.lane.b32.xlu0 %v547, 4
    %v693 = vpop.permute.xlu0 %692
    %694 = vrot.lane.b32.xlu0 %v550, 4
    %v695 = vpop.permute.xlu0 %694
    %696 = vrot.lane.b32.xlu0 %v552, 4
    %v697 = vpop.permute.xlu0 %696
    %698 = vrot.lane.b32.xlu0 %v555, 4
    %v699 = vpop.permute.xlu0 %698
    %700 = vrot.lane.b32.xlu0 %v557, 4
    %v701 = vpop.permute.xlu0 %700
    %702 = vrot.lane.b32.xlu0 %v560, 4
    %v703 = vpop.permute.xlu0 %702
    %704 = vrot.lane.b32.xlu0 %v562, 4
    %v705 = vpop.permute.xlu0 %704
    %706 = vrot.lane.b32.xlu0 %v565, 4
    %v707 = vpop.permute.xlu0 %706
    %708 = vrot.lane.b32.xlu0 %v567, 4
    %v709 = vpop.permute.xlu0 %708
    %710 = vrot.lane.b32.xlu0 %v570, 4
    %v711 = vpop.permute.xlu0 %710
    %712 = vrot.lane.b32.xlu0 %v572, 4
    %v713 = vpop.permute.xlu0 %712
    %714 = vrot.lane.b32.xlu0 %v575, 4
    %v715 = vpop.permute.xlu0 %714
    %716 = vrot.lane.b32.xlu0 %v577, 4
    %v717 = vpop.permute.xlu0 %716
    %718 = vrot.lane.b32.xlu0 %v580, 4
    %v719 = vpop.permute.xlu0 %718
    %720 = vrot.lane.b32.xlu0 %v582, 4
    %v721 = vpop.permute.xlu0 %720
    %722 = vrot.lane.b32.xlu0 %v585, 4
    %v723 = vpop.permute.xlu0 %722
    %724 = vrot.lane.b32.xlu0 %v587, 4
    %v725 = vpop.permute.xlu0 %724
    %726 = vrot.lane.b32.xlu0 %v590, 4
    %v727 = vpop.permute.xlu0 %726
    %728 = vrot.lane.b32.xlu0 %v592, 4
    %v729 = vpop.permute.xlu0 %728
    %730 = vrot.lane.b32.xlu0 %v595, 4
    %v731 = vpop.permute.xlu0 %730
    %732 = vrot.lane.b32.xlu0 %v597, 4
    %v733 = vpop.permute.xlu0 %732
    %734 = vrot.lane.b32.xlu0 %v600, 4
    %v735 = vpop.permute.xlu0 %734
    %736 = vrot.lane.b32.xlu0 %v602, 4
    %v737 = vpop.permute.xlu0 %736
    %738 = vrot.lane.b32.xlu0 %v605, 4
    %v739 = vpop.permute.xlu0 %738
    %740 = vrot.lane.b32.xlu0 %v607, 4
    %v741 = vpop.permute.xlu0 %740
    %742 = vrot.lane.b32.xlu0 %v610, 4
    %v743 = vpop.permute.xlu0 %742
    %744 = vrot.lane.b32.xlu0 %v612, 4
    %v745 = vpop.permute.xlu0 %744
    %746 = vrot.lane.b32.xlu0 %v615, 4
    %v747 = vpop.permute.xlu0 %746
    %748 = vrot.lane.b32.xlu0 %v617, 4
    %v749 = vpop.permute.xlu0 %748
    %750 = vrot.lane.b32.xlu0 %v620, 4
    %v751 = vpop.permute.xlu0 %750
    %752 = vrot.lane.b32.xlu0 %v622, 4
    %v753 = vpop.permute.xlu0 %752
    %754 = vrot.lane.b32.xlu0 %v625, 4
    %v755 = vpop.permute.xlu0 %754
    %756 = vrot.lane.b32.xlu0 %v627, 4
    %v757 = vpop.permute.xlu0 %756
    %758 = vrot.lane.b32.xlu0 %v630, 4
    %v759 = vpop.permute.xlu0 %758
    %760 = vrot.lane.b32.xlu0 %v632, 4
    %v761 = vpop.permute.xlu0 %760
    %762 = vrot.lane.b32.xlu0 %v635, 4
    %v763 = vpop.permute.xlu0 %762
    %764 = vrot.lane.b32.xlu0 %v637, 4
    %v765 = vpop.permute.xlu0 %764
    %vm830 = vcmask 1045504
    %v831 = vrot.slane %v273, 2
    %v832 = vrot.slane %v274, 2
    %v833 = vsel %vm830, %v831, %v832
    %v834 = vrot.slane %v275, 2
    %v835 = vsel %vm830, %v832, %v834
    %v836 = vrot.slane %v276, 2
    %v837 = vrot.slane %v277, 2
    %v838 = vsel %vm830, %v836, %v837
    %v839 = vrot.slane %v278, 2
    %v840 = vsel %vm830, %v837, %v839
    %v841 = vrot.slane %v279, 2
    %v842 = vrot.slane %v280, 2
    %v843 = vsel %vm830, %v841, %v842
    %v844 = vrot.slane %v281, 2
    %v845 = vsel %vm830, %v842, %v844
    %v846 = vrot.slane %v282, 2
    %v847 = vrot.slane %v283, 2
    %v848 = vsel %vm830, %v846, %v847
    %v849 = vrot.slane %v284, 2
    %v850 = vsel %vm830, %v847, %v849
    %v851 = vrot.slane %v285, 2
    %v852 = vrot.slane %v286, 2
    %v853 = vsel %vm830, %v851, %v852
    %v854 = vrot.slane %v287, 2
    %v855 = vsel %vm830, %v852, %v854
    %v856 = vrot.slane %v288, 2
    %v857 = vrot.slane %v289, 2
    %v858 = vsel %vm830, %v856, %v857
    %v859 = vrot.slane %v290, 2
    %v860 = vsel %vm830, %v857, %v859
    %v861 = vrot.slane %v291, 2
    %v862 = vrot.slane %v292, 2
    %v863 = vsel %vm830, %v861, %v862
    %v864 = vrot.slane %v293, 2
    %v865 = vsel %vm830, %v862, %v864
    %v866 = vrot.slane %v294, 2
    %v867 = vrot.slane %v295, 2
    %v868 = vsel %vm830, %v866, %v867
    %v869 = vrot.slane %v296, 2
    %v870 = vsel %vm830, %v867, %v869
    %v871 = vrot.slane %v297, 2
    %v872 = vrot.slane %v298, 2
    %v873 = vsel %vm830, %v871, %v872
    %v874 = vrot.slane %v299, 2
    %v875 = vsel %vm830, %v872, %v874
    %v876 = vrot.slane %v300, 2
    %v877 = vrot.slane %v301, 2
    %v878 = vsel %vm830, %v876, %v877
    %v879 = vrot.slane %v302, 2
    %v880 = vsel %vm830, %v877, %v879
    %v881 = vrot.slane %v303, 2
    %v882 = vrot.slane %v304, 2
    %v883 = vsel %vm830, %v881, %v882
    %v884 = vrot.slane %v305, 2
    %v885 = vsel %vm830, %v882, %v884
    %v886 = vrot.slane %v306, 2
    %v887 = vrot.slane %v307, 2
    %v888 = vsel %vm830, %v886, %v887
    %v889 = vrot.slane %v308, 2
    %v890 = vsel %vm830, %v887, %v889
    %v891 = vrot.slane %v309, 2
    %v892 = vrot.slane %v310, 2
    %v893 = vsel %vm830, %v891, %v892
    %v894 = vrot.slane %v311, 2
    %v895 = vsel %vm830, %v892, %v894
    %v896 = vrot.slane %v312, 2
    %v897 = vrot.slane %v313, 2
    %v898 = vsel %vm830, %v896, %v897
    %v899 = vrot.slane %v314, 2
    %v900 = vsel %vm830, %v897, %v899
    %v901 = vrot.slane %v315, 2
    %v902 = vrot.slane %v316, 2
    %v903 = vsel %vm830, %v901, %v902
    %v904 = vrot.slane %v317, 2
    %v905 = vsel %vm830, %v902, %v904
    %v906 = vrot.slane %v318, 2
    %v907 = vrot.slane %v319, 2
    %v908 = vsel %vm830, %v906, %v907
    %v909 = vrot.slane %v320, 2
    %v910 = vsel %vm830, %v907, %v909
    %v911 = vrot.slane %v327, 2
    %v912 = vrot.slane %v328, 2
    %v913 = vsel %vm830, %v911, %v912
    %v914 = vrot.slane %v329, 2
    %v915 = vsel %vm830, %v912, %v914
    %v916 = vrot.slane %v330, 2
    %v917 = vrot.slane %v331, 2
    %v918 = vsel %vm830, %v916, %v917
    %v919 = vrot.slane %v332, 2
    %v920 = vsel %vm830, %v917, %v919
    %v921 = vrot.slane %v333, 2
    %v922 = vrot.slane %v334, 2
    %v923 = vsel %vm830, %v921, %v922
    %v924 = vrot.slane %v335, 2
    %v925 = vsel %vm830, %v922, %v924
    %v926 = vrot.slane %v336, 2
    %v927 = vrot.slane %v337, 2
    %v928 = vsel %vm830, %v926, %v927
    %v929 = vrot.slane %v338, 2
    %v930 = vsel %vm830, %v927, %v929
    %v931 = vrot.slane %v339, 2
    %v932 = vrot.slane %v340, 2
    %v933 = vsel %vm830, %v931, %v932
    %v934 = vrot.slane %v341, 2
    %v935 = vsel %vm830, %v932, %v934
    %v936 = vrot.slane %v342, 2
    %v937 = vrot.slane %v343, 2
    %v938 = vsel %vm830, %v936, %v937
    %v939 = vrot.slane %v344, 2
    %v940 = vsel %vm830, %v937, %v939
    %v941 = vrot.slane %v345, 2
    %v942 = vrot.slane %v346, 2
    %v943 = vsel %vm830, %v941, %v942
    %v944 = vrot.slane %v347, 2
    %v945 = vsel %vm830, %v942, %v944
    %v946 = vrot.slane %v348, 2
    %v947 = vrot.slane %v349, 2
    %v948 = vsel %vm830, %v946, %v947
    %v949 = vrot.slane %v350, 2
    %v950 = vsel %vm830, %v947, %v949
    %v951 = vrot.slane %v351, 2
    %v952 = vrot.slane %v352, 2
    %v953 = vsel %vm830, %v951, %v952
    %v954 = vrot.slane %v353, 2
    %v955 = vsel %vm830, %v952, %v954
    %v956 = vrot.slane %v354, 2
    %v957 = vrot.slane %v355, 2
    %v958 = vsel %vm830, %v956, %v957
    %v959 = vrot.slane %v356, 2
    %v960 = vsel %vm830, %v957, %v959
    %v961 = vrot.slane %v357, 2
    %v962 = vrot.slane %v358, 2
    %v963 = vsel %vm830, %v961, %v962
    %v964 = vrot.slane %v359, 2
    %v965 = vsel %vm830, %v962, %v964
    %v966 = vrot.slane %v360, 2
    %v967 = vrot.slane %v361, 2
    %v968 = vsel %vm830, %v966, %v967
    %v969 = vrot.slane %v362, 2
    %v970 = vsel %vm830, %v967, %v969
    %v971 = vrot.slane %v363, 2
    %v972 = vrot.slane %v364, 2
    %v973 = vsel %vm830, %v971, %v972
    %v974 = vrot.slane %v365, 2
    %v975 = vsel %vm830, %v972, %v974
    %v976 = vrot.slane %v366, 2
    %v977 = vrot.slane %v367, 2
    %v978 = vsel %vm830, %v976, %v977
    %v979 = vrot.slane %v368, 2
    %v980 = vsel %vm830, %v977, %v979
    %v981 = vrot.slane %v369, 2
    %v982 = vrot.slane %v370, 2
    %v983 = vsel %vm830, %v981, %v982
    %v984 = vrot.slane %v371, 2
    %v985 = vsel %vm830, %v982, %v984
    %v986 = vrot.slane %v372, 2
    %v987 = vrot.slane %v373, 2
    %v988 = vsel %vm830, %v986, %v987
    %v989 = vrot.slane %v374, 2
    %v990 = vsel %vm830, %v987, %v989
    %991 = vrot.lane.b32.xlu0 %v833, 8
    %v992 = vpop.permute.xlu0 %991
    %993 = vrot.lane.b32.xlu0 %v835, 8
    %v994 = vpop.permute.xlu0 %993
    %995 = vrot.lane.b32.xlu0 %v838, 8
    %v996 = vpop.permute.xlu0 %995
    %997 = vrot.lane.b32.xlu0 %v840, 8
    %v998 = vpop.permute.xlu0 %997
    %999 = vrot.lane.b32.xlu0 %v843, 8
    %v1000 = vpop.permute.xlu0 %999
    %1001 = vrot.lane.b32.xlu0 %v845, 8
    %v1002 = vpop.permute.xlu0 %1001
    %1003 = vrot.lane.b32.xlu0 %v848, 8
    %v1004 = vpop.permute.xlu0 %1003
    %1005 = vrot.lane.b32.xlu0 %v850, 8
    %v1006 = vpop.permute.xlu0 %1005
    %1007 = vrot.lane.b32.xlu0 %v853, 8
    %v1008 = vpop.permute.xlu0 %1007
    %1009 = vrot.lane.b32.xlu0 %v855, 8
    %v1010 = vpop.permute.xlu0 %1009
    %1011 = vrot.lane.b32.xlu0 %v858, 8
    %v1012 = vpop.permute.xlu0 %1011
    %1013 = vrot.lane.b32.xlu0 %v860, 8
    %v1014 = vpop.permute.xlu0 %1013
    %1015 = vrot.lane.b32.xlu0 %v863, 8
    %v1016 = vpop.permute.xlu0 %1015
    %1017 = vrot.lane.b32.xlu0 %v865, 8
    %v1018 = vpop.permute.xlu0 %1017
    %1019 = vrot.lane.b32.xlu0 %v868, 8
    %v1020 = vpop.permute.xlu0 %1019
    %1021 = vrot.lane.b32.xlu0 %v870, 8
    %v1022 = vpop.permute.xlu0 %1021
    %1023 = vrot.lane.b32.xlu0 %v873, 8
    %v1024 = vpop.permute.xlu0 %1023
    %1025 = vrot.lane.b32.xlu0 %v875, 8
    %v1026 = vpop.permute.xlu0 %1025
    %1027 = vrot.lane.b32.xlu0 %v878, 8
    %v1028 = vpop.permute.xlu0 %1027
    %1029 = vrot.lane.b32.xlu0 %v880, 8
    %v1030 = vpop.permute.xlu0 %1029
    %1031 = vrot.lane.b32.xlu0 %v883, 8
    %v1032 = vpop.permute.xlu0 %1031
    %1033 = vrot.lane.b32.xlu0 %v885, 8
    %v1034 = vpop.permute.xlu0 %1033
    %1035 = vrot.lane.b32.xlu0 %v888, 8
    %v1036 = vpop.permute.xlu0 %1035
    %1037 = vrot.lane.b32.xlu0 %v890, 8
    %v1038 = vpop.permute.xlu0 %1037
    %1039 = vrot.lane.b32.xlu0 %v893, 8
    %v1040 = vpop.permute.xlu0 %1039
    %1041 = vrot.lane.b32.xlu0 %v895, 8
    %v1042 = vpop.permute.xlu0 %1041
    %1043 = vrot.lane.b32.xlu0 %v898, 8
    %v1044 = vpop.permute.xlu0 %1043
    %1045 = vrot.lane.b32.xlu0 %v900, 8
    %v1046 = vpop.permute.xlu0 %1045
    %1047 = vrot.lane.b32.xlu0 %v903, 8
    %v1048 = vpop.permute.xlu0 %1047
    %1049 = vrot.lane.b32.xlu0 %v905, 8
    %v1050 = vpop.permute.xlu0 %1049
    %1051 = vrot.lane.b32.xlu0 %v908, 8
    %v1052 = vpop.permute.xlu0 %1051
    %1053 = vrot.lane.b32.xlu0 %v910, 8
    %v1054 = vpop.permute.xlu0 %1053
    %1055 = vrot.lane.b32.xlu0 %v913, 8
    %v1056 = vpop.permute.xlu0 %1055
    %1057 = vrot.lane.b32.xlu0 %v915, 8
    %v1058 = vpop.permute.xlu0 %1057
    %1059 = vrot.lane.b32.xlu0 %v918, 8
    %v1060 = vpop.permute.xlu0 %1059
    %1061 = vrot.lane.b32.xlu0 %v920, 8
    %v1062 = vpop.permute.xlu0 %1061
    %1063 = vrot.lane.b32.xlu0 %v923, 8
    %v1064 = vpop.permute.xlu0 %1063
    %1065 = vrot.lane.b32.xlu0 %v925, 8
    %v1066 = vpop.permute.xlu0 %1065
    %1067 = vrot.lane.b32.xlu0 %v928, 8
    %v1068 = vpop.permute.xlu0 %1067
    %1069 = vrot.lane.b32.xlu0 %v930, 8
    %v1070 = vpop.permute.xlu0 %1069
    %1071 = vrot.lane.b32.xlu0 %v933, 8
    %v1072 = vpop.permute.xlu0 %1071
    %1073 = vrot.lane.b32.xlu0 %v935, 8
    %v1074 = vpop.permute.xlu0 %1073
    %1075 = vrot.lane.b32.xlu0 %v938, 8
    %v1076 = vpop.permute.xlu0 %1075
    %1077 = vrot.lane.b32.xlu0 %v940, 8
    %v1078 = vpop.permute.xlu0 %1077
    %1079 = vrot.lane.b32.xlu0 %v943, 8
    %v1080 = vpop.permute.xlu0 %1079
    %1081 = vrot.lane.b32.xlu0 %v945, 8
    %v1082 = vpop.permute.xlu0 %1081
    %1083 = vrot.lane.b32.xlu0 %v948, 8
    %v1084 = vpop.permute.xlu0 %1083
    %1085 = vrot.lane.b32.xlu0 %v950, 8
    %v1086 = vpop.permute.xlu0 %1085
    %1087 = vrot.lane.b32.xlu0 %v953, 8
    %v1088 = vpop.permute.xlu0 %1087
    %1089 = vrot.lane.b32.xlu0 %v955, 8
    %v1090 = vpop.permute.xlu0 %1089
    %1091 = vrot.lane.b32.xlu0 %v958, 8
    %v1092 = vpop.permute.xlu0 %1091
    %1093 = vrot.lane.b32.xlu0 %v960, 8
    %v1094 = vpop.permute.xlu0 %1093
    %1095 = vrot.lane.b32.xlu0 %v963, 8
    %v1096 = vpop.permute.xlu0 %1095
    %1097 = vrot.lane.b32.xlu0 %v965, 8
    %v1098 = vpop.permute.xlu0 %1097
    %1099 = vrot.lane.b32.xlu0 %v968, 8
    %v1100 = vpop.permute.xlu0 %1099
    %1101 = vrot.lane.b32.xlu0 %v970, 8
    %v1102 = vpop.permute.xlu0 %1101
    %1103 = vrot.lane.b32.xlu0 %v973, 8
    %v1104 = vpop.permute.xlu0 %1103
    %1105 = vrot.lane.b32.xlu0 %v975, 8
    %v1106 = vpop.permute.xlu0 %1105
    %1107 = vrot.lane.b32.xlu0 %v978, 8
    %v1108 = vpop.permute.xlu0 %1107
    %1109 = vrot.lane.b32.xlu0 %v980, 8
    %v1110 = vpop.permute.xlu0 %1109
    %1111 = vrot.lane.b32.xlu0 %v983, 8
    %v1112 = vpop.permute.xlu0 %1111
    %1113 = vrot.lane.b32.xlu0 %v985, 8
    %v1114 = vpop.permute.xlu0 %1113
    %1115 = vrot.lane.b32.xlu0 %v988, 8
    %v1116 = vpop.permute.xlu0 %1115
    %1117 = vrot.lane.b32.xlu0 %v990, 8
    %v1118 = vpop.permute.xlu0 %1117
    %1187 = vrot.lane.b32.xlu0 %v276, 12
    %v1188 = vpop.permute.xlu0 %1187
    %1189 = vrot.lane.b32.xlu0 %v277, 12
    %v1190 = vpop.permute.xlu0 %1189
    %1191 = vrot.lane.b32.xlu0 %v279, 12
    %v1192 = vpop.permute.xlu0 %1191
    %1193 = vrot.lane.b32.xlu0 %v280, 12
    %v1194 = vpop.permute.xlu0 %1193
    %1195 = vrot.lane.b32.xlu0 %v282, 12
    %v1196 = vpop.permute.xlu0 %1195
    %1197 = vrot.lane.b32.xlu0 %v283, 12
    %v1198 = vpop.permute.xlu0 %1197
    %1199 = vrot.lane.b32.xlu0 %v285, 12
    %v1200 = vpop.permute.xlu0 %1199
    %1201 = vrot.lane.b32.xlu0 %v286, 12
    %v1202 = vpop.permute.xlu0 %1201
    %1203 = vrot.lane.b32.xlu0 %v288, 12
    %v1204 = vpop.permute.xlu0 %1203
    %1205 = vrot.lane.b32.xlu0 %v289, 12
    %v1206 = vpop.permute.xlu0 %1205
    %1207 = vrot.lane.b32.xlu0 %v291, 12
    %v1208 = vpop.permute.xlu0 %1207
    %1209 = vrot.lane.b32.xlu0 %v292, 12
    %v1210 = vpop.permute.xlu0 %1209
    %1211 = vrot.lane.b32.xlu0 %v294, 12
    %v1212 = vpop.permute.xlu0 %1211
    %1213 = vrot.lane.b32.xlu0 %v295, 12
    %v1214 = vpop.permute.xlu0 %1213
    %1215 = vrot.lane.b32.xlu0 %v297, 12
    %v1216 = vpop.permute.xlu0 %1215
    %1217 = vrot.lane.b32.xlu0 %v298, 12
    %v1218 = vpop.permute.xlu0 %1217
    %1219 = vrot.lane.b32.xlu0 %v300, 12
    %v1220 = vpop.permute.xlu0 %1219
    %1221 = vrot.lane.b32.xlu0 %v301, 12
    %v1222 = vpop.permute.xlu0 %1221
    %1223 = vrot.lane.b32.xlu0 %v303, 12
    %v1224 = vpop.permute.xlu0 %1223
    %1225 = vrot.lane.b32.xlu0 %v304, 12
    %v1226 = vpop.permute.xlu0 %1225
    %1227 = vrot.lane.b32.xlu0 %v306, 12
    %v1228 = vpop.permute.xlu0 %1227
    %1229 = vrot.lane.b32.xlu0 %v307, 12
    %v1230 = vpop.permute.xlu0 %1229
    %1231 = vrot.lane.b32.xlu0 %v309, 12
    %v1232 = vpop.permute.xlu0 %1231
    %1233 = vrot.lane.b32.xlu0 %v310, 12
    %v1234 = vpop.permute.xlu0 %1233
    %1235 = vrot.lane.b32.xlu0 %v312, 12
    %v1236 = vpop.permute.xlu0 %1235
    %1237 = vrot.lane.b32.xlu0 %v313, 12
    %v1238 = vpop.permute.xlu0 %1237
    %1239 = vrot.lane.b32.xlu0 %v315, 12
    %v1240 = vpop.permute.xlu0 %1239
    %1241 = vrot.lane.b32.xlu0 %v316, 12
    %v1242 = vpop.permute.xlu0 %1241
    %1243 = vrot.lane.b32.xlu0 %v318, 12
    %v1244 = vpop.permute.xlu0 %1243
    %1245 = vrot.lane.b32.xlu0 %v319, 12
    %v1246 = vpop.permute.xlu0 %1245
    %1247 = vrot.lane.b32.xlu0 %v321, 12
    %v1248 = vpop.permute.xlu0 %1247
    %1249 = vrot.lane.b32.xlu0 %v322, 12
    %v1250 = vpop.permute.xlu0 %1249
    %1251 = vrot.lane.b32.xlu0 %v330, 12
    %v1252 = vpop.permute.xlu0 %1251
    %1253 = vrot.lane.b32.xlu0 %v331, 12
    %v1254 = vpop.permute.xlu0 %1253
    %1255 = vrot.lane.b32.xlu0 %v333, 12
    %v1256 = vpop.permute.xlu0 %1255
    %1257 = vrot.lane.b32.xlu0 %v334, 12
    %v1258 = vpop.permute.xlu0 %1257
    %1259 = vrot.lane.b32.xlu0 %v336, 12
    %v1260 = vpop.permute.xlu0 %1259
    %1261 = vrot.lane.b32.xlu0 %v337, 12
    %v1262 = vpop.permute.xlu0 %1261
    %1263 = vrot.lane.b32.xlu0 %v339, 12
    %v1264 = vpop.permute.xlu0 %1263
    %1265 = vrot.lane.b32.xlu0 %v340, 12
    %v1266 = vpop.permute.xlu0 %1265
    %1267 = vrot.lane.b32.xlu0 %v342, 12
    %v1268 = vpop.permute.xlu0 %1267
    %1269 = vrot.lane.b32.xlu0 %v343, 12
    %v1270 = vpop.permute.xlu0 %1269
    %1271 = vrot.lane.b32.xlu0 %v345, 12
    %v1272 = vpop.permute.xlu0 %1271
    %1273 = vrot.lane.b32.xlu0 %v346, 12
    %v1274 = vpop.permute.xlu0 %1273
    %1275 = vrot.lane.b32.xlu0 %v348, 12
    %v1276 = vpop.permute.xlu0 %1275
    %1277 = vrot.lane.b32.xlu0 %v349, 12
    %v1278 = vpop.permute.xlu0 %1277
    %1279 = vrot.lane.b32.xlu0 %v351, 12
    %v1280 = vpop.permute.xlu0 %1279
    %1281 = vrot.lane.b32.xlu0 %v352, 12
    %v1282 = vpop.permute.xlu0 %1281
    %1283 = vrot.lane.b32.xlu0 %v354, 12
    %v1284 = vpop.permute.xlu0 %1283
    %1285 = vrot.lane.b32.xlu0 %v355, 12
    %v1286 = vpop.permute.xlu0 %1285
    %1287 = vrot.lane.b32.xlu0 %v357, 12
    %v1288 = vpop.permute.xlu0 %1287
    %1289 = vrot.lane.b32.xlu0 %v358, 12
    %v1290 = vpop.permute.xlu0 %1289
    %1291 = vrot.lane.b32.xlu0 %v360, 12
    %v1292 = vpop.permute.xlu0 %1291
    %1293 = vrot.lane.b32.xlu0 %v361, 12
    %v1294 = vpop.permute.xlu0 %1293
    %1295 = vrot.lane.b32.xlu0 %v363, 12
    %v1296 = vpop.permute.xlu0 %1295
    %1297 = vrot.lane.b32.xlu0 %v364, 12
    %v1298 = vpop.permute.xlu0 %1297
    %1299 = vrot.lane.b32.xlu0 %v366, 12
    %v1300 = vpop.permute.xlu0 %1299
    %1301 = vrot.lane.b32.xlu0 %v367, 12
    %v1302 = vpop.permute.xlu0 %1301
    %1303 = vrot.lane.b32.xlu0 %v369, 12
    %v1304 = vpop.permute.xlu0 %1303
    %1305 = vrot.lane.b32.xlu0 %v370, 12
    %v1306 = vpop.permute.xlu0 %1305
    %1307 = vrot.lane.b32.xlu0 %v372, 12
    %v1308 = vpop.permute.xlu0 %1307
    %1309 = vrot.lane.b32.xlu0 %v373, 12
    %v1310 = vpop.permute.xlu0 %1309
    %1311 = vrot.lane.b32.xlu0 %v375, 12
    %v1312 = vpop.permute.xlu0 %1311
    %1313 = vrot.lane.b32.xlu0 %v376, 12
    %v1314 = vpop.permute.xlu0 %1313
    %v1381 = vrot.slane %v321, 1
    %v1382 = vrot.slane %v322, 1
    %v1383 = vsel %vm477, %v1381, %v1382
    %v1384 = vrot.slane %v323, 1
    %v1385 = vsel %vm477, %v1382, %v1384
    %v1386 = vrot.slane %v375, 1
    %v1387 = vrot.slane %v376, 1
    %v1388 = vsel %vm477, %v1386, %v1387
    %v1389 = vrot.slane %v377, 1
    %v1390 = vsel %vm477, %v1387, %v1389
    %1391 = vrot.lane.b32.xlu0 %v485, 16
    %v1392 = vpop.permute.xlu0 %1391
    %1393 = vrot.lane.b32.xlu0 %v487, 16
    %v1394 = vpop.permute.xlu0 %1393
    %1395 = vrot.lane.b32.xlu0 %v490, 16
    %v1396 = vpop.permute.xlu0 %1395
    %1397 = vrot.lane.b32.xlu0 %v492, 16
    %v1398 = vpop.permute.xlu0 %1397
    %1399 = vrot.lane.b32.xlu0 %v495, 16
    %v1400 = vpop.permute.xlu0 %1399
    %1401 = vrot.lane.b32.xlu0 %v497, 16
    %v1402 = vpop.permute.xlu0 %1401
    %1403 = vrot.lane.b32.xlu0 %v500, 16
    %v1404 = vpop.permute.xlu0 %1403
    %1405 = vrot.lane.b32.xlu0 %v502, 16
    %v1406 = vpop.permute.xlu0 %1405
    %1407 = vrot.lane.b32.xlu0 %v505, 16
    %v1408 = vpop.permute.xlu0 %1407
    %1409 = vrot.lane.b32.xlu0 %v507, 16
    %v1410 = vpop.permute.xlu0 %1409
    %1411 = vrot.lane.b32.xlu0 %v510, 16
    %v1412 = vpop.permute.xlu0 %1411
    %1413 = vrot.lane.b32.xlu0 %v512, 16
    %v1414 = vpop.permute.xlu0 %1413
    %1415 = vrot.lane.b32.xlu0 %v515, 16
    %v1416 = vpop.permute.xlu0 %1415
    %1417 = vrot.lane.b32.xlu0 %v517, 16
    %v1418 = vpop.permute.xlu0 %1417
    %1419 = vrot.lane.b32.xlu0 %v520, 16
    %v1420 = vpop.permute.xlu0 %1419
    %1421 = vrot.lane.b32.xlu0 %v522, 16
    %v1422 = vpop.permute.xlu0 %1421
    %1423 = vrot.lane.b32.xlu0 %v525, 16
    %v1424 = vpop.permute.xlu0 %1423
    %1425 = vrot.lane.b32.xlu0 %v527, 16
    %v1426 = vpop.permute.xlu0 %1425
    %1427 = vrot.lane.b32.xlu0 %v530, 16
    %v1428 = vpop.permute.xlu0 %1427
    %1429 = vrot.lane.b32.xlu0 %v532, 16
    %v1430 = vpop.permute.xlu0 %1429
    %1431 = vrot.lane.b32.xlu0 %v535, 16
    %v1432 = vpop.permute.xlu0 %1431
    %1433 = vrot.lane.b32.xlu0 %v537, 16
    %v1434 = vpop.permute.xlu0 %1433
    %1435 = vrot.lane.b32.xlu0 %v540, 16
    %v1436 = vpop.permute.xlu0 %1435
    %1437 = vrot.lane.b32.xlu0 %v542, 16
    %v1438 = vpop.permute.xlu0 %1437
    %1439 = vrot.lane.b32.xlu0 %v545, 16
    %v1440 = vpop.permute.xlu0 %1439
    %1441 = vrot.lane.b32.xlu0 %v547, 16
    %v1442 = vpop.permute.xlu0 %1441
    %1443 = vrot.lane.b32.xlu0 %v550, 16
    %v1444 = vpop.permute.xlu0 %1443
    %1445 = vrot.lane.b32.xlu0 %v552, 16
    %v1446 = vpop.permute.xlu0 %1445
    %1447 = vrot.lane.b32.xlu0 %v555, 16
    %v1448 = vpop.permute.xlu0 %1447
    %1449 = vrot.lane.b32.xlu0 %v557, 16
    %v1450 = vpop.permute.xlu0 %1449
    %1451 = vrot.lane.b32.xlu0 %v1383, 16
    %v1452 = vpop.permute.xlu0 %1451
    %1453 = vrot.lane.b32.xlu0 %v1385, 16
    %v1454 = vpop.permute.xlu0 %1453
    %1455 = vrot.lane.b32.xlu0 %v565, 16
    %v1456 = vpop.permute.xlu0 %1455
    %1457 = vrot.lane.b32.xlu0 %v567, 16
    %v1458 = vpop.permute.xlu0 %1457
    %1459 = vrot.lane.b32.xlu0 %v570, 16
    %v1460 = vpop.permute.xlu0 %1459
    %1461 = vrot.lane.b32.xlu0 %v572, 16
    %v1462 = vpop.permute.xlu0 %1461
    %1463 = vrot.lane.b32.xlu0 %v575, 16
    %v1464 = vpop.permute.xlu0 %1463
    %1465 = vrot.lane.b32.xlu0 %v577, 16
    %v1466 = vpop.permute.xlu0 %1465
    %1467 = vrot.lane.b32.xlu0 %v580, 16
    %v1468 = vpop.permute.xlu0 %1467
    %1469 = vrot.lane.b32.xlu0 %v582, 16
    %v1470 = vpop.permute.xlu0 %1469
    %1471 = vrot.lane.b32.xlu0 %v585, 16
    %v1472 = vpop.permute.xlu0 %1471
    %1473 = vrot.lane.b32.xlu0 %v587, 16
    %v1474 = vpop.permute.xlu0 %1473
    %1475 = vrot.lane.b32.xlu0 %v590, 16
    %v1476 = vpop.permute.xlu0 %1475
    %1477 = vrot.lane.b32.xlu0 %v592, 16
    %v1478 = vpop.permute.xlu0 %1477
    %1479 = vrot.lane.b32.xlu0 %v595, 16
    %v1480 = vpop.permute.xlu0 %1479
    %1481 = vrot.lane.b32.xlu0 %v597, 16
    %v1482 = vpop.permute.xlu0 %1481
    %1483 = vrot.lane.b32.xlu0 %v600, 16
    %v1484 = vpop.permute.xlu0 %1483
    %1485 = vrot.lane.b32.xlu0 %v602, 16
    %v1486 = vpop.permute.xlu0 %1485
    %1487 = vrot.lane.b32.xlu0 %v605, 16
    %v1488 = vpop.permute.xlu0 %1487
    %1489 = vrot.lane.b32.xlu0 %v607, 16
    %v1490 = vpop.permute.xlu0 %1489
    %1491 = vrot.lane.b32.xlu0 %v610, 16
    %v1492 = vpop.permute.xlu0 %1491
    %1493 = vrot.lane.b32.xlu0 %v612, 16
    %v1494 = vpop.permute.xlu0 %1493
    %1495 = vrot.lane.b32.xlu0 %v615, 16
    %v1496 = vpop.permute.xlu0 %1495
    %1497 = vrot.lane.b32.xlu0 %v617, 16
    %v1498 = vpop.permute.xlu0 %1497
    %1499 = vrot.lane.b32.xlu0 %v620, 16
    %v1500 = vpop.permute.xlu0 %1499
    %1501 = vrot.lane.b32.xlu0 %v622, 16
    %v1502 = vpop.permute.xlu0 %1501
    %1503 = vrot.lane.b32.xlu0 %v625, 16
    %v1504 = vpop.permute.xlu0 %1503
    %1505 = vrot.lane.b32.xlu0 %v627, 16
    %v1506 = vpop.permute.xlu0 %1505
    %1507 = vrot.lane.b32.xlu0 %v630, 16
    %v1508 = vpop.permute.xlu0 %1507
    %1509 = vrot.lane.b32.xlu0 %v632, 16
    %v1510 = vpop.permute.xlu0 %1509
    %1511 = vrot.lane.b32.xlu0 %v635, 16
    %v1512 = vpop.permute.xlu0 %1511
    %1513 = vrot.lane.b32.xlu0 %v637, 16
    %v1514 = vpop.permute.xlu0 %1513
    %1515 = vrot.lane.b32.xlu0 %v1388, 16
    %v1516 = vpop.permute.xlu0 %1515
    %1517 = vrot.lane.b32.xlu0 %v1390, 16
    %v1518 = vpop.permute.xlu0 %1517
    %v1583 = vrot.slane %v321, 2
    %v1584 = vrot.slane %v322, 2
    %v1585 = vsel %vm830, %v1583, %v1584
    %v1586 = vrot.slane %v323, 2
    %v1587 = vsel %vm830, %v1584, %v1586
    %v1588 = vrot.slane %v375, 2
    %v1589 = vrot.slane %v376, 2
    %v1590 = vsel %vm830, %v1588, %v1589
    %v1591 = vrot.slane %v377, 2
    %v1592 = vsel %vm830, %v1589, %v1591
    %1593 = vrot.lane.b32.xlu0 %v838, 20
    %v1594 = vpop.permute.xlu0 %1593
    %1595 = vrot.lane.b32.xlu0 %v840, 20
    %v1596 = vpop.permute.xlu0 %1595
    %1597 = vrot.lane.b32.xlu0 %v843, 20
    %v1598 = vpop.permute.xlu0 %1597
    %1599 = vrot.lane.b32.xlu0 %v845, 20
    %v1600 = vpop.permute.xlu0 %1599
    %1601 = vrot.lane.b32.xlu0 %v848, 20
    %v1602 = vpop.permute.xlu0 %1601
    %1603 = vrot.lane.b32.xlu0 %v850, 20
    %v1604 = vpop.permute.xlu0 %1603
    %1605 = vrot.lane.b32.xlu0 %v853, 20
    %v1606 = vpop.permute.xlu0 %1605
    %1607 = vrot.lane.b32.xlu0 %v855, 20
    %v1608 = vpop.permute.xlu0 %1607
    %1609 = vrot.lane.b32.xlu0 %v858, 20
    %v1610 = vpop.permute.xlu0 %1609
    %1611 = vrot.lane.b32.xlu0 %v860, 20
    %v1612 = vpop.permute.xlu0 %1611
    %1613 = vrot.lane.b32.xlu0 %v863, 20
    %v1614 = vpop.permute.xlu0 %1613
    %1615 = vrot.lane.b32.xlu0 %v865, 20
    %v1616 = vpop.permute.xlu0 %1615
    %1617 = vrot.lane.b32.xlu0 %v868, 20
    %v1618 = vpop.permute.xlu0 %1617
    %1619 = vrot.lane.b32.xlu0 %v870, 20
    %v1620 = vpop.permute.xlu0 %1619
    %1621 = vrot.lane.b32.xlu0 %v873, 20
    %v1622 = vpop.permute.xlu0 %1621
    %1623 = vrot.lane.b32.xlu0 %v875, 20
    %v1624 = vpop.permute.xlu0 %1623
    %1625 = vrot.lane.b32.xlu0 %v878, 20
    %v1626 = vpop.permute.xlu0 %1625
    %1627 = vrot.lane.b32.xlu0 %v880, 20
    %v1628 = vpop.permute.xlu0 %1627
    %1629 = vrot.lane.b32.xlu0 %v883, 20
    %v1630 = vpop.permute.xlu0 %1629
    %1631 = vrot.lane.b32.xlu0 %v885, 20
    %v1632 = vpop.permute.xlu0 %1631
    %1633 = vrot.lane.b32.xlu0 %v888, 20
    %v1634 = vpop.permute.xlu0 %1633
    %1635 = vrot.lane.b32.xlu0 %v890, 20
    %v1636 = vpop.permute.xlu0 %1635
    %1637 = vrot.lane.b32.xlu0 %v893, 20
    %v1638 = vpop.permute.xlu0 %1637
    %1639 = vrot.lane.b32.xlu0 %v895, 20
    %v1640 = vpop.permute.xlu0 %1639
    %1641 = vrot.lane.b32.xlu0 %v898, 20
    %v1642 = vpop.permute.xlu0 %1641
    %1643 = vrot.lane.b32.xlu0 %v900, 20
    %v1644 = vpop.permute.xlu0 %1643
    %1645 = vrot.lane.b32.xlu0 %v903, 20
    %v1646 = vpop.permute.xlu0 %1645
    %1647 = vrot.lane.b32.xlu0 %v905, 20
    %v1648 = vpop.permute.xlu0 %1647
    %1649 = vrot.lane.b32.xlu0 %v908, 20
    %v1650 = vpop.permute.xlu0 %1649
    %1651 = vrot.lane.b32.xlu0 %v910, 20
    %v1652 = vpop.permute.xlu0 %1651
    %1653 = vrot.lane.b32.xlu0 %v1585, 20
    %v1654 = vpop.permute.xlu0 %1653
    %1655 = vrot.lane.b32.xlu0 %v1587, 20
    %v1656 = vpop.permute.xlu0 %1655
    %1657 = vrot.lane.b32.xlu0 %v918, 20
    %v1658 = vpop.permute.xlu0 %1657
    %1659 = vrot.lane.b32.xlu0 %v920, 20
    %v1660 = vpop.permute.xlu0 %1659
    %1661 = vrot.lane.b32.xlu0 %v923, 20
    %v1662 = vpop.permute.xlu0 %1661
    %1663 = vrot.lane.b32.xlu0 %v925, 20
    %v1664 = vpop.permute.xlu0 %1663
    %1665 = vrot.lane.b32.xlu0 %v928, 20
    %v1666 = vpop.permute.xlu0 %1665
    %1667 = vrot.lane.b32.xlu0 %v930, 20
    %v1668 = vpop.permute.xlu0 %1667
    %1669 = vrot.lane.b32.xlu0 %v933, 20
    %v1670 = vpop.permute.xlu0 %1669
    %1671 = vrot.lane.b32.xlu0 %v935, 20
    %v1672 = vpop.permute.xlu0 %1671
    %1673 = vrot.lane.b32.xlu0 %v938, 20
    %v1674 = vpop.permute.xlu0 %1673
    %1675 = vrot.lane.b32.xlu0 %v940, 20
    %v1676 = vpop.permute.xlu0 %1675
    %1677 = vrot.lane.b32.xlu0 %v943, 20
    %v1678 = vpop.permute.xlu0 %1677
    %1679 = vrot.lane.b32.xlu0 %v945, 20
    %v1680 = vpop.permute.xlu0 %1679
    %1681 = vrot.lane.b32.xlu0 %v948, 20
    %v1682 = vpop.permute.xlu0 %1681
    %1683 = vrot.lane.b32.xlu0 %v950, 20
    %v1684 = vpop.permute.xlu0 %1683
    %1685 = vrot.lane.b32.xlu0 %v953, 20
    %v1686 = vpop.permute.xlu0 %1685
    %1687 = vrot.lane.b32.xlu0 %v955, 20
    %v1688 = vpop.permute.xlu0 %1687
    %1689 = vrot.lane.b32.xlu0 %v958, 20
    %v1690 = vpop.permute.xlu0 %1689
    %1691 = vrot.lane.b32.xlu0 %v960, 20
    %v1692 = vpop.permute.xlu0 %1691
    %1693 = vrot.lane.b32.xlu0 %v963, 20
    %v1694 = vpop.permute.xlu0 %1693
    %1695 = vrot.lane.b32.xlu0 %v965, 20
    %v1696 = vpop.permute.xlu0 %1695
    %1697 = vrot.lane.b32.xlu0 %v968, 20
    %v1698 = vpop.permute.xlu0 %1697
    %1699 = vrot.lane.b32.xlu0 %v970, 20
    %v1700 = vpop.permute.xlu0 %1699
    %1701 = vrot.lane.b32.xlu0 %v973, 20
    %v1702 = vpop.permute.xlu0 %1701
    %1703 = vrot.lane.b32.xlu0 %v975, 20
    %v1704 = vpop.permute.xlu0 %1703
    %1705 = vrot.lane.b32.xlu0 %v978, 20
    %v1706 = vpop.permute.xlu0 %1705
    %1707 = vrot.lane.b32.xlu0 %v980, 20
    %v1708 = vpop.permute.xlu0 %1707
    %1709 = vrot.lane.b32.xlu0 %v983, 20
    %v1710 = vpop.permute.xlu0 %1709
    %1711 = vrot.lane.b32.xlu0 %v985, 20
    %v1712 = vpop.permute.xlu0 %1711
    %1713 = vrot.lane.b32.xlu0 %v988, 20
    %v1714 = vpop.permute.xlu0 %1713
    %1715 = vrot.lane.b32.xlu0 %v990, 20
    %v1716 = vpop.permute.xlu0 %1715
    %1717 = vrot.lane.b32.xlu0 %v1590, 20
    %v1718 = vpop.permute.xlu0 %1717
    %1719 = vrot.lane.b32.xlu0 %v1592, 20
    %v1720 = vpop.permute.xlu0 %1719
    %1789 = vrot.lane.b32.xlu0 %v279, 24
    %v1790 = vpop.permute.xlu0 %1789
    %1791 = vrot.lane.b32.xlu0 %v280, 24
    %v1792 = vpop.permute.xlu0 %1791
    %1793 = vrot.lane.b32.xlu0 %v282, 24
    %v1794 = vpop.permute.xlu0 %1793
    %1795 = vrot.lane.b32.xlu0 %v283, 24
    %v1796 = vpop.permute.xlu0 %1795
    %1797 = vrot.lane.b32.xlu0 %v285, 24
    %v1798 = vpop.permute.xlu0 %1797
    %1799 = vrot.lane.b32.xlu0 %v286, 24
    %v1800 = vpop.permute.xlu0 %1799
    %1801 = vrot.lane.b32.xlu0 %v288, 24
    %v1802 = vpop.permute.xlu0 %1801
    %1803 = vrot.lane.b32.xlu0 %v289, 24
    %v1804 = vpop.permute.xlu0 %1803
    %1805 = vrot.lane.b32.xlu0 %v291, 24
    %v1806 = vpop.permute.xlu0 %1805
    %1807 = vrot.lane.b32.xlu0 %v292, 24
    %v1808 = vpop.permute.xlu0 %1807
    %1809 = vrot.lane.b32.xlu0 %v294, 24
    %v1810 = vpop.permute.xlu0 %1809
    %1811 = vrot.lane.b32.xlu0 %v295, 24
    %v1812 = vpop.permute.xlu0 %1811
    %1813 = vrot.lane.b32.xlu0 %v297, 24
    %v1814 = vpop.permute.xlu0 %1813
    %1815 = vrot.lane.b32.xlu0 %v298, 24
    %v1816 = vpop.permute.xlu0 %1815
    %1817 = vrot.lane.b32.xlu0 %v300, 24
    %v1818 = vpop.permute.xlu0 %1817
    %1819 = vrot.lane.b32.xlu0 %v301, 24
    %v1820 = vpop.permute.xlu0 %1819
    %1821 = vrot.lane.b32.xlu0 %v303, 24
    %v1822 = vpop.permute.xlu0 %1821
    %1823 = vrot.lane.b32.xlu0 %v304, 24
    %v1824 = vpop.permute.xlu0 %1823
    %1825 = vrot.lane.b32.xlu0 %v306, 24
    %v1826 = vpop.permute.xlu0 %1825
    %1827 = vrot.lane.b32.xlu0 %v307, 24
    %v1828 = vpop.permute.xlu0 %1827
    %1829 = vrot.lane.b32.xlu0 %v309, 24
    %v1830 = vpop.permute.xlu0 %1829
    %1831 = vrot.lane.b32.xlu0 %v310, 24
    %v1832 = vpop.permute.xlu0 %1831
    %1833 = vrot.lane.b32.xlu0 %v312, 24
    %v1834 = vpop.permute.xlu0 %1833
    %1835 = vrot.lane.b32.xlu0 %v313, 24
    %v1836 = vpop.permute.xlu0 %1835
    %1837 = vrot.lane.b32.xlu0 %v315, 24
    %v1838 = vpop.permute.xlu0 %1837
    %1839 = vrot.lane.b32.xlu0 %v316, 24
    %v1840 = vpop.permute.xlu0 %1839
    %1841 = vrot.lane.b32.xlu0 %v318, 24
    %v1842 = vpop.permute.xlu0 %1841
    %1843 = vrot.lane.b32.xlu0 %v319, 24
    %v1844 = vpop.permute.xlu0 %1843
    %1845 = vrot.lane.b32.xlu0 %v321, 24
    %v1846 = vpop.permute.xlu0 %1845
    %1847 = vrot.lane.b32.xlu0 %v322, 24
    %v1848 = vpop.permute.xlu0 %1847
    %1849 = vrot.lane.b32.xlu0 %v324, 24
    %v1850 = vpop.permute.xlu0 %1849
    %1851 = vrot.lane.b32.xlu0 %v325, 24
    %v1852 = vpop.permute.xlu0 %1851
    %1853 = vrot.lane.b32.xlu0 %v333, 24
    %v1854 = vpop.permute.xlu0 %1853
    %1855 = vrot.lane.b32.xlu0 %v334, 24
    %v1856 = vpop.permute.xlu0 %1855
    %1857 = vrot.lane.b32.xlu0 %v336, 24
    %v1858 = vpop.permute.xlu0 %1857
    %1859 = vrot.lane.b32.xlu0 %v337, 24
    %v1860 = vpop.permute.xlu0 %1859
    %1861 = vrot.lane.b32.xlu0 %v339, 24
    %v1862 = vpop.permute.xlu0 %1861
    %1863 = vrot.lane.b32.xlu0 %v340, 24
    %v1864 = vpop.permute.xlu0 %1863
    %1865 = vrot.lane.b32.xlu0 %v342, 24
    %v1866 = vpop.permute.xlu0 %1865
    %1867 = vrot.lane.b32.xlu0 %v343, 24
    %v1868 = vpop.permute.xlu0 %1867
    %1869 = vrot.lane.b32.xlu0 %v345, 24
    %v1870 = vpop.permute.xlu0 %1869
    %1871 = vrot.lane.b32.xlu0 %v346, 24
    %v1872 = vpop.permute.xlu0 %1871
    %1873 = vrot.lane.b32.xlu0 %v348, 24
    %v1874 = vpop.permute.xlu0 %1873
    %1875 = vrot.lane.b32.xlu0 %v349, 24
    %v1876 = vpop.permute.xlu0 %1875
    %1877 = vrot.lane.b32.xlu0 %v351, 24
    %v1878 = vpop.permute.xlu0 %1877
    %1879 = vrot.lane.b32.xlu0 %v352, 24
    %v1880 = vpop.permute.xlu0 %1879
    %1881 = vrot.lane.b32.xlu0 %v354, 24
    %v1882 = vpop.permute.xlu0 %1881
    %1883 = vrot.lane.b32.xlu0 %v355, 24
    %v1884 = vpop.permute.xlu0 %1883
    %1885 = vrot.lane.b32.xlu0 %v357, 24
    %v1886 = vpop.permute.xlu0 %1885
    %1887 = vrot.lane.b32.xlu0 %v358, 24
    %v1888 = vpop.permute.xlu0 %1887
    %1889 = vrot.lane.b32.xlu0 %v360, 24
    %v1890 = vpop.permute.xlu0 %1889
    %1891 = vrot.lane.b32.xlu0 %v361, 24
    %v1892 = vpop.permute.xlu0 %1891
    %1893 = vrot.lane.b32.xlu0 %v363, 24
    %v1894 = vpop.permute.xlu0 %1893
    %1895 = vrot.lane.b32.xlu0 %v364, 24
    %v1896 = vpop.permute.xlu0 %1895
    %1897 = vrot.lane.b32.xlu0 %v366, 24
    %v1898 = vpop.permute.xlu0 %1897
    %1899 = vrot.lane.b32.xlu0 %v367, 24
    %v1900 = vpop.permute.xlu0 %1899
    %1901 = vrot.lane.b32.xlu0 %v369, 24
    %v1902 = vpop.permute.xlu0 %1901
    %1903 = vrot.lane.b32.xlu0 %v370, 24
    %v1904 = vpop.permute.xlu0 %1903
    %1905 = vrot.lane.b32.xlu0 %v372, 24
    %v1906 = vpop.permute.xlu0 %1905
    %1907 = vrot.lane.b32.xlu0 %v373, 24
    %v1908 = vpop.permute.xlu0 %1907
    %1909 = vrot.lane.b32.xlu0 %v375, 24
    %v1910 = vpop.permute.xlu0 %1909
    %1911 = vrot.lane.b32.xlu0 %v376, 24
    %v1912 = vpop.permute.xlu0 %1911
    %1913 = vrot.lane.b32.xlu0 %v378, 24
    %v1914 = vpop.permute.xlu0 %1913
    %1915 = vrot.lane.b32.xlu0 %v379, 24
    %v1916 = vpop.permute.xlu0 %1915
    %v1983 = vrot.slane %v324, 1
    %v1984 = vrot.slane %v325, 1
    %v1985 = vsel %vm477, %v1983, %v1984
    %v1986 = vrot.slane %v326, 1
    %v1987 = vsel %vm477, %v1984, %v1986
    %v1988 = vrot.slane %v378, 1
    %v1989 = vrot.slane %v379, 1
    %v1990 = vsel %vm477, %v1988, %v1989
    %v1991 = vrot.slane %v380, 1
    %v1992 = vsel %vm477, %v1989, %v1991
    %1993 = vrot.lane.b32.xlu0 %v490, 28
    %v1994 = vpop.permute.xlu0 %1993
    %1995 = vrot.lane.b32.xlu0 %v492, 28
    %v1996 = vpop.permute.xlu0 %1995
    %1997 = vrot.lane.b32.xlu0 %v495, 28
    %v1998 = vpop.permute.xlu0 %1997
    %1999 = vrot.lane.b32.xlu0 %v497, 28
    %v2000 = vpop.permute.xlu0 %1999
    %2001 = vrot.lane.b32.xlu0 %v500, 28
    %v2002 = vpop.permute.xlu0 %2001
    %2003 = vrot.lane.b32.xlu0 %v502, 28
    %v2004 = vpop.permute.xlu0 %2003
    %2005 = vrot.lane.b32.xlu0 %v505, 28
    %v2006 = vpop.permute.xlu0 %2005
    %2007 = vrot.lane.b32.xlu0 %v507, 28
    %v2008 = vpop.permute.xlu0 %2007
    %2009 = vrot.lane.b32.xlu0 %v510, 28
    %v2010 = vpop.permute.xlu0 %2009
    %2011 = vrot.lane.b32.xlu0 %v512, 28
    %v2012 = vpop.permute.xlu0 %2011
    %2013 = vrot.lane.b32.xlu0 %v515, 28
    %v2014 = vpop.permute.xlu0 %2013
    %2015 = vrot.lane.b32.xlu0 %v517, 28
    %v2016 = vpop.permute.xlu0 %2015
    %2017 = vrot.lane.b32.xlu0 %v520, 28
    %v2018 = vpop.permute.xlu0 %2017
    %2019 = vrot.lane.b32.xlu0 %v522, 28
    %v2020 = vpop.permute.xlu0 %2019
    %2021 = vrot.lane.b32.xlu0 %v525, 28
    %v2022 = vpop.permute.xlu0 %2021
    %2023 = vrot.lane.b32.xlu0 %v527, 28
    %v2024 = vpop.permute.xlu0 %2023
    %2025 = vrot.lane.b32.xlu0 %v530, 28
    %v2026 = vpop.permute.xlu0 %2025
    %2027 = vrot.lane.b32.xlu0 %v532, 28
    %v2028 = vpop.permute.xlu0 %2027
    %2029 = vrot.lane.b32.xlu0 %v535, 28
    %v2030 = vpop.permute.xlu0 %2029
    %2031 = vrot.lane.b32.xlu0 %v537, 28
    %v2032 = vpop.permute.xlu0 %2031
    %2033 = vrot.lane.b32.xlu0 %v540, 28
    %v2034 = vpop.permute.xlu0 %2033
    %2035 = vrot.lane.b32.xlu0 %v542, 28
    %v2036 = vpop.permute.xlu0 %2035
    %2037 = vrot.lane.b32.xlu0 %v545, 28
    %v2038 = vpop.permute.xlu0 %2037
    %2039 = vrot.lane.b32.xlu0 %v547, 28
    %v2040 = vpop.permute.xlu0 %2039
    %2041 = vrot.lane.b32.xlu0 %v550, 28
    %v2042 = vpop.permute.xlu0 %2041
    %2043 = vrot.lane.b32.xlu0 %v552, 28
    %v2044 = vpop.permute.xlu0 %2043
    %2045 = vrot.lane.b32.xlu0 %v555, 28
    %v2046 = vpop.permute.xlu0 %2045
    %2047 = vrot.lane.b32.xlu0 %v557, 28
    %v2048 = vpop.permute.xlu0 %2047
    %2049 = vrot.lane.b32.xlu0 %v1383, 28
    %v2050 = vpop.permute.xlu0 %2049
    %2051 = vrot.lane.b32.xlu0 %v1385, 28
    %v2052 = vpop.permute.xlu0 %2051
    %2053 = vrot.lane.b32.xlu0 %v1985, 28
    %v2054 = vpop.permute.xlu0 %2053
    %2055 = vrot.lane.b32.xlu0 %v1987, 28
    %v2056 = vpop.permute.xlu0 %2055
    %2057 = vrot.lane.b32.xlu0 %v570, 28
    %v2058 = vpop.permute.xlu0 %2057
    %2059 = vrot.lane.b32.xlu0 %v572, 28
    %v2060 = vpop.permute.xlu0 %2059
    %2061 = vrot.lane.b32.xlu0 %v575, 28
    %v2062 = vpop.permute.xlu0 %2061
    %2063 = vrot.lane.b32.xlu0 %v577, 28
    %v2064 = vpop.permute.xlu0 %2063
    %2065 = vrot.lane.b32.xlu0 %v580, 28
    %v2066 = vpop.permute.xlu0 %2065
    %2067 = vrot.lane.b32.xlu0 %v582, 28
    %v2068 = vpop.permute.xlu0 %2067
    %2069 = vrot.lane.b32.xlu0 %v585, 28
    %v2070 = vpop.permute.xlu0 %2069
    %2071 = vrot.lane.b32.xlu0 %v587, 28
    %v2072 = vpop.permute.xlu0 %2071
    %2073 = vrot.lane.b32.xlu0 %v590, 28
    %v2074 = vpop.permute.xlu0 %2073
    %2075 = vrot.lane.b32.xlu0 %v592, 28
    %v2076 = vpop.permute.xlu0 %2075
    %2077 = vrot.lane.b32.xlu0 %v595, 28
    %v2078 = vpop.permute.xlu0 %2077
    %2079 = vrot.lane.b32.xlu0 %v597, 28
    %v2080 = vpop.permute.xlu0 %2079
    %2081 = vrot.lane.b32.xlu0 %v600, 28
    %v2082 = vpop.permute.xlu0 %2081
    %2083 = vrot.lane.b32.xlu0 %v602, 28
    %v2084 = vpop.permute.xlu0 %2083
    %2085 = vrot.lane.b32.xlu0 %v605, 28
    %v2086 = vpop.permute.xlu0 %2085
    %2087 = vrot.lane.b32.xlu0 %v607, 28
    %v2088 = vpop.permute.xlu0 %2087
    %2089 = vrot.lane.b32.xlu0 %v610, 28
    %v2090 = vpop.permute.xlu0 %2089
    %2091 = vrot.lane.b32.xlu0 %v612, 28
    %v2092 = vpop.permute.xlu0 %2091
    %2093 = vrot.lane.b32.xlu0 %v615, 28
    %v2094 = vpop.permute.xlu0 %2093
    %2095 = vrot.lane.b32.xlu0 %v617, 28
    %v2096 = vpop.permute.xlu0 %2095
    %2097 = vrot.lane.b32.xlu0 %v620, 28
    %v2098 = vpop.permute.xlu0 %2097
    %2099 = vrot.lane.b32.xlu0 %v622, 28
    %v2100 = vpop.permute.xlu0 %2099
    %2101 = vrot.lane.b32.xlu0 %v625, 28
    %v2102 = vpop.permute.xlu0 %2101
    %2103 = vrot.lane.b32.xlu0 %v627, 28
    %v2104 = vpop.permute.xlu0 %2103
    %2105 = vrot.lane.b32.xlu0 %v630, 28
    %v2106 = vpop.permute.xlu0 %2105
    %2107 = vrot.lane.b32.xlu0 %v632, 28
    %v2108 = vpop.permute.xlu0 %2107
    %2109 = vrot.lane.b32.xlu0 %v635, 28
    %v2110 = vpop.permute.xlu0 %2109
    %2111 = vrot.lane.b32.xlu0 %v637, 28
    %v2112 = vpop.permute.xlu0 %2111
    %2113 = vrot.lane.b32.xlu0 %v1388, 28
    %v2114 = vpop.permute.xlu0 %2113
    %2115 = vrot.lane.b32.xlu0 %v1390, 28
    %v2116 = vpop.permute.xlu0 %2115
    %2117 = vrot.lane.b32.xlu0 %v1990, 28
    %v2118 = vpop.permute.xlu0 %2117
    %2119 = vrot.lane.b32.xlu0 %v1992, 28
    %v2120 = vpop.permute.xlu0 %2119
    %v2185 = vrot.slane %v324, 2
    %v2186 = vrot.slane %v325, 2
    %v2187 = vsel %vm830, %v2185, %v2186
    %v2188 = vrot.slane %v326, 2
    %v2189 = vsel %vm830, %v2186, %v2188
    %v2190 = vrot.slane %v378, 2
    %v2191 = vrot.slane %v379, 2
    %v2192 = vsel %vm830, %v2190, %v2191
    %v2193 = vrot.slane %v380, 2
    %v2194 = vsel %vm830, %v2191, %v2193
    %2195 = vrot.lane.b32.xlu0 %v843, 32
    %v2196 = vpop.permute.xlu0 %2195
    %2197 = vrot.lane.b32.xlu0 %v845, 32
    %v2198 = vpop.permute.xlu0 %2197
    %2199 = vrot.lane.b32.xlu0 %v848, 32
    %v2200 = vpop.permute.xlu0 %2199
    %2201 = vrot.lane.b32.xlu0 %v850, 32
    %v2202 = vpop.permute.xlu0 %2201
    %2203 = vrot.lane.b32.xlu0 %v853, 32
    %v2204 = vpop.permute.xlu0 %2203
    %2205 = vrot.lane.b32.xlu0 %v855, 32
    %v2206 = vpop.permute.xlu0 %2205
    %2207 = vrot.lane.b32.xlu0 %v858, 32
    %v2208 = vpop.permute.xlu0 %2207
    %2209 = vrot.lane.b32.xlu0 %v860, 32
    %v2210 = vpop.permute.xlu0 %2209
    %2211 = vrot.lane.b32.xlu0 %v863, 32
    %v2212 = vpop.permute.xlu0 %2211
    %2213 = vrot.lane.b32.xlu0 %v865, 32
    %v2214 = vpop.permute.xlu0 %2213
    %2215 = vrot.lane.b32.xlu0 %v868, 32
    %v2216 = vpop.permute.xlu0 %2215
    %2217 = vrot.lane.b32.xlu0 %v870, 32
    %v2218 = vpop.permute.xlu0 %2217
    %2219 = vrot.lane.b32.xlu0 %v873, 32
    %v2220 = vpop.permute.xlu0 %2219
    %2221 = vrot.lane.b32.xlu0 %v875, 32
    %v2222 = vpop.permute.xlu0 %2221
    %2223 = vrot.lane.b32.xlu0 %v878, 32
    %v2224 = vpop.permute.xlu0 %2223
    %2225 = vrot.lane.b32.xlu0 %v880, 32
    %v2226 = vpop.permute.xlu0 %2225
    %2227 = vrot.lane.b32.xlu0 %v883, 32
    %v2228 = vpop.permute.xlu0 %2227
    %2229 = vrot.lane.b32.xlu0 %v885, 32
    %v2230 = vpop.permute.xlu0 %2229
    %2231 = vrot.lane.b32.xlu0 %v888, 32
    %v2232 = vpop.permute.xlu0 %2231
    %2233 = vrot.lane.b32.xlu0 %v890, 32
    %v2234 = vpop.permute.xlu0 %2233
    %2235 = vrot.lane.b32.xlu0 %v893, 32
    %v2236 = vpop.permute.xlu0 %2235
    %2237 = vrot.lane.b32.xlu0 %v895, 32
    %v2238 = vpop.permute.xlu0 %2237
    %2239 = vrot.lane.b32.xlu0 %v898, 32
    %v2240 = vpop.permute.xlu0 %2239
    %2241 = vrot.lane.b32.xlu0 %v900, 32
    %v2242 = vpop.permute.xlu0 %2241
    %2243 = vrot.lane.b32.xlu0 %v903, 32
    %v2244 = vpop.permute.xlu0 %2243
    %2245 = vrot.lane.b32.xlu0 %v905, 32
    %v2246 = vpop.permute.xlu0 %2245
    %2247 = vrot.lane.b32.xlu0 %v908, 32
    %v2248 = vpop.permute.xlu0 %2247
    %2249 = vrot.lane.b32.xlu0 %v910, 32
    %v2250 = vpop.permute.xlu0 %2249
    %2251 = vrot.lane.b32.xlu0 %v1585, 32
    %v2252 = vpop.permute.xlu0 %2251
    %2253 = vrot.lane.b32.xlu0 %v1587, 32
    %v2254 = vpop.permute.xlu0 %2253
    %2255 = vrot.lane.b32.xlu0 %v2187, 32
    %v2256 = vpop.permute.xlu0 %2255
    %2257 = vrot.lane.b32.xlu0 %v2189, 32
    %v2258 = vpop.permute.xlu0 %2257
    %2259 = vrot.lane.b32.xlu0 %v923, 32
    %v2260 = vpop.permute.xlu0 %2259
    %2261 = vrot.lane.b32.xlu0 %v925, 32
    %v2262 = vpop.permute.xlu0 %2261
    %2263 = vrot.lane.b32.xlu0 %v928, 32
    %v2264 = vpop.permute.xlu0 %2263
    %2265 = vrot.lane.b32.xlu0 %v930, 32
    %v2266 = vpop.permute.xlu0 %2265
    %2267 = vrot.lane.b32.xlu0 %v933, 32
    %v2268 = vpop.permute.xlu0 %2267
    %2269 = vrot.lane.b32.xlu0 %v935, 32
    %v2270 = vpop.permute.xlu0 %2269
    %2271 = vrot.lane.b32.xlu0 %v938, 32
    %v2272 = vpop.permute.xlu0 %2271
    %2273 = vrot.lane.b32.xlu0 %v940, 32
    %v2274 = vpop.permute.xlu0 %2273
    %2275 = vrot.lane.b32.xlu0 %v943, 32
    %v2276 = vpop.permute.xlu0 %2275
    %2277 = vrot.lane.b32.xlu0 %v945, 32
    %v2278 = vpop.permute.xlu0 %2277
    %2279 = vrot.lane.b32.xlu0 %v948, 32
    %v2280 = vpop.permute.xlu0 %2279
    %2281 = vrot.lane.b32.xlu0 %v950, 32
    %v2282 = vpop.permute.xlu0 %2281
    %2283 = vrot.lane.b32.xlu0 %v953, 32
    %v2284 = vpop.permute.xlu0 %2283
    %2285 = vrot.lane.b32.xlu0 %v955, 32
    %v2286 = vpop.permute.xlu0 %2285
    %2287 = vrot.lane.b32.xlu0 %v958, 32
    %v2288 = vpop.permute.xlu0 %2287
    %2289 = vrot.lane.b32.xlu0 %v960, 32
    %v2290 = vpop.permute.xlu0 %2289
    %2291 = vrot.lane.b32.xlu0 %v963, 32
    %v2292 = vpop.permute.xlu0 %2291
    %2293 = vrot.lane.b32.xlu0 %v965, 32
    %v2294 = vpop.permute.xlu0 %2293
    %2295 = vrot.lane.b32.xlu0 %v968, 32
    %v2296 = vpop.permute.xlu0 %2295
    %2297 = vrot.lane.b32.xlu0 %v970, 32
    %v2298 = vpop.permute.xlu0 %2297
    %2299 = vrot.lane.b32.xlu0 %v973, 32
    %v2300 = vpop.permute.xlu0 %2299
    %2301 = vrot.lane.b32.xlu0 %v975, 32
    %v2302 = vpop.permute.xlu0 %2301
    %2303 = vrot.lane.b32.xlu0 %v978, 32
    %v2304 = vpop.permute.xlu0 %2303
    %2305 = vrot.lane.b32.xlu0 %v980, 32
    %v2306 = vpop.permute.xlu0 %2305
    %2307 = vrot.lane.b32.xlu0 %v983, 32
    %v2308 = vpop.permute.xlu0 %2307
    %2309 = vrot.lane.b32.xlu0 %v985, 32
    %v2310 = vpop.permute.xlu0 %2309
    %2311 = vrot.lane.b32.xlu0 %v988, 32
    %v2312 = vpop.permute.xlu0 %2311
    %2313 = vrot.lane.b32.xlu0 %v990, 32
    %v2314 = vpop.permute.xlu0 %2313
    %2315 = vrot.lane.b32.xlu0 %v1590, 32
    %v2316 = vpop.permute.xlu0 %2315
    %2317 = vrot.lane.b32.xlu0 %v1592, 32
    %v2318 = vpop.permute.xlu0 %2317
    %2319 = vrot.lane.b32.xlu0 %v2192, 32
    %v2320 = vpop.permute.xlu0 %2319
    %2321 = vrot.lane.b32.xlu0 %v2194, 32
    %v2322 = vpop.permute.xlu0 %2321
    %v2387 = vsel %vm34, %v273, %v639
    %v2388 = vsel %vm34, %v274, %v641
    %v2389 = vsel %vm34, %v276, %v643
    %v2390 = vsel %vm34, %v277, %v645
    %v2391 = vsel %vm34, %v279, %v647
    %v2392 = vsel %vm34, %v280, %v649
    %v2393 = vsel %vm34, %v282, %v651
    %v2394 = vsel %vm34, %v283, %v653
    %v2395 = vsel %vm34, %v285, %v655
    %v2396 = vsel %vm34, %v286, %v657
    %v2397 = vsel %vm34, %v288, %v659
    %v2398 = vsel %vm34, %v289, %v661
    %v2399 = vsel %vm34, %v291, %v663
    %v2400 = vsel %vm34, %v292, %v665
    %v2401 = vsel %vm34, %v294, %v667
    %v2402 = vsel %vm34, %v295, %v669
    %v2403 = vsel %vm34, %v297, %v671
    %v2404 = vsel %vm34, %v298, %v673
    %v2405 = vsel %vm34, %v300, %v675
    %v2406 = vsel %vm34, %v301, %v677
    %v2407 = vsel %vm34, %v303, %v679
    %v2408 = vsel %vm34, %v304, %v681
    %v2409 = vsel %vm34, %v306, %v683
    %v2410 = vsel %vm34, %v307, %v685
    %v2411 = vsel %vm34, %v309, %v687
    %v2412 = vsel %vm34, %v310, %v689
    %v2413 = vsel %vm34, %v312, %v691
    %v2414 = vsel %vm34, %v313, %v693
    %v2415 = vsel %vm34, %v315, %v695
    %v2416 = vsel %vm34, %v316, %v697
    %v2417 = vsel %vm34, %v318, %v699
    %v2418 = vsel %vm34, %v319, %v701
    %v2419 = vsel %vm34, %v327, %v703
    %v2420 = vsel %vm34, %v328, %v705
    %v2421 = vsel %vm34, %v330, %v707
    %v2422 = vsel %vm34, %v331, %v709
    %v2423 = vsel %vm34, %v333, %v711
    %v2424 = vsel %vm34, %v334, %v713
    %v2425 = vsel %vm34, %v336, %v715
    %v2426 = vsel %vm34, %v337, %v717
    %v2427 = vsel %vm34, %v339, %v719
    %v2428 = vsel %vm34, %v340, %v721
    %v2429 = vsel %vm34, %v342, %v723
    %v2430 = vsel %vm34, %v343, %v725
    %v2431 = vsel %vm34, %v345, %v727
    %v2432 = vsel %vm34, %v346, %v729
    %v2433 = vsel %vm34, %v348, %v731
    %v2434 = vsel %vm34, %v349, %v733
    %v2435 = vsel %vm34, %v351, %v735
    %v2436 = vsel %vm34, %v352, %v737
    %v2437 = vsel %vm34, %v354, %v739
    %v2438 = vsel %vm34, %v355, %v741
    %v2439 = vsel %vm34, %v357, %v743
    %v2440 = vsel %vm34, %v358, %v745
    %v2441 = vsel %vm34, %v360, %v747
    %v2442 = vsel %vm34, %v361, %v749
    %v2443 = vsel %vm34, %v363, %v751
    %v2444 = vsel %vm34, %v364, %v753
    %v2445 = vsel %vm34, %v366, %v755
    %v2446 = vsel %vm34, %v367, %v757
    %v2447 = vsel %vm34, %v369, %v759
    %v2448 = vsel %vm34, %v370, %v761
    %v2449 = vsel %vm34, %v372, %v763
    %v2450 = vsel %vm34, %v373, %v765
    %vm2451 = vcmask 64512
    %v2452 = vsel %vm2451, %v2387, %v992
    %v2453 = vsel %vm2451, %v2388, %v994
    %v2454 = vsel %vm2451, %v2389, %v996
    %v2455 = vsel %vm2451, %v2390, %v998
    %v2456 = vsel %vm2451, %v2391, %v1000
    %v2457 = vsel %vm2451, %v2392, %v1002
    %v2458 = vsel %vm2451, %v2393, %v1004
    %v2459 = vsel %vm2451, %v2394, %v1006
    %v2460 = vsel %vm2451, %v2395, %v1008
    %v2461 = vsel %vm2451, %v2396, %v1010
    %v2462 = vsel %vm2451, %v2397, %v1012
    %v2463 = vsel %vm2451, %v2398, %v1014
    %v2464 = vsel %vm2451, %v2399, %v1016
    %v2465 = vsel %vm2451, %v2400, %v1018
    %v2466 = vsel %vm2451, %v2401, %v1020
    %v2467 = vsel %vm2451, %v2402, %v1022
    %v2468 = vsel %vm2451, %v2403, %v1024
    %v2469 = vsel %vm2451, %v2404, %v1026
    %v2470 = vsel %vm2451, %v2405, %v1028
    %v2471 = vsel %vm2451, %v2406, %v1030
    %v2472 = vsel %vm2451, %v2407, %v1032
    %v2473 = vsel %vm2451, %v2408, %v1034
    %v2474 = vsel %vm2451, %v2409, %v1036
    %v2475 = vsel %vm2451, %v2410, %v1038
    %v2476 = vsel %vm2451, %v2411, %v1040
    %v2477 = vsel %vm2451, %v2412, %v1042
    %v2478 = vsel %vm2451, %v2413, %v1044
    %v2479 = vsel %vm2451, %v2414, %v1046
    %v2480 = vsel %vm2451, %v2415, %v1048
    %v2481 = vsel %vm2451, %v2416, %v1050
    %v2482 = vsel %vm2451, %v2417, %v1052
    %v2483 = vsel %vm2451, %v2418, %v1054
    %v2484 = vsel %vm2451, %v2419, %v1056
    %v2485 = vsel %vm2451, %v2420, %v1058
    %v2486 = vsel %vm2451, %v2421, %v1060
    %v2487 = vsel %vm2451, %v2422, %v1062
    %v2488 = vsel %vm2451, %v2423, %v1064
    %v2489 = vsel %vm2451, %v2424, %v1066
    %v2490 = vsel %vm2451, %v2425, %v1068
    %v2491 = vsel %vm2451, %v2426, %v1070
    %v2492 = vsel %vm2451, %v2427, %v1072
    %v2493 = vsel %vm2451, %v2428, %v1074
    %v2494 = vsel %vm2451, %v2429, %v1076
    %v2495 = vsel %vm2451, %v2430, %v1078
    %v2496 = vsel %vm2451, %v2431, %v1080
    %v2497 = vsel %vm2451, %v2432, %v1082
    %v2498 = vsel %vm2451, %v2433, %v1084
    %v2499 = vsel %vm2451, %v2434, %v1086
    %v2500 = vsel %vm2451, %v2435, %v1088
    %v2501 = vsel %vm2451, %v2436, %v1090
    %v2502 = vsel %vm2451, %v2437, %v1092
    %v2503 = vsel %vm2451, %v2438, %v1094
    %v2504 = vsel %vm2451, %v2439, %v1096
    %v2505 = vsel %vm2451, %v2440, %v1098
    %v2506 = vsel %vm2451, %v2441, %v1100
    %v2507 = vsel %vm2451, %v2442, %v1102
    %v2508 = vsel %vm2451, %v2443, %v1104
    %v2509 = vsel %vm2451, %v2444, %v1106
    %v2510 = vsel %vm2451, %v2445, %v1108
    %v2511 = vsel %vm2451, %v2446, %v1110
    %v2512 = vsel %vm2451, %v2447, %v1112
    %v2513 = vsel %vm2451, %v2448, %v1114
    %v2514 = vsel %vm2451, %v2449, %v1116
    %v2515 = vsel %vm2451, %v2450, %v1118
    %vm2516 = vcmask 97280
    %v2517 = vsel %vm2516, %v2452, %v1188
    %v2518 = vsel %vm2516, %v2453, %v1190
    %v2519 = vsel %vm2516, %v2454, %v1192
    %v2520 = vsel %vm2516, %v2455, %v1194
    %v2521 = vsel %vm2516, %v2456, %v1196
    %v2522 = vsel %vm2516, %v2457, %v1198
    %v2523 = vsel %vm2516, %v2458, %v1200
    %v2524 = vsel %vm2516, %v2459, %v1202
    %v2525 = vsel %vm2516, %v2460, %v1204
    %v2526 = vsel %vm2516, %v2461, %v1206
    %v2527 = vsel %vm2516, %v2462, %v1208
    %v2528 = vsel %vm2516, %v2463, %v1210
    %v2529 = vsel %vm2516, %v2464, %v1212
    %v2530 = vsel %vm2516, %v2465, %v1214
    %v2531 = vsel %vm2516, %v2466, %v1216
    %v2532 = vsel %vm2516, %v2467, %v1218
    %v2533 = vsel %vm2516, %v2468, %v1220
    %v2534 = vsel %vm2516, %v2469, %v1222
    %v2535 = vsel %vm2516, %v2470, %v1224
    %v2536 = vsel %vm2516, %v2471, %v1226
    %v2537 = vsel %vm2516, %v2472, %v1228
    %v2538 = vsel %vm2516, %v2473, %v1230
    %v2539 = vsel %vm2516, %v2474, %v1232
    %v2540 = vsel %vm2516, %v2475, %v1234
    %v2541 = vsel %vm2516, %v2476, %v1236
    %v2542 = vsel %vm2516, %v2477, %v1238
    %v2543 = vsel %vm2516, %v2478, %v1240
    %v2544 = vsel %vm2516, %v2479, %v1242
    %v2545 = vsel %vm2516, %v2480, %v1244
    %v2546 = vsel %vm2516, %v2481, %v1246
    %v2547 = vsel %vm2516, %v2482, %v1248
    %v2548 = vsel %vm2516, %v2483, %v1250
    %v2549 = vsel %vm2516, %v2484, %v1252
    %v2550 = vsel %vm2516, %v2485, %v1254
    %v2551 = vsel %vm2516, %v2486, %v1256
    %v2552 = vsel %vm2516, %v2487, %v1258
    %v2553 = vsel %vm2516, %v2488, %v1260
    %v2554 = vsel %vm2516, %v2489, %v1262
    %v2555 = vsel %vm2516, %v2490, %v1264
    %v2556 = vsel %vm2516, %v2491, %v1266
    %v2557 = vsel %vm2516, %v2492, %v1268
    %v2558 = vsel %vm2516, %v2493, %v1270
    %v2559 = vsel %vm2516, %v2494, %v1272
    %v2560 = vsel %vm2516, %v2495, %v1274
    %v2561 = vsel %vm2516, %v2496, %v1276
    %v2562 = vsel %vm2516, %v2497, %v1278
    %v2563 = vsel %vm2516, %v2498, %v1280
    %v2564 = vsel %vm2516, %v2499, %v1282
    %v2565 = vsel %vm2516, %v2500, %v1284
    %v2566 = vsel %vm2516, %v2501, %v1286
    %v2567 = vsel %vm2516, %v2502, %v1288
    %v2568 = vsel %vm2516, %v2503, %v1290
    %v2569 = vsel %vm2516, %v2504, %v1292
    %v2570 = vsel %vm2516, %v2505, %v1294
    %v2571 = vsel %vm2516, %v2506, %v1296
    %v2572 = vsel %vm2516, %v2507, %v1298
    %v2573 = vsel %vm2516, %v2508, %v1300
    %v2574 = vsel %vm2516, %v2509, %v1302
    %v2575 = vsel %vm2516, %v2510, %v1304
    %v2576 = vsel %vm2516, %v2511, %v1306
    %v2577 = vsel %vm2516, %v2512, %v1308
    %v2578 = vsel %vm2516, %v2513, %v1310
    %v2579 = vsel %vm2516, %v2514, %v1312
    %v2580 = vsel %vm2516, %v2515, %v1314
    %vm2581 = vcmask 130048
    %v2582 = vsel %vm2581, %v2517, %v1392
    %v2583 = vsel %vm2581, %v2518, %v1394
    %v2584 = vsel %vm2581, %v2519, %v1396
    %v2585 = vsel %vm2581, %v2520, %v1398
    %v2586 = vsel %vm2581, %v2521, %v1400
    %v2587 = vsel %vm2581, %v2522, %v1402
    %v2588 = vsel %vm2581, %v2523, %v1404
    %v2589 = vsel %vm2581, %v2524, %v1406
    %v2590 = vsel %vm2581, %v2525, %v1408
    %v2591 = vsel %vm2581, %v2526, %v1410
    %v2592 = vsel %vm2581, %v2527, %v1412
    %v2593 = vsel %vm2581, %v2528, %v1414
    %v2594 = vsel %vm2581, %v2529, %v1416
    %v2595 = vsel %vm2581, %v2530, %v1418
    %v2596 = vsel %vm2581, %v2531, %v1420
    %v2597 = vsel %vm2581, %v2532, %v1422
    %v2598 = vsel %vm2581, %v2533, %v1424
    %v2599 = vsel %vm2581, %v2534, %v1426
    %v2600 = vsel %vm2581, %v2535, %v1428
    %v2601 = vsel %vm2581, %v2536, %v1430
    %v2602 = vsel %vm2581, %v2537, %v1432
    %v2603 = vsel %vm2581, %v2538, %v1434
    %v2604 = vsel %vm2581, %v2539, %v1436
    %v2605 = vsel %vm2581, %v2540, %v1438
    %v2606 = vsel %vm2581, %v2541, %v1440
    %v2607 = vsel %vm2581, %v2542, %v1442
    %v2608 = vsel %vm2581, %v2543, %v1444
    %v2609 = vsel %vm2581, %v2544, %v1446
    %v2610 = vsel %vm2581, %v2545, %v1448
    %v2611 = vsel %vm2581, %v2546, %v1450
    %v2612 = vsel %vm2581, %v2547, %v1452
    %v2613 = vsel %vm2581, %v2548, %v1454
    %v2614 = vsel %vm2581, %v2549, %v1456
    %v2615 = vsel %vm2581, %v2550, %v1458
    %v2616 = vsel %vm2581, %v2551, %v1460
    %v2617 = vsel %vm2581, %v2552, %v1462
    %v2618 = vsel %vm2581, %v2553, %v1464
    %v2619 = vsel %vm2581, %v2554, %v1466
    %v2620 = vsel %vm2581, %v2555, %v1468
    %v2621 = vsel %vm2581, %v2556, %v1470
    %v2622 = vsel %vm2581, %v2557, %v1472
    %v2623 = vsel %vm2581, %v2558, %v1474
    %v2624 = vsel %vm2581, %v2559, %v1476
    %v2625 = vsel %vm2581, %v2560, %v1478
    %v2626 = vsel %vm2581, %v2561, %v1480
    %v2627 = vsel %vm2581, %v2562, %v1482
    %v2628 = vsel %vm2581, %v2563, %v1484
    %v2629 = vsel %vm2581, %v2564, %v1486
    %v2630 = vsel %vm2581, %v2565, %v1488
    %v2631 = vsel %vm2581, %v2566, %v1490
    %v2632 = vsel %vm2581, %v2567, %v1492
    %v2633 = vsel %vm2581, %v2568, %v1494
    %v2634 = vsel %vm2581, %v2569, %v1496
    %v2635 = vsel %vm2581, %v2570, %v1498
    %v2636 = vsel %vm2581, %v2571, %v1500
    %v2637 = vsel %vm2581, %v2572, %v1502
    %v2638 = vsel %vm2581, %v2573, %v1504
    %v2639 = vsel %vm2581, %v2574, %v1506
    %v2640 = vsel %vm2581, %v2575, %v1508
    %v2641 = vsel %vm2581, %v2576, %v1510
    %v2642 = vsel %vm2581, %v2577, %v1512
    %v2643 = vsel %vm2581, %v2578, %v1514
    %v2644 = vsel %vm2581, %v2579, %v1516
    %v2645 = vsel %vm2581, %v2580, %v1518
    %vm2646 = vcmask 162816
    %v2647 = vsel %vm2646, %v2582, %v1594
    %v2648 = vsel %vm2646, %v2583, %v1596
    %v2649 = vsel %vm2646, %v2584, %v1598
    %v2650 = vsel %vm2646, %v2585, %v1600
    %v2651 = vsel %vm2646, %v2586, %v1602
    %v2652 = vsel %vm2646, %v2587, %v1604
    %v2653 = vsel %vm2646, %v2588, %v1606
    %v2654 = vsel %vm2646, %v2589, %v1608
    %v2655 = vsel %vm2646, %v2590, %v1610
    %v2656 = vsel %vm2646, %v2591, %v1612
    %v2657 = vsel %vm2646, %v2592, %v1614
    %v2658 = vsel %vm2646, %v2593, %v1616
    %v2659 = vsel %vm2646, %v2594, %v1618
    %v2660 = vsel %vm2646, %v2595, %v1620
    %v2661 = vsel %vm2646, %v2596, %v1622
    %v2662 = vsel %vm2646, %v2597, %v1624
    %v2663 = vsel %vm2646, %v2598, %v1626
    %v2664 = vsel %vm2646, %v2599, %v1628
    %v2665 = vsel %vm2646, %v2600, %v1630
    %v2666 = vsel %vm2646, %v2601, %v1632
    %v2667 = vsel %vm2646, %v2602, %v1634
    %v2668 = vsel %vm2646, %v2603, %v1636
    %v2669 = vsel %vm2646, %v2604, %v1638
    %v2670 = vsel %vm2646, %v2605, %v1640
    %v2671 = vsel %vm2646, %v2606, %v1642
    %v2672 = vsel %vm2646, %v2607, %v1644
    %v2673 = vsel %vm2646, %v2608, %v1646
    %v2674 = vsel %vm2646, %v2609, %v1648
    %v2675 = vsel %vm2646, %v2610, %v1650
    %v2676 = vsel %vm2646, %v2611, %v1652
    %v2677 = vsel %vm2646, %v2612, %v1654
    %v2678 = vsel %vm2646, %v2613, %v1656
    %v2679 = vsel %vm2646, %v2614, %v1658
    %v2680 = vsel %vm2646, %v2615, %v1660
    %v2681 = vsel %vm2646, %v2616, %v1662
    %v2682 = vsel %vm2646, %v2617, %v1664
    %v2683 = vsel %vm2646, %v2618, %v1666
    %v2684 = vsel %vm2646, %v2619, %v1668
    %v2685 = vsel %vm2646, %v2620, %v1670
    %v2686 = vsel %vm2646, %v2621, %v1672
    %v2687 = vsel %vm2646, %v2622, %v1674
    %v2688 = vsel %vm2646, %v2623, %v1676
    %v2689 = vsel %vm2646, %v2624, %v1678
    %v2690 = vsel %vm2646, %v2625, %v1680
    %v2691 = vsel %vm2646, %v2626, %v1682
    %v2692 = vsel %vm2646, %v2627, %v1684
    %v2693 = vsel %vm2646, %v2628, %v1686
    %v2694 = vsel %vm2646, %v2629, %v1688
    %v2695 = vsel %vm2646, %v2630, %v1690
    %v2696 = vsel %vm2646, %v2631, %v1692
    %v2697 = vsel %vm2646, %v2632, %v1694
    %v2698 = vsel %vm2646, %v2633, %v1696
    %v2699 = vsel %vm2646, %v2634, %v1698
    %v2700 = vsel %vm2646, %v2635, %v1700
    %v2701 = vsel %vm2646, %v2636, %v1702
    %v2702 = vsel %vm2646, %v2637, %v1704
    %v2703 = vsel %vm2646, %v2638, %v1706
    %v2704 = vsel %vm2646, %v2639, %v1708
    %v2705 = vsel %vm2646, %v2640, %v1710
    %v2706 = vsel %vm2646, %v2641, %v1712
    %v2707 = vsel %vm2646, %v2642, %v1714
    %v2708 = vsel %vm2646, %v2643, %v1716
    %v2709 = vsel %vm2646, %v2644, %v1718
    %v2710 = vsel %vm2646, %v2645, %v1720
    %vm2711 = vcmask 195584
    %v2712 = vsel %vm2711, %v2647, %v1790
    %v2713 = vsel %vm2711, %v2648, %v1792
    %v2714 = vsel %vm2711, %v2649, %v1794
    %v2715 = vsel %vm2711, %v2650, %v1796
    %v2716 = vsel %vm2711, %v2651, %v1798
    %v2717 = vsel %vm2711, %v2652, %v1800
    %v2718 = vsel %vm2711, %v2653, %v1802
    %v2719 = vsel %vm2711, %v2654, %v1804
    %v2720 = vsel %vm2711, %v2655, %v1806
    %v2721 = vsel %vm2711, %v2656, %v1808
    %v2722 = vsel %vm2711, %v2657, %v1810
    %v2723 = vsel %vm2711, %v2658, %v1812
    %v2724 = vsel %vm2711, %v2659, %v1814
    %v2725 = vsel %vm2711, %v2660, %v1816
    %v2726 = vsel %vm2711, %v2661, %v1818
    %v2727 = vsel %vm2711, %v2662, %v1820
    %v2728 = vsel %vm2711, %v2663, %v1822
    %v2729 = vsel %vm2711, %v2664, %v1824
    %v2730 = vsel %vm2711, %v2665, %v1826
    %v2731 = vsel %vm2711, %v2666, %v1828
    %v2732 = vsel %vm2711, %v2667, %v1830
    %v2733 = vsel %vm2711, %v2668, %v1832
    %v2734 = vsel %vm2711, %v2669, %v1834
    %v2735 = vsel %vm2711, %v2670, %v1836
    %v2736 = vsel %vm2711, %v2671, %v1838
    %v2737 = vsel %vm2711, %v2672, %v1840
    %v2738 = vsel %vm2711, %v2673, %v1842
    %v2739 = vsel %vm2711, %v2674, %v1844
    %v2740 = vsel %vm2711, %v2675, %v1846
    %v2741 = vsel %vm2711, %v2676, %v1848
    %v2742 = vsel %vm2711, %v2677, %v1850
    %v2743 = vsel %vm2711, %v2678, %v1852
    %v2744 = vsel %vm2711, %v2679, %v1854
    %v2745 = vsel %vm2711, %v2680, %v1856
    %v2746 = vsel %vm2711, %v2681, %v1858
    %v2747 = vsel %vm2711, %v2682, %v1860
    %v2748 = vsel %vm2711, %v2683, %v1862
    %v2749 = vsel %vm2711, %v2684, %v1864
    %v2750 = vsel %vm2711, %v2685, %v1866
    %v2751 = vsel %vm2711, %v2686, %v1868
    %v2752 = vsel %vm2711, %v2687, %v1870
    %v2753 = vsel %vm2711, %v2688, %v1872
    %v2754 = vsel %vm2711, %v2689, %v1874
    %v2755 = vsel %vm2711, %v2690, %v1876
    %v2756 = vsel %vm2711, %v2691, %v1878
    %v2757 = vsel %vm2711, %v2692, %v1880
    %v2758 = vsel %vm2711, %v2693, %v1882
    %v2759 = vsel %vm2711, %v2694, %v1884
    %v2760 = vsel %vm2711, %v2695, %v1886
    %v2761 = vsel %vm2711, %v2696, %v1888
    %v2762 = vsel %vm2711, %v2697, %v1890
    %v2763 = vsel %vm2711, %v2698, %v1892
    %v2764 = vsel %vm2711, %v2699, %v1894
    %v2765 = vsel %vm2711, %v2700, %v1896
    %v2766 = vsel %vm2711, %v2701, %v1898
    %v2767 = vsel %vm2711, %v2702, %v1900
    %v2768 = vsel %vm2711, %v2703, %v1902
    %v2769 = vsel %vm2711, %v2704, %v1904
    %v2770 = vsel %vm2711, %v2705, %v1906
    %v2771 = vsel %vm2711, %v2706, %v1908
    %v2772 = vsel %vm2711, %v2707, %v1910
    %v2773 = vsel %vm2711, %v2708, %v1912
    %v2774 = vsel %vm2711, %v2709, %v1914
    %v2775 = vsel %vm2711, %v2710, %v1916
    %vm2776 = vcmask 228352
    %v2777 = vsel %vm2776, %v2712, %v1994
    %v2778 = vsel %vm2776, %v2713, %v1996
    %v2779 = vsel %vm2776, %v2714, %v1998
    %v2780 = vsel %vm2776, %v2715, %v2000
    %v2781 = vsel %vm2776, %v2716, %v2002
    %v2782 = vsel %vm2776, %v2717, %v2004
    %v2783 = vsel %vm2776, %v2718, %v2006
    %v2784 = vsel %vm2776, %v2719, %v2008
    %v2785 = vsel %vm2776, %v2720, %v2010
    %v2786 = vsel %vm2776, %v2721, %v2012
    %v2787 = vsel %vm2776, %v2722, %v2014
    %v2788 = vsel %vm2776, %v2723, %v2016
    %v2789 = vsel %vm2776, %v2724, %v2018
    %v2790 = vsel %vm2776, %v2725, %v2020
    %v2791 = vsel %vm2776, %v2726, %v2022
    %v2792 = vsel %vm2776, %v2727, %v2024
    %v2793 = vsel %vm2776, %v2728, %v2026
    %v2794 = vsel %vm2776, %v2729, %v2028
    %v2795 = vsel %vm2776, %v2730, %v2030
    %v2796 = vsel %vm2776, %v2731, %v2032
    %v2797 = vsel %vm2776, %v2732, %v2034
    %v2798 = vsel %vm2776, %v2733, %v2036
    %v2799 = vsel %vm2776, %v2734, %v2038
    %v2800 = vsel %vm2776, %v2735, %v2040
    %v2801 = vsel %vm2776, %v2736, %v2042
    %v2802 = vsel %vm2776, %v2737, %v2044
    %v2803 = vsel %vm2776, %v2738, %v2046
    %v2804 = vsel %vm2776, %v2739, %v2048
    %v2805 = vsel %vm2776, %v2740, %v2050
    %v2806 = vsel %vm2776, %v2741, %v2052
    %v2807 = vsel %vm2776, %v2742, %v2054
    %v2808 = vsel %vm2776, %v2743, %v2056
    %v2809 = vsel %vm2776, %v2744, %v2058
    %v2810 = vsel %vm2776, %v2745, %v2060
    %v2811 = vsel %vm2776, %v2746, %v2062
    %v2812 = vsel %vm2776, %v2747, %v2064
    %v2813 = vsel %vm2776, %v2748, %v2066
    %v2814 = vsel %vm2776, %v2749, %v2068
    %v2815 = vsel %vm2776, %v2750, %v2070
    %v2816 = vsel %vm2776, %v2751, %v2072
    %v2817 = vsel %vm2776, %v2752, %v2074
    %v2818 = vsel %vm2776, %v2753, %v2076
    %v2819 = vsel %vm2776, %v2754, %v2078
    %v2820 = vsel %vm2776, %v2755, %v2080
    %v2821 = vsel %vm2776, %v2756, %v2082
    %v2822 = vsel %vm2776, %v2757, %v2084
    %v2823 = vsel %vm2776, %v2758, %v2086
    %v2824 = vsel %vm2776, %v2759, %v2088
    %v2825 = vsel %vm2776, %v2760, %v2090
    %v2826 = vsel %vm2776, %v2761, %v2092
    %v2827 = vsel %vm2776, %v2762, %v2094
    %v2828 = vsel %vm2776, %v2763, %v2096
    %v2829 = vsel %vm2776, %v2764, %v2098
    %v2830 = vsel %vm2776, %v2765, %v2100
    %v2831 = vsel %vm2776, %v2766, %v2102
    %v2832 = vsel %vm2776, %v2767, %v2104
    %v2833 = vsel %vm2776, %v2768, %v2106
    %v2834 = vsel %vm2776, %v2769, %v2108
    %v2835 = vsel %vm2776, %v2770, %v2110
    %v2836 = vsel %vm2776, %v2771, %v2112
    %v2837 = vsel %vm2776, %v2772, %v2114
    %v2838 = vsel %vm2776, %v2773, %v2116
    %v2839 = vsel %vm2776, %v2774, %v2118
    %v2840 = vsel %vm2776, %v2775, %v2120
    %vm2841 = vcmask 261120
    %v2842 = vsel %vm2841, %v2777, %v2196
    %v2843 = vsel %vm2841, %v2778, %v2198
    %v2844 = vsel %vm2841, %v2779, %v2200
    %v2845 = vsel %vm2841, %v2780, %v2202
    %v2846 = vsel %vm2841, %v2781, %v2204
    %v2847 = vsel %vm2841, %v2782, %v2206
    %v2848 = vsel %vm2841, %v2783, %v2208
    %v2849 = vsel %vm2841, %v2784, %v2210
    %v2850 = vsel %vm2841, %v2785, %v2212
    %v2851 = vsel %vm2841, %v2786, %v2214
    %v2852 = vsel %vm2841, %v2787, %v2216
    %v2853 = vsel %vm2841, %v2788, %v2218
    %v2854 = vsel %vm2841, %v2789, %v2220
    %v2855 = vsel %vm2841, %v2790, %v2222
    %v2856 = vsel %vm2841, %v2791, %v2224
    %v2857 = vsel %vm2841, %v2792, %v2226
    %v2858 = vsel %vm2841, %v2793, %v2228
    %v2859 = vsel %vm2841, %v2794, %v2230
    %v2860 = vsel %vm2841, %v2795, %v2232
    %v2861 = vsel %vm2841, %v2796, %v2234
    %v2862 = vsel %vm2841, %v2797, %v2236
    %v2863 = vsel %vm2841, %v2798, %v2238
    %v2864 = vsel %vm2841, %v2799, %v2240
    %v2865 = vsel %vm2841, %v2800, %v2242
    %v2866 = vsel %vm2841, %v2801, %v2244
    %v2867 = vsel %vm2841, %v2802, %v2246
    %v2868 = vsel %vm2841, %v2803, %v2248
    %v2869 = vsel %vm2841, %v2804, %v2250
    %v2870 = vsel %vm2841, %v2805, %v2252
    %v2871 = vsel %vm2841, %v2806, %v2254
    %v2872 = vsel %vm2841, %v2807, %v2256
    %v2873 = vsel %vm2841, %v2808, %v2258
    %v2874 = vsel %vm2841, %v2809, %v2260
    %v2875 = vsel %vm2841, %v2810, %v2262
    %v2876 = vsel %vm2841, %v2811, %v2264
    %v2877 = vsel %vm2841, %v2812, %v2266
    %v2878 = vsel %vm2841, %v2813, %v2268
    %v2879 = vsel %vm2841, %v2814, %v2270
    %v2880 = vsel %vm2841, %v2815, %v2272
    %v2881 = vsel %vm2841, %v2816, %v2274
    %v2882 = vsel %vm2841, %v2817, %v2276
    %v2883 = vsel %vm2841, %v2818, %v2278
    %v2884 = vsel %vm2841, %v2819, %v2280
    %v2885 = vsel %vm2841, %v2820, %v2282
    %v2886 = vsel %vm2841, %v2821, %v2284
    %v2887 = vsel %vm2841, %v2822, %v2286
    %v2888 = vsel %vm2841, %v2823, %v2288
    %v2889 = vsel %vm2841, %v2824, %v2290
    %v2890 = vsel %vm2841, %v2825, %v2292
    %v2891 = vsel %vm2841, %v2826, %v2294
    %v2892 = vsel %vm2841, %v2827, %v2296
    %v2893 = vsel %vm2841, %v2828, %v2298
    %v2894 = vsel %vm2841, %v2829, %v2300
    %v2895 = vsel %vm2841, %v2830, %v2302
    %v2896 = vsel %vm2841, %v2831, %v2304
    %v2897 = vsel %vm2841, %v2832, %v2306
    %v2898 = vsel %vm2841, %v2833, %v2308
    %v2899 = vsel %vm2841, %v2834, %v2310
    %v2900 = vsel %vm2841, %v2835, %v2312
    %v2901 = vsel %vm2841, %v2836, %v2314
    %v2902 = vsel %vm2841, %v2837, %v2316
    %v2903 = vsel %vm2841, %v2838, %v2318
    %v2904 = vsel %vm2841, %v2839, %v2320
    %v2905 = vsel %vm2841, %v2840, %v2322
    %v2906 = vpack.c.bf16 %v2843, %v2842
    %v2907 = vpack.c.bf16 %v2845, %v2844
    %v2908 = vpack.c.bf16 %v2847, %v2846
    %v2909 = vpack.c.bf16 %v2849, %v2848
    %v2910 = vpack.c.bf16 %v2851, %v2850
    %v2911 = vpack.c.bf16 %v2853, %v2852
    %v2912 = vpack.c.bf16 %v2855, %v2854
    %v2913 = vpack.c.bf16 %v2857, %v2856
    %v2914 = vpack.c.bf16 %v2859, %v2858
    %v2915 = vpack.c.bf16 %v2861, %v2860
    %v2916 = vpack.c.bf16 %v2863, %v2862
    %v2917 = vpack.c.bf16 %v2865, %v2864
    %v2918 = vpack.c.bf16 %v2867, %v2866
    %v2919 = vpack.c.bf16 %v2869, %v2868
    %v2920 = vpack.c.bf16 %v2871, %v2870
    %v2921 = vpack.c.bf16 %v2873, %v2872
    %v2922 = vpack.c.bf16 %v2875, %v2874
    %v2923 = vpack.c.bf16 %v2877, %v2876
    %v2924 = vpack.c.bf16 %v2879, %v2878
    %v2925 = vpack.c.bf16 %v2881, %v2880
    %v2926 = vpack.c.bf16 %v2883, %v2882
    %v2927 = vpack.c.bf16 %v2885, %v2884
    %v2928 = vpack.c.bf16 %v2887, %v2886
    %v2929 = vpack.c.bf16 %v2889, %v2888
    %v2930 = vpack.c.bf16 %v2891, %v2890
    %v2931 = vpack.c.bf16 %v2893, %v2892
    %v2932 = vpack.c.bf16 %v2895, %v2894
    %v2933 = vpack.c.bf16 %v2897, %v2896
    %v2934 = vpack.c.bf16 %v2899, %v2898
    %v2935 = vpack.c.bf16 %v2901, %v2900
    %v2936 = vpack.c.bf16 %v2903, %v2902
    %v2937 = vpack.c.bf16 %v2905, %v2904
    %v2938 = vld [vmem:[%s1] sm:$0xf]
    %v2939 = vld [vmem:[%s1 + $0x4] sm:$0xf]
    %v2940 = vld [vmem:[%s1 + $0x8] sm:$0xf]
    %v2941 = vld [vmem:[%s1 + $0xc] sm:$0xf]
    %v2942 = vld [vmem:[%s1 + $0x10] sm:$0x3]
    %v2948 = vunpack.c.l.b16 %v2938
    %v2949 = vunpack.c.l.b16 %v2939
    %v2950 = vunpack.c.l.b16 %v2940
    %v2951 = vunpack.c.l.b16 %v2941
    %v2952 = vunpack.c.l.b16 %v2942
    %v2953 = vpack.c.b16 %v2949, %v2948
    %v2954 = vpack.c.b16 %v2951, %v2950
    %v2955 = vpack.c.b16 %v2952, %v2952
    %vm2958 = vcmask 293888
    %v2960 = vsel %vm2958, %v2906, 0
    %v2963 = vsel %vm2958, %v2907, 0
    %v2966 = vsel %vm2958, %v2908, 0
    %v2969 = vsel %vm2958, %v2909, 0
    %v2972 = vsel %vm2958, %v2910, 0
    %v2975 = vsel %vm2958, %v2911, 0
    %v2978 = vsel %vm2958, %v2912, 0
    %v2981 = vsel %vm2958, %v2913, 0
    %v2984 = vsel %vm2958, %v2914, 0
    %v2987 = vsel %vm2958, %v2915, 0
    %v2990 = vsel %vm2958, %v2916, 0
    %v2993 = vsel %vm2958, %v2917, 0
    %v2996 = vsel %vm2958, %v2918, 0
    %v2999 = vsel %vm2958, %v2919, 0
    %v3002 = vsel %vm2958, %v2920, 0
    %v3005 = vsel %vm2958, %v2921, 0
    %v3008 = vsel %vm2958, %v2922, 0
    %v3011 = vsel %vm2958, %v2923, 0
    %v3014 = vsel %vm2958, %v2924, 0
    %v3017 = vsel %vm2958, %v2925, 0
    %v3020 = vsel %vm2958, %v2926, 0
    %v3023 = vsel %vm2958, %v2927, 0
    %v3026 = vsel %vm2958, %v2928, 0
    %v3029 = vsel %vm2958, %v2929, 0
    %v3032 = vsel %vm2958, %v2930, 0
    %v3035 = vsel %vm2958, %v2931, 0
    %v3038 = vsel %vm2958, %v2932, 0
    %v3041 = vsel %vm2958, %v2933, 0
    %v3044 = vsel %vm2958, %v2934, 0
    %v3047 = vsel %vm2958, %v2935, 0
    %v3050 = vsel %vm2958, %v2936, 0
    %v3053 = vsel %vm2958, %v2937, 0
    %vm3055 = vcmask 1041408
    %v3057 = vsel %vm3055, %v2955, 0
    %3059 = vmatpush.bf16.msra.mxu0 0
    %3060 = vmatpush.bf16.msra.mxu0 0
    %3061 = vmatpush.bf16.msra.mxu0 0
    %3062 = vmatpush.bf16.msra.mxu0 0
    %3063 = vmatpush.bf16.msra.mxu0 0
    %3064 = vmatpush.bf16.msra.mxu0 %v3057
    %3065 = vmatpush.bf16.msra.mxu0 %v2954
    %3066 = vmatpush.bf16.msra.mxu0 %v2953
    %3067 = vmatmul.bf16.gmra.mxu0 %v2960
    %v3068 = vpop.f32.mrf.mxu0
    %v3069 = vadd.f32 0.0, %v3068
    %v3070 = vpop.f32.mrf.mxu0
    %v3071 = vadd.f32 0.0, %v3070
    %3072 = vmatmul.bf16.gmra.mxu0 %v2963
    %v3073 = vpop.f32.mrf.mxu0
    %v3074 = vadd.f32 0.0, %v3073
    %v3075 = vpop.f32.mrf.mxu0
    %v3076 = vadd.f32 0.0, %v3075
    %3077 = vmatmul.bf16.gmra.mxu0 %v2966
    %v3078 = vpop.f32.mrf.mxu0
    %v3079 = vadd.f32 0.0, %v3078
    %v3080 = vpop.f32.mrf.mxu0
    %v3081 = vadd.f32 0.0, %v3080
    %3082 = vmatmul.bf16.gmra.mxu0 %v2969
    %v3083 = vpop.f32.mrf.mxu0
    %v3084 = vadd.f32 0.0, %v3083
    %v3085 = vpop.f32.mrf.mxu0
    %v3086 = vadd.f32 0.0, %v3085
    %3087 = vmatmul.bf16.gmra.mxu0 %v2972
    %v3088 = vpop.f32.mrf.mxu0
    %v3089 = vadd.f32 0.0, %v3088
    %v3090 = vpop.f32.mrf.mxu0
    %v3091 = vadd.f32 0.0, %v3090
    %3092 = vmatmul.bf16.gmra.mxu0 %v2975
    %v3093 = vpop.f32.mrf.mxu0
    %v3094 = vadd.f32 0.0, %v3093
    %v3095 = vpop.f32.mrf.mxu0
    %v3096 = vadd.f32 0.0, %v3095
    %3097 = vmatmul.bf16.gmra.mxu0 %v2978
    %v3098 = vpop.f32.mrf.mxu0
    %v3099 = vadd.f32 0.0, %v3098
    %v3100 = vpop.f32.mrf.mxu0
    %v3101 = vadd.f32 0.0, %v3100
    %3102 = vmatmul.bf16.gmra.mxu0 %v2981
    %v3103 = vpop.f32.mrf.mxu0
    %v3104 = vadd.f32 0.0, %v3103
    %v3105 = vpop.f32.mrf.mxu0
    %v3106 = vadd.f32 0.0, %v3105
    %3107 = vmatmul.bf16.gmra.mxu0 %v2984
    %v3108 = vpop.f32.mrf.mxu0
    %v3109 = vadd.f32 0.0, %v3108
    %v3110 = vpop.f32.mrf.mxu0
    %v3111 = vadd.f32 0.0, %v3110
    %3112 = vmatmul.bf16.gmra.mxu0 %v2987
    %v3113 = vpop.f32.mrf.mxu0
    %v3114 = vadd.f32 0.0, %v3113
    %v3115 = vpop.f32.mrf.mxu0
    %v3116 = vadd.f32 0.0, %v3115
    %3117 = vmatmul.bf16.gmra.mxu0 %v2990
    %v3118 = vpop.f32.mrf.mxu0
    %v3119 = vadd.f32 0.0, %v3118
    %v3120 = vpop.f32.mrf.mxu0
    %v3121 = vadd.f32 0.0, %v3120
    %3122 = vmatmul.bf16.gmra.mxu0 %v2993
    %v3123 = vpop.f32.mrf.mxu0
    %v3124 = vadd.f32 0.0, %v3123
    %v3125 = vpop.f32.mrf.mxu0
    %v3126 = vadd.f32 0.0, %v3125
    %3127 = vmatmul.bf16.gmra.mxu0 %v2996
    %v3128 = vpop.f32.mrf.mxu0
    %v3129 = vadd.f32 0.0, %v3128
    %v3130 = vpop.f32.mrf.mxu0
    %v3131 = vadd.f32 0.0, %v3130
    %3132 = vmatmul.bf16.gmra.mxu0 %v2999
    %v3133 = vpop.f32.mrf.mxu0
    %v3134 = vadd.f32 0.0, %v3133
    %v3135 = vpop.f32.mrf.mxu0
    %v3136 = vadd.f32 0.0, %v3135
    %3137 = vmatmul.bf16.gmra.mxu0 %v3002
    %v3138 = vpop.f32.mrf.mxu0
    %v3139 = vadd.f32 0.0, %v3138
    %v3140 = vpop.f32.mrf.mxu0
    %v3141 = vadd.f32 0.0, %v3140
    %3142 = vmatmul.bf16.gmra.mxu0 %v3005
    %v3143 = vpop.f32.mrf.mxu0
    %v3144 = vadd.f32 0.0, %v3143
    %v3145 = vpop.f32.mrf.mxu0
    %v3146 = vadd.f32 0.0, %v3145
    %3147 = vmatmul.bf16.gmra.mxu0 %v3008
    %v3148 = vpop.f32.mrf.mxu0
    %v3149 = vadd.f32 0.0, %v3148
    %v3150 = vpop.f32.mrf.mxu0
    %v3151 = vadd.f32 0.0, %v3150
    %3152 = vmatmul.bf16.gmra.mxu0 %v3011
    %v3153 = vpop.f32.mrf.mxu0
    %v3154 = vadd.f32 0.0, %v3153
    %v3155 = vpop.f32.mrf.mxu0
    %v3156 = vadd.f32 0.0, %v3155
    %3157 = vmatmul.bf16.gmra.mxu0 %v3014
    %v3158 = vpop.f32.mrf.mxu0
    %v3159 = vadd.f32 0.0, %v3158
    %v3160 = vpop.f32.mrf.mxu0
    %v3161 = vadd.f32 0.0, %v3160
    %3162 = vmatmul.bf16.gmra.mxu0 %v3017
    %v3163 = vpop.f32.mrf.mxu0
    %v3164 = vadd.f32 0.0, %v3163
    %v3165 = vpop.f32.mrf.mxu0
    %v3166 = vadd.f32 0.0, %v3165
    %3167 = vmatmul.bf16.gmra.mxu0 %v3020
    %v3168 = vpop.f32.mrf.mxu0
    %v3169 = vadd.f32 0.0, %v3168
    %v3170 = vpop.f32.mrf.mxu0
    %v3171 = vadd.f32 0.0, %v3170
    %3172 = vmatmul.bf16.gmra.mxu0 %v3023
    %v3173 = vpop.f32.mrf.mxu0
    %v3174 = vadd.f32 0.0, %v3173
    %v3175 = vpop.f32.mrf.mxu0
    %v3176 = vadd.f32 0.0, %v3175
    %3177 = vmatmul.bf16.gmra.mxu0 %v3026
    %v3178 = vpop.f32.mrf.mxu0
    %v3179 = vadd.f32 0.0, %v3178
    %v3180 = vpop.f32.mrf.mxu0
    %v3181 = vadd.f32 0.0, %v3180
    %3182 = vmatmul.bf16.gmra.mxu0 %v3029
    %v3183 = vpop.f32.mrf.mxu0
    %v3184 = vadd.f32 0.0, %v3183
    %v3185 = vpop.f32.mrf.mxu0
    %v3186 = vadd.f32 0.0, %v3185
    %3187 = vmatmul.bf16.gmra.mxu0 %v3032
    %v3188 = vpop.f32.mrf.mxu0
    %v3189 = vadd.f32 0.0, %v3188
    %v3190 = vpop.f32.mrf.mxu0
    %v3191 = vadd.f32 0.0, %v3190
    %3192 = vmatmul.bf16.gmra.mxu0 %v3035
    %v3193 = vpop.f32.mrf.mxu0
    %v3194 = vadd.f32 0.0, %v3193
    %v3195 = vpop.f32.mrf.mxu0
    %v3196 = vadd.f32 0.0, %v3195
    %3197 = vmatmul.bf16.gmra.mxu0 %v3038
    %v3198 = vpop.f32.mrf.mxu0
    %v3199 = vadd.f32 0.0, %v3198
    %v3200 = vpop.f32.mrf.mxu0
    %v3201 = vadd.f32 0.0, %v3200
    %3202 = vmatmul.bf16.gmra.mxu0 %v3041
    %v3203 = vpop.f32.mrf.mxu0
    %v3204 = vadd.f32 0.0, %v3203
    %v3205 = vpop.f32.mrf.mxu0
    %v3206 = vadd.f32 0.0, %v3205
    %3207 = vmatmul.bf16.gmra.mxu0 %v3044
    %v3208 = vpop.f32.mrf.mxu0
    %v3209 = vadd.f32 0.0, %v3208
    %v3210 = vpop.f32.mrf.mxu0
    %v3211 = vadd.f32 0.0, %v3210
    %3212 = vmatmul.bf16.gmra.mxu0 %v3047
    %v3213 = vpop.f32.mrf.mxu0
    %v3214 = vadd.f32 0.0, %v3213
    %v3215 = vpop.f32.mrf.mxu0
    %v3216 = vadd.f32 0.0, %v3215
    %3217 = vmatmul.bf16.gmra.mxu0 %v3050
    %v3218 = vpop.f32.mrf.mxu0
    %v3219 = vadd.f32 0.0, %v3218
    %v3220 = vpop.f32.mrf.mxu0
    %v3221 = vadd.f32 0.0, %v3220
    %3222 = vmatmul.bf16.gmra.mxu0 %v3053
    %v3223 = vpop.f32.mrf.mxu0
    %v3224 = vadd.f32 0.0, %v3223
    %v3225 = vpop.f32.mrf.mxu0
    %v3226 = vadd.f32 0.0, %v3225
    %3227 = vdwg.mxu0
    %v3228 = vmax.f32 %v3069, %v3074
    %v3229 = vmax.f32 %v3071, %v3076
    %v3230 = vmax.f32 %v3079, %v3084
    %v3231 = vmax.f32 %v3081, %v3086
    %v3232 = vmax.f32 %v3089, %v3094
    %v3233 = vmax.f32 %v3091, %v3096
    %v3234 = vmax.f32 %v3099, %v3104
    %v3235 = vmax.f32 %v3101, %v3106
    %v3236 = vmax.f32 %v3109, %v3114
    %v3237 = vmax.f32 %v3111, %v3116
    %v3238 = vmax.f32 %v3119, %v3124
    %v3239 = vmax.f32 %v3121, %v3126
    %v3240 = vmax.f32 %v3129, %v3134
    %v3241 = vmax.f32 %v3131, %v3136
    %v3242 = vmax.f32 %v3139, %v3144
    %v3243 = vmax.f32 %v3141, %v3146
    %v3244 = vmax.f32 %v3149, %v3154
    %v3245 = vmax.f32 %v3151, %v3156
    %v3246 = vmax.f32 %v3159, %v3164
    %v3247 = vmax.f32 %v3161, %v3166
    %v3248 = vmax.f32 %v3169, %v3174
    %v3249 = vmax.f32 %v3171, %v3176
    %v3250 = vmax.f32 %v3179, %v3184
    %v3251 = vmax.f32 %v3181, %v3186
    %v3252 = vmax.f32 %v3189, %v3194
    %v3253 = vmax.f32 %v3191, %v3196
    %v3254 = vmax.f32 %v3199, %v3204
    %v3255 = vmax.f32 %v3201, %v3206
    %v3256 = vmax.f32 %v3209, %v3214
    %v3257 = vmax.f32 %v3211, %v3216
    %v3258 = vmax.f32 %v3219, %v3224
    %v3259 = vmax.f32 %v3221, %v3226
    %3260 = vst.msk [vmem:[#allocation4] sm:$0xff] %vm2841, %v3228
    %3261 = vst.msk [vmem:[#allocation4 + $0x8] sm:$0xff] %vm2841, %v3229
    %3262 = vst.msk [vmem:[#allocation4 + $0x10] sm:$0xff] %vm2841, %v3230
    %3263 = vst.msk [vmem:[#allocation4 + $0x18] sm:$0xff] %vm2841, %v3231
    %3264 = vst.msk [vmem:[#allocation4 + $0x20] sm:$0xff] %vm2841, %v3232
    %3265 = vst.msk [vmem:[#allocation4 + $0x28] sm:$0xff] %vm2841, %v3233
    %3266 = vst.msk [vmem:[#allocation4 + $0x30] sm:$0xff] %vm2841, %v3234
    %3267 = vst.msk [vmem:[#allocation4 + $0x38] sm:$0xff] %vm2841, %v3235
    %3268 = vst.msk [vmem:[#allocation4 + $0x40] sm:$0xff] %vm2841, %v3236
    %3269 = vst.msk [vmem:[#allocation4 + $0x48] sm:$0xff] %vm2841, %v3237
    %3270 = vst.msk [vmem:[#allocation4 + $0x50] sm:$0xff] %vm2841, %v3238
    %3271 = vst.msk [vmem:[#allocation4 + $0x58] sm:$0xff] %vm2841, %v3239
    %3272 = vst.msk [vmem:[#allocation4 + $0x60] sm:$0xff] %vm2841, %v3240
    %3273 = vst.msk [vmem:[#allocation4 + $0x68] sm:$0xff] %vm2841, %v3241
    %3274 = vst.msk [vmem:[#allocation4 + $0x70] sm:$0xff] %vm2841, %v3242
    %3275 = vst.msk [vmem:[#allocation4 + $0x78] sm:$0xff] %vm2841, %v3243
    %3276 = vst.msk [vmem:[#allocation4 + $0x80] sm:$0xff] %vm2841, %v3244
    %3277 = vst.msk [vmem:[#allocation4 + $0x88] sm:$0xff] %vm2841, %v3245
    %3278 = vst.msk [vmem:[#allocation4 + $0x90] sm:$0xff] %vm2841, %v3246
    %3279 = vst.msk [vmem:[#allocation4 + $0x98] sm:$0xff] %vm2841, %v3247
    %3280 = vst.msk [vmem:[#allocation4 + $0xa0] sm:$0xff] %vm2841, %v3248
    %3281 = vst.msk [vmem:[#allocation4 + $0xa8] sm:$0xff] %vm2841, %v3249
    %3282 = vst.msk [vmem:[#allocation4 + $0xb0] sm:$0xff] %vm2841, %v3250
    %3283 = vst.msk [vmem:[#allocation4 + $0xb8] sm:$0xff] %vm2841, %v3251
    %3284 = vst.msk [vmem:[#allocation4 + $0xc0] sm:$0xff] %vm2841, %v3252
    %3285 = vst.msk [vmem:[#allocation4 + $0xc8] sm:$0xff] %vm2841, %v3253
    %3286 = vst.msk [vmem:[#allocation4 + $0xd0] sm:$0xff] %vm2841, %v3254
    %3287 = vst.msk [vmem:[#allocation4 + $0xd8] sm:$0xff] %vm2841, %v3255
    %3288 = vst.msk [vmem:[#allocation4 + $0xe0] sm:$0xff] %vm2841, %v3256
    %3289 = vst.msk [vmem:[#allocation4 + $0xe8] sm:$0xff] %vm2841, %v3257
    %3290 = vst.msk [vmem:[#allocation4 + $0xf0] sm:$0xff] %vm2841, %v3258
    %3291 = vst.msk [vmem:[#allocation4 + $0xf8] sm:$0xff] %vm2841, %v3259
    %v3292 = vld [vmem:[#allocation4] ss:$2 sm:$0xff]
    %s3293 = scalar_lea.vmem [#allocation4], 16
    %v3294 = vld [vmem:[%s3293] ss:$2 sm:$0xff]
    %s3295 = scalar_lea.vmem [#allocation4], 32
    %v3296 = vld [vmem:[%s3295] ss:$2 sm:$0xff]
    %s3297 = scalar_lea.vmem [#allocation4], 48
    %v3298 = vld [vmem:[%s3297] ss:$2 sm:$0xff]
    %s3299 = scalar_lea.vmem [#allocation4], 64
    %v3300 = vld [vmem:[%s3299] ss:$2 sm:$0xff]
    %s3301 = scalar_lea.vmem [#allocation4], 80
    %v3302 = vld [vmem:[%s3301] ss:$2 sm:$0xff]
    %s3303 = scalar_lea.vmem [#allocation4], 96
    %v3304 = vld [vmem:[%s3303] ss:$2 sm:$0xff]
    %s3305 = scalar_lea.vmem [#allocation4], 112
    %v3306 = vld [vmem:[%s3305] ss:$2 sm:$0xff]
    %s3307 = scalar_lea.vmem [#allocation4], 128
    %v3308 = vld [vmem:[%s3307] ss:$2 sm:$0xff]
    %s3309 = scalar_lea.vmem [#allocation4], 144
    %v3310 = vld [vmem:[%s3309] ss:$2 sm:$0xff]
    %s3311 = scalar_lea.vmem [#allocation4], 160
    %v3312 = vld [vmem:[%s3311] ss:$2 sm:$0xff]
    %s3313 = scalar_lea.vmem [#allocation4], 176
    %v3314 = vld [vmem:[%s3313] ss:$2 sm:$0xff]
    %s3315 = scalar_lea.vmem [#allocation4], 192
    %v3316 = vld [vmem:[%s3315] ss:$2 sm:$0xff]
    %s3317 = scalar_lea.vmem [#allocation4], 208
    %v3318 = vld [vmem:[%s3317] ss:$2 sm:$0xff]
    %s3319 = scalar_lea.vmem [#allocation4], 224
    %v3320 = vld [vmem:[%s3319] ss:$2 sm:$0xff]
    %s3321 = scalar_lea.vmem [#allocation4], 240
    %v3322 = vld [vmem:[%s3321] ss:$2 sm:$0xff]
    %s3323 = scalar_lea.vmem [#allocation4], 1
    %v3324 = vld [vmem:[%s3323] ss:$2 sm:$0xff]
    %s3325 = scalar_lea.vmem [#allocation4], 17
    %v3326 = vld [vmem:[%s3325] ss:$2 sm:$0xff]
    %s3327 = scalar_lea.vmem [#allocation4], 33
    %v3328 = vld [vmem:[%s3327] ss:$2 sm:$0xff]
    %s3329 = scalar_lea.vmem [#allocation4], 49
    %v3330 = vld [vmem:[%s3329] ss:$2 sm:$0xff]
    %s3331 = scalar_lea.vmem [#allocation4], 65
    %v3332 = vld [vmem:[%s3331] ss:$2 sm:$0xff]
    %s3333 = scalar_lea.vmem [#allocation4], 81
    %v3334 = vld [vmem:[%s3333] ss:$2 sm:$0xff]
    %s3335 = scalar_lea.vmem [#allocation4], 97
    %v3336 = vld [vmem:[%s3335] ss:$2 sm:$0xff]
    %s3337 = scalar_lea.vmem [#allocation4], 113
    %v3338 = vld [vmem:[%s3337] ss:$2 sm:$0xff]
    %s3339 = scalar_lea.vmem [#allocation4], 129
    %v3340 = vld [vmem:[%s3339] ss:$2 sm:$0xff]
    %s3341 = scalar_lea.vmem [#allocation4], 145
    %v3342 = vld [vmem:[%s3341] ss:$2 sm:$0xff]
    %s3343 = scalar_lea.vmem [#allocation4], 161
    %v3344 = vld [vmem:[%s3343] ss:$2 sm:$0xff]
    %s3345 = scalar_lea.vmem [#allocation4], 177
    %v3346 = vld [vmem:[%s3345] ss:$2 sm:$0xff]
    %s3347 = scalar_lea.vmem [#allocation4], 193
    %v3348 = vld [vmem:[%s3347] ss:$2 sm:$0xff]
    %s3349 = scalar_lea.vmem [#allocation4], 209
    %v3350 = vld [vmem:[%s3349] ss:$2 sm:$0xff]
    %s3351 = scalar_lea.vmem [#allocation4], 225
    %v3352 = vld [vmem:[%s3351] ss:$2 sm:$0xff]
    %s3353 = scalar_lea.vmem [#allocation4], 241
    %v3354 = vld [vmem:[%s3353] ss:$2 sm:$0xff]
    %v3355 = vmax.f32 %v3292, %v3324
    %v3356 = vmax.f32 %v3294, %v3326
    %v3357 = vmax.f32 %v3296, %v3328
    %v3358 = vmax.f32 %v3298, %v3330
    %v3359 = vmax.f32 %v3300, %v3332
    %v3360 = vmax.f32 %v3302, %v3334
    %v3361 = vmax.f32 %v3304, %v3336
    %v3362 = vmax.f32 %v3306, %v3338
    %v3363 = vmax.f32 %v3308, %v3340
    %v3364 = vmax.f32 %v3310, %v3342
    %v3365 = vmax.f32 %v3312, %v3344
    %v3366 = vmax.f32 %v3314, %v3346
    %v3367 = vmax.f32 %v3316, %v3348
    %v3368 = vmax.f32 %v3318, %v3350
    %v3369 = vmax.f32 %v3320, %v3352
    %v3370 = vmax.f32 %v3322, %v3354
    %v3371 = vld [vmem:[%s2] sm:$0x1]
    %v3373 = vperm.slane %v3371, 0
    %v3375 = vadd.f32 %v3355, %v3373
    %v3376 = vadd.f32 %v3356, %v3373
    %v3377 = vadd.f32 %v3357, %v3373
    %v3378 = vadd.f32 %v3358, %v3373
    %v3379 = vadd.f32 %v3359, %v3373
    %v3380 = vadd.f32 %v3360, %v3373
    %v3381 = vadd.f32 %v3361, %v3373
    %v3382 = vadd.f32 %v3362, %v3373
    %v3383 = vadd.f32 %v3363, %v3373
    %v3384 = vadd.f32 %v3364, %v3373
    %v3385 = vadd.f32 %v3365, %v3373
    %v3386 = vadd.f32 %v3366, %v3373
    %v3387 = vadd.f32 %v3367, %v3373
    %v3388 = vadd.f32 %v3368, %v3373
    %v3389 = vadd.f32 %v3369, %v3373
    %v3390 = vadd.f32 %v3370, %v3373
    %v3391 = vmax.f32 %v3375, 0.0
    %v3392 = vmax.f32 %v3376, 0.0
    %v3393 = vmax.f32 %v3377, 0.0
    %v3394 = vmax.f32 %v3378, 0.0
    %v3395 = vmax.f32 %v3379, 0.0
    %v3396 = vmax.f32 %v3380, 0.0
    %v3397 = vmax.f32 %v3381, 0.0
    %v3398 = vmax.f32 %v3382, 0.0
    %v3399 = vmax.f32 %v3383, 0.0
    %v3400 = vmax.f32 %v3384, 0.0
    %v3401 = vmax.f32 %v3385, 0.0
    %v3402 = vmax.f32 %v3386, 0.0
    %v3403 = vmax.f32 %v3387, 0.0
    %v3404 = vmax.f32 %v3388, 0.0
    %v3405 = vmax.f32 %v3389, 0.0
    %v3406 = vmax.f32 %v3390, 0.0
    %3407 = vst.msk [vmem:[#allocation3] sm:$0xff] %vm2841, 0.0
    %vm3408 = vcmask 254976
    %3409 = vst.msk [vmem:[#allocation3 + $0x8] sm:$0x3] %vm3408, 0.0
    %3410 = vst.msk [vmem:[#allocation3 + $0x10] sm:$0xff] %vm2841, 0.0
    %3411 = vst.msk [vmem:[#allocation3 + $0x18] sm:$0x3] %vm3408, 0.0
    %3412 = vst.msk [vmem:[#allocation3 + $0x20] sm:$0xff] %vm2841, 0.0
    %3413 = vst.msk [vmem:[#allocation3 + $0x28] sm:$0x3] %vm3408, 0.0
    %3414 = vst.msk [vmem:[#allocation3 + $0x30] sm:$0xff] %vm2841, 0.0
    %3415 = vst.msk [vmem:[#allocation3 + $0x38] sm:$0x3] %vm3408, 0.0
    %3416 = vst.msk [vmem:[#allocation3 + $0x40] sm:$0xff] %vm2841, 0.0
    %3417 = vst.msk [vmem:[#allocation3 + $0x48] sm:$0x3] %vm3408, 0.0
    %3418 = vst.msk [vmem:[#allocation3 + $0x50] sm:$0xff] %vm2841, 0.0
    %3419 = vst.msk [vmem:[#allocation3 + $0x58] sm:$0x3] %vm3408, 0.0
    %3420 = vst.msk [vmem:[#allocation3 + $0x60] sm:$0xff] %vm2841, 0.0
    %3421 = vst.msk [vmem:[#allocation3 + $0x68] sm:$0x3] %vm3408, 0.0
    %3422 = vst.msk [vmem:[#allocation3 + $0x70] sm:$0xff] %vm2841, 0.0
    %3423 = vst.msk [vmem:[#allocation3 + $0x78] sm:$0x3] %vm3408, 0.0
    %3424 = vst.msk [vmem:[#allocation3 + $0x80] sm:$0xff] %vm2841, 0.0
    %3425 = vst.msk [vmem:[#allocation3 + $0x88] sm:$0x3] %vm3408, 0.0
    %3426 = vst.msk [vmem:[#allocation3 + $0x90] sm:$0xff] %vm2841, 0.0
    %3427 = vst.msk [vmem:[#allocation3 + $0x98] sm:$0x3] %vm3408, 0.0
    %3428 = vst.msk [vmem:[#allocation3 + $0xa0] sm:$0xff] %vm2841, 0.0
    %3429 = vst.msk [vmem:[#allocation3 + $0xa8] sm:$0x3] %vm3408, 0.0
    %3430 = vst.msk [vmem:[#allocation3 + $0xb0] sm:$0xff] %vm2841, 0.0
    %3431 = vst.msk [vmem:[#allocation3 + $0xb8] sm:$0x3] %vm3408, 0.0
    %3432 = vst.msk [vmem:[#allocation3 + $0xc0] sm:$0xff] %vm2841, 0.0
    %3433 = vst.msk [vmem:[#allocation3 + $0xc8] sm:$0x3] %vm3408, 0.0
    %3434 = vst.msk [vmem:[#allocation3 + $0xd0] sm:$0xff] %vm2841, 0.0
    %3435 = vst.msk [vmem:[#allocation3 + $0xd8] sm:$0x3] %vm3408, 0.0
    %3436 = vst.msk [vmem:[#allocation3 + $0xe0] sm:$0xff] %vm2841, 0.0
    %3437 = vst.msk [vmem:[#allocation3 + $0xe8] sm:$0x3] %vm3408, 0.0
    %3438 = vst.msk [vmem:[#allocation3 + $0xf0] sm:$0xff] %vm2841, 0.0
    %3439 = vst.msk [vmem:[#allocation3 + $0xf8] sm:$0x3] %vm3408, 0.0
    %3440 = vst.msk [vmem:[#allocation3 + $0x100] sm:$0xff] %vm2841, 0.0
    %3441 = vst.msk [vmem:[#allocation3 + $0x108] sm:$0x3] %vm3408, 0.0
    %3442 = vst.msk [vmem:[#allocation3 + $0x110] sm:$0xff] %vm2841, 0.0
    %3443 = vst.msk [vmem:[#allocation3 + $0x118] sm:$0x3] %vm3408, 0.0
    %3444 = vst.msk [vmem:[#allocation3 + $0x120] sm:$0xff] %vm2841, 0.0
    %3445 = vst.msk [vmem:[#allocation3 + $0x128] sm:$0x3] %vm3408, 0.0
    %3446 = vst.msk [vmem:[#allocation3 + $0x130] sm:$0xff] %vm2841, 0.0
    %3447 = vst.msk [vmem:[#allocation3 + $0x138] sm:$0x3] %vm3408, 0.0
    %s3448 = scalar_lea.vmem [#allocation3], 16
    %3449 = vst.msk [vmem:[%s3448 + $0x1] sm:$0xff] %vm2841, %v3391
    %3450 = vst.msk [vmem:[%s3448 + $0x11] sm:$0xff] %vm2841, %v3392
    %3451 = vst.msk [vmem:[%s3448 + $0x21] sm:$0xff] %vm2841, %v3393
    %3452 = vst.msk [vmem:[%s3448 + $0x31] sm:$0xff] %vm2841, %v3394
    %3453 = vst.msk [vmem:[%s3448 + $0x41] sm:$0xff] %vm2841, %v3395
    %3454 = vst.msk [vmem:[%s3448 + $0x51] sm:$0xff] %vm2841, %v3396
    %3455 = vst.msk [vmem:[%s3448 + $0x61] sm:$0xff] %vm2841, %v3397
    %3456 = vst.msk [vmem:[%s3448 + $0x71] sm:$0xff] %vm2841, %v3398
    %3457 = vst.msk [vmem:[%s3448 + $0xa1] sm:$0xff] %vm2841, %v3399
    %3458 = vst.msk [vmem:[%s3448 + $0xb1] sm:$0xff] %vm2841, %v3400
    %3459 = vst.msk [vmem:[%s3448 + $0xc1] sm:$0xff] %vm2841, %v3401
    %3460 = vst.msk [vmem:[%s3448 + $0xd1] sm:$0xff] %vm2841, %v3402
    %3461 = vst.msk [vmem:[%s3448 + $0xe1] sm:$0xff] %vm2841, %v3403
    %3462 = vst.msk [vmem:[%s3448 + $0xf1] sm:$0xff] %vm2841, %v3404
    %3463 = vst.msk [vmem:[%s3448 + $0x101] sm:$0xff] %vm2841, %v3405
    %3464 = vst.msk [vmem:[%s3448 + $0x111] sm:$0xff] %vm2841, %v3406
    %v3465 = vld [vmem:[#allocation3] sm:$0xff]
    %v3466 = vld [vmem:[#allocation3 + $0x8] sm:$0x3]
    %v3467 = vld [vmem:[#allocation3 + $0x10] sm:$0xff]
    %v3468 = vld [vmem:[#allocation3 + $0x18] sm:$0x3]
    %v3469 = vld [vmem:[#allocation3 + $0x20] sm:$0xff]
    %v3470 = vld [vmem:[#allocation3 + $0x28] sm:$0x3]
    %v3471 = vld [vmem:[#allocation3 + $0x30] sm:$0xff]
    %v3472 = vld [vmem:[#allocation3 + $0x38] sm:$0x3]
    %v3473 = vld [vmem:[#allocation3 + $0x40] sm:$0xff]
    %v3474 = vld [vmem:[#allocation3 + $0x48] sm:$0x3]
    %v3475 = vld [vmem:[#allocation3 + $0x50] sm:$0xff]
    %v3476 = vld [vmem:[#allocation3 + $0x58] sm:$0x3]
    %v3477 = vld [vmem:[#allocation3 + $0x60] sm:$0xff]
    %v3478 = vld [vmem:[#allocation3 + $0x68] sm:$0x3]
    %v3479 = vld [vmem:[#allocation3 + $0x70] sm:$0xff]
    %v3480 = vld [vmem:[#allocation3 + $0x78] sm:$0x3]
    %v3481 = vld [vmem:[#allocation3 + $0x80] sm:$0xff]
    %v3482 = vld [vmem:[#allocation3 + $0x88] sm:$0x3]
    %v3483 = vld [vmem:[#allocation3 + $0x90] sm:$0xff]
    %v3484 = vld [vmem:[#allocation3 + $0x98] sm:$0x3]
    %v3485 = vld [vmem:[#allocation3 + $0xa0] sm:$0xff]
    %v3486 = vld [vmem:[#allocation3 + $0xa8] sm:$0x3]
    %v3487 = vld [vmem:[#allocation3 + $0xb0] sm:$0xff]
    %v3488 = vld [vmem:[#allocation3 + $0xb8] sm:$0x3]
    %v3489 = vld [vmem:[#allocation3 + $0xc0] sm:$0xff]
    %v3490 = vld [vmem:[#allocation3 + $0xc8] sm:$0x3]
    %v3491 = vld [vmem:[#allocation3 + $0xd0] sm:$0xff]
    %v3492 = vld [vmem:[#allocation3 + $0xd8] sm:$0x3]
    %v3493 = vld [vmem:[#allocation3 + $0xe0] sm:$0xff]
    %v3494 = vld [vmem:[#allocation3 + $0xe8] sm:$0x3]
    %v3495 = vld [vmem:[#allocation3 + $0xf0] sm:$0xff]
    %v3496 = vld [vmem:[#allocation3 + $0xf8] sm:$0x3]
    %v3497 = vld [vmem:[#allocation3 + $0x100] sm:$0xff]
    %v3498 = vld [vmem:[#allocation3 + $0x108] sm:$0x3]
    %v3499 = vld [vmem:[#allocation3 + $0x110] sm:$0xff]
    %v3500 = vld [vmem:[#allocation3 + $0x118] sm:$0x3]
    %v3501 = vld [vmem:[#allocation3 + $0x120] sm:$0xff]
    %v3502 = vld [vmem:[#allocation3 + $0x128] sm:$0x3]
    %v3503 = vld [vmem:[#allocation3 + $0x130] sm:$0xff]
    %v3504 = vld [vmem:[#allocation3 + $0x138] sm:$0x3]
    %v3537 = vrot.slane %v3465, 1
    %v3538 = vrot.slane %v3466, 1
    %v3539 = vsel %vm477, %v3537, %v3538
    %v3540 = vrot.slane %v3467, 1
    %v3541 = vrot.slane %v3468, 1
    %v3542 = vsel %vm477, %v3540, %v3541
    %v3543 = vrot.slane %v3469, 1
    %v3544 = vrot.slane %v3470, 1
    %v3545 = vsel %vm477, %v3543, %v3544
    %v3546 = vrot.slane %v3471, 1
    %v3547 = vrot.slane %v3472, 1
    %v3548 = vsel %vm477, %v3546, %v3547
    %v3549 = vrot.slane %v3473, 1
    %v3550 = vrot.slane %v3474, 1
    %v3551 = vsel %vm477, %v3549, %v3550
    %v3552 = vrot.slane %v3475, 1
    %v3553 = vrot.slane %v3476, 1
    %v3554 = vsel %vm477, %v3552, %v3553
    %v3555 = vrot.slane %v3477, 1
    %v3556 = vrot.slane %v3478, 1
    %v3557 = vsel %vm477, %v3555, %v3556
    %v3558 = vrot.slane %v3479, 1
    %v3559 = vrot.slane %v3480, 1
    %v3560 = vsel %vm477, %v3558, %v3559
    %v3561 = vrot.slane %v3485, 1
    %v3562 = vrot.slane %v3486, 1
    %v3563 = vsel %vm477, %v3561, %v3562
    %v3564 = vrot.slane %v3487, 1
    %v3565 = vrot.slane %v3488, 1
    %v3566 = vsel %vm477, %v3564, %v3565
    %v3567 = vrot.slane %v3489, 1
    %v3568 = vrot.slane %v3490, 1
    %v3569 = vsel %vm477, %v3567, %v3568
    %v3570 = vrot.slane %v3491, 1
    %v3571 = vrot.slane %v3492, 1
    %v3572 = vsel %vm477, %v3570, %v3571
    %v3573 = vrot.slane %v3493, 1
    %v3574 = vrot.slane %v3494, 1
    %v3575 = vsel %vm477, %v3573, %v3574
    %v3576 = vrot.slane %v3495, 1
    %v3577 = vrot.slane %v3496, 1
    %v3578 = vsel %vm477, %v3576, %v3577
    %v3579 = vrot.slane %v3497, 1
    %v3580 = vrot.slane %v3498, 1
    %v3581 = vsel %vm477, %v3579, %v3580
    %v3582 = vrot.slane %v3499, 1
    %v3583 = vrot.slane %v3500, 1
    %v3584 = vsel %vm477, %v3582, %v3583
    %3585 = vrot.lane.b32.xlu0 %v3539, 32
    %v3586 = vpop.permute.xlu0 %3585
    %3587 = vrot.lane.b32.xlu0 %v3542, 32
    %v3588 = vpop.permute.xlu0 %3587
    %3589 = vrot.lane.b32.xlu0 %v3545, 32
    %v3590 = vpop.permute.xlu0 %3589
    %3591 = vrot.lane.b32.xlu0 %v3548, 32
    %v3592 = vpop.permute.xlu0 %3591
    %3593 = vrot.lane.b32.xlu0 %v3551, 32
    %v3594 = vpop.permute.xlu0 %3593
    %3595 = vrot.lane.b32.xlu0 %v3554, 32
    %v3596 = vpop.permute.xlu0 %3595
    %3597 = vrot.lane.b32.xlu0 %v3557, 32
    %v3598 = vpop.permute.xlu0 %3597
    %3599 = vrot.lane.b32.xlu0 %v3560, 32
    %v3600 = vpop.permute.xlu0 %3599
    %3601 = vrot.lane.b32.xlu0 %v3563, 32
    %v3602 = vpop.permute.xlu0 %3601
    %3603 = vrot.lane.b32.xlu0 %v3566, 32
    %v3604 = vpop.permute.xlu0 %3603
    %3605 = vrot.lane.b32.xlu0 %v3569, 32
    %v3606 = vpop.permute.xlu0 %3605
    %3607 = vrot.lane.b32.xlu0 %v3572, 32
    %v3608 = vpop.permute.xlu0 %3607
    %3609 = vrot.lane.b32.xlu0 %v3575, 32
    %v3610 = vpop.permute.xlu0 %3609
    %3611 = vrot.lane.b32.xlu0 %v3578, 32
    %v3612 = vpop.permute.xlu0 %3611
    %3613 = vrot.lane.b32.xlu0 %v3581, 32
    %v3614 = vpop.permute.xlu0 %3613
    %3615 = vrot.lane.b32.xlu0 %v3584, 32
    %v3616 = vpop.permute.xlu0 %3615
    %v3633 = vrot.slane %v3465, 2
    %v3634 = vrot.slane %v3466, 2
    %v3635 = vsel %vm830, %v3633, %v3634
    %v3636 = vrot.slane %v3467, 2
    %v3637 = vrot.slane %v3468, 2
    %v3638 = vsel %vm830, %v3636, %v3637
    %v3639 = vrot.slane %v3469, 2
    %v3640 = vrot.slane %v3470, 2
    %v3641 = vsel %vm830, %v3639, %v3640
    %v3642 = vrot.slane %v3471, 2
    %v3643 = vrot.slane %v3472, 2
    %v3644 = vsel %vm830, %v3642, %v3643
    %v3645 = vrot.slane %v3473, 2
    %v3646 = vrot.slane %v3474, 2
    %v3647 = vsel %vm830, %v3645, %v3646
    %v3648 = vrot.slane %v3475, 2
    %v3649 = vrot.slane %v3476, 2
    %v3650 = vsel %vm830, %v3648, %v3649
    %v3651 = vrot.slane %v3477, 2
    %v3652 = vrot.slane %v3478, 2
    %v3653 = vsel %vm830, %v3651, %v3652
    %v3654 = vrot.slane %v3479, 2
    %v3655 = vrot.slane %v3480, 2
    %v3656 = vsel %vm830, %v3654, %v3655
    %v3657 = vrot.slane %v3485, 2
    %v3658 = vrot.slane %v3486, 2
    %v3659 = vsel %vm830, %v3657, %v3658
    %v3660 = vrot.slane %v3487, 2
    %v3661 = vrot.slane %v3488, 2
    %v3662 = vsel %vm830, %v3660, %v3661
    %v3663 = vrot.slane %v3489, 2
    %v3664 = vrot.slane %v3490, 2
    %v3665 = vsel %vm830, %v3663, %v3664
    %v3666 = vrot.slane %v3491, 2
    %v3667 = vrot.slane %v3492, 2
    %v3668 = vsel %vm830, %v3666, %v3667
    %v3669 = vrot.slane %v3493, 2
    %v3670 = vrot.slane %v3494, 2
    %v3671 = vsel %vm830, %v3669, %v3670
    %v3672 = vrot.slane %v3495, 2
    %v3673 = vrot.slane %v3496, 2
    %v3674 = vsel %vm830, %v3672, %v3673
    %v3675 = vrot.slane %v3497, 2
    %v3676 = vrot.slane %v3498, 2
    %v3677 = vsel %vm830, %v3675, %v3676
    %v3678 = vrot.slane %v3499, 2
    %v3679 = vrot.slane %v3500, 2
    %v3680 = vsel %vm830, %v3678, %v3679
    %3681 = vrot.lane.b32.xlu0 %v3635, 64
    %v3682 = vpop.permute.xlu0 %3681
    %3683 = vrot.lane.b32.xlu0 %v3638, 64
    %v3684 = vpop.permute.xlu0 %3683
    %3685 = vrot.lane.b32.xlu0 %v3641, 64
    %v3686 = vpop.permute.xlu0 %3685
    %3687 = vrot.lane.b32.xlu0 %v3644, 64
    %v3688 = vpop.permute.xlu0 %3687
    %3689 = vrot.lane.b32.xlu0 %v3647, 64
    %v3690 = vpop.permute.xlu0 %3689
    %3691 = vrot.lane.b32.xlu0 %v3650, 64
    %v3692 = vpop.permute.xlu0 %3691
    %3693 = vrot.lane.b32.xlu0 %v3653, 64
    %v3694 = vpop.permute.xlu0 %3693
    %3695 = vrot.lane.b32.xlu0 %v3656, 64
    %v3696 = vpop.permute.xlu0 %3695
    %3697 = vrot.lane.b32.xlu0 %v3659, 64
    %v3698 = vpop.permute.xlu0 %3697
    %3699 = vrot.lane.b32.xlu0 %v3662, 64
    %v3700 = vpop.permute.xlu0 %3699
    %3701 = vrot.lane.b32.xlu0 %v3665, 64
    %v3702 = vpop.permute.xlu0 %3701
    %3703 = vrot.lane.b32.xlu0 %v3668, 64
    %v3704 = vpop.permute.xlu0 %3703
    %3705 = vrot.lane.b32.xlu0 %v3671, 64
    %v3706 = vpop.permute.xlu0 %3705
    %3707 = vrot.lane.b32.xlu0 %v3674, 64
    %v3708 = vpop.permute.xlu0 %3707
    %3709 = vrot.lane.b32.xlu0 %v3677, 64
    %v3710 = vpop.permute.xlu0 %3709
    %3711 = vrot.lane.b32.xlu0 %v3680, 64
    %v3712 = vpop.permute.xlu0 %3711
    %3731 = vrot.lane.b32.xlu0 %v3467, 96
    %v3732 = vpop.permute.xlu0 %3731
    %3733 = vrot.lane.b32.xlu0 %v3469, 96
    %v3734 = vpop.permute.xlu0 %3733
    %3735 = vrot.lane.b32.xlu0 %v3471, 96
    %v3736 = vpop.permute.xlu0 %3735
    %3737 = vrot.lane.b32.xlu0 %v3473, 96
    %v3738 = vpop.permute.xlu0 %3737
    %3739 = vrot.lane.b32.xlu0 %v3475, 96
    %v3740 = vpop.permute.xlu0 %3739
    %3741 = vrot.lane.b32.xlu0 %v3477, 96
    %v3742 = vpop.permute.xlu0 %3741
    %3743 = vrot.lane.b32.xlu0 %v3479, 96
    %v3744 = vpop.permute.xlu0 %3743
    %3745 = vrot.lane.b32.xlu0 %v3481, 96
    %v3746 = vpop.permute.xlu0 %3745
    %3747 = vrot.lane.b32.xlu0 %v3487, 96
    %v3748 = vpop.permute.xlu0 %3747
    %3749 = vrot.lane.b32.xlu0 %v3489, 96
    %v3750 = vpop.permute.xlu0 %3749
    %3751 = vrot.lane.b32.xlu0 %v3491, 96
    %v3752 = vpop.permute.xlu0 %3751
    %3753 = vrot.lane.b32.xlu0 %v3493, 96
    %v3754 = vpop.permute.xlu0 %3753
    %3755 = vrot.lane.b32.xlu0 %v3495, 96
    %v3756 = vpop.permute.xlu0 %3755
    %3757 = vrot.lane.b32.xlu0 %v3497, 96
    %v3758 = vpop.permute.xlu0 %3757
    %3759 = vrot.lane.b32.xlu0 %v3499, 96
    %v3760 = vpop.permute.xlu0 %3759
    %3761 = vrot.lane.b32.xlu0 %v3501, 96
    %v3762 = vpop.permute.xlu0 %3761
    %v3781 = vrot.slane %v3481, 1
    %v3782 = vrot.slane %v3482, 1
    %v3783 = vsel %vm477, %v3781, %v3782
    %v3784 = vrot.slane %v3501, 1
    %v3785 = vrot.slane %v3502, 1
    %v3786 = vsel %vm477, %v3784, %v3785
    %v3803 = vrot.slane %v3481, 2
    %v3804 = vrot.slane %v3482, 2
    %v3805 = vsel %vm830, %v3803, %v3804
    %v3806 = vrot.slane %v3501, 2
    %v3807 = vrot.slane %v3502, 2
    %v3808 = vsel %vm830, %v3806, %v3807
    %3809 = vrot.lane.b32.xlu0 %v3638, 32
    %v3810 = vpop.permute.xlu0 %3809
    %3811 = vrot.lane.b32.xlu0 %v3641, 32
    %v3812 = vpop.permute.xlu0 %3811
    %3813 = vrot.lane.b32.xlu0 %v3644, 32
    %v3814 = vpop.permute.xlu0 %3813
    %3815 = vrot.lane.b32.xlu0 %v3647, 32
    %v3816 = vpop.permute.xlu0 %3815
    %3817 = vrot.lane.b32.xlu0 %v3650, 32
    %v3818 = vpop.permute.xlu0 %3817
    %3819 = vrot.lane.b32.xlu0 %v3653, 32
    %v3820 = vpop.permute.xlu0 %3819
    %3821 = vrot.lane.b32.xlu0 %v3656, 32
    %v3822 = vpop.permute.xlu0 %3821
    %3823 = vrot.lane.b32.xlu0 %v3805, 32
    %v3824 = vpop.permute.xlu0 %3823
    %3825 = vrot.lane.b32.xlu0 %v3662, 32
    %v3826 = vpop.permute.xlu0 %3825
    %3827 = vrot.lane.b32.xlu0 %v3665, 32
    %v3828 = vpop.permute.xlu0 %3827
    %3829 = vrot.lane.b32.xlu0 %v3668, 32
    %v3830 = vpop.permute.xlu0 %3829
    %3831 = vrot.lane.b32.xlu0 %v3671, 32
    %v3832 = vpop.permute.xlu0 %3831
    %3833 = vrot.lane.b32.xlu0 %v3674, 32
    %v3834 = vpop.permute.xlu0 %3833
    %3835 = vrot.lane.b32.xlu0 %v3677, 32
    %v3836 = vpop.permute.xlu0 %3835
    %3837 = vrot.lane.b32.xlu0 %v3680, 32
    %v3838 = vpop.permute.xlu0 %3837
    %3839 = vrot.lane.b32.xlu0 %v3808, 32
    %v3840 = vpop.permute.xlu0 %3839
    %3859 = vrot.lane.b32.xlu0 %v3469, 64
    %v3860 = vpop.permute.xlu0 %3859
    %3861 = vrot.lane.b32.xlu0 %v3471, 64
    %v3862 = vpop.permute.xlu0 %3861
    %3863 = vrot.lane.b32.xlu0 %v3473, 64
    %v3864 = vpop.permute.xlu0 %3863
    %3865 = vrot.lane.b32.xlu0 %v3475, 64
    %v3866 = vpop.permute.xlu0 %3865
    %3867 = vrot.lane.b32.xlu0 %v3477, 64
    %v3868 = vpop.permute.xlu0 %3867
    %3869 = vrot.lane.b32.xlu0 %v3479, 64
    %v3870 = vpop.permute.xlu0 %3869
    %3871 = vrot.lane.b32.xlu0 %v3481, 64
    %v3872 = vpop.permute.xlu0 %3871
    %3873 = vrot.lane.b32.xlu0 %v3483, 64
    %v3874 = vpop.permute.xlu0 %3873
    %3875 = vrot.lane.b32.xlu0 %v3489, 64
    %v3876 = vpop.permute.xlu0 %3875
    %3877 = vrot.lane.b32.xlu0 %v3491, 64
    %v3878 = vpop.permute.xlu0 %3877
    %3879 = vrot.lane.b32.xlu0 %v3493, 64
    %v3880 = vpop.permute.xlu0 %3879
    %3881 = vrot.lane.b32.xlu0 %v3495, 64
    %v3882 = vpop.permute.xlu0 %3881
    %3883 = vrot.lane.b32.xlu0 %v3497, 64
    %v3884 = vpop.permute.xlu0 %3883
    %3885 = vrot.lane.b32.xlu0 %v3499, 64
    %v3886 = vpop.permute.xlu0 %3885
    %3887 = vrot.lane.b32.xlu0 %v3501, 64
    %v3888 = vpop.permute.xlu0 %3887
    %3889 = vrot.lane.b32.xlu0 %v3503, 64
    %v3890 = vpop.permute.xlu0 %3889
    %v3909 = vrot.slane %v3483, 1
    %v3910 = vrot.slane %v3484, 1
    %v3911 = vsel %vm477, %v3909, %v3910
    %v3912 = vrot.slane %v3503, 1
    %v3913 = vrot.slane %v3504, 1
    %v3914 = vsel %vm477, %v3912, %v3913
    %3915 = vrot.lane.b32.xlu0 %v3545, 96
    %v3916 = vpop.permute.xlu0 %3915
    %3917 = vrot.lane.b32.xlu0 %v3548, 96
    %v3918 = vpop.permute.xlu0 %3917
    %3919 = vrot.lane.b32.xlu0 %v3551, 96
    %v3920 = vpop.permute.xlu0 %3919
    %3921 = vrot.lane.b32.xlu0 %v3554, 96
    %v3922 = vpop.permute.xlu0 %3921
    %3923 = vrot.lane.b32.xlu0 %v3557, 96
    %v3924 = vpop.permute.xlu0 %3923
    %3925 = vrot.lane.b32.xlu0 %v3560, 96
    %v3926 = vpop.permute.xlu0 %3925
    %3927 = vrot.lane.b32.xlu0 %v3783, 96
    %v3928 = vpop.permute.xlu0 %3927
    %3929 = vrot.lane.b32.xlu0 %v3911, 96
    %v3930 = vpop.permute.xlu0 %3929
    %3931 = vrot.lane.b32.xlu0 %v3569, 96
    %v3932 = vpop.permute.xlu0 %3931
    %3933 = vrot.lane.b32.xlu0 %v3572, 96
    %v3934 = vpop.permute.xlu0 %3933
    %3935 = vrot.lane.b32.xlu0 %v3575, 96
    %v3936 = vpop.permute.xlu0 %3935
    %3937 = vrot.lane.b32.xlu0 %v3578, 96
    %v3938 = vpop.permute.xlu0 %3937
    %3939 = vrot.lane.b32.xlu0 %v3581, 96
    %v3940 = vpop.permute.xlu0 %3939
    %3941 = vrot.lane.b32.xlu0 %v3584, 96
    %v3942 = vpop.permute.xlu0 %3941
    %3943 = vrot.lane.b32.xlu0 %v3786, 96
    %v3944 = vpop.permute.xlu0 %3943
    %3945 = vrot.lane.b32.xlu0 %v3914, 96
    %v3946 = vpop.permute.xlu0 %3945
    %v3963 = vrot.slane %v3483, 2
    %v3964 = vrot.slane %v3484, 2
    %v3965 = vsel %vm830, %v3963, %v3964
    %v3966 = vrot.slane %v3503, 2
    %v3967 = vrot.slane %v3504, 2
    %v3968 = vsel %vm830, %v3966, %v3967
    %v3985 = vsel %vm2841, %v3465, %v3586
    %v3986 = vsel %vm2841, %v3467, %v3588
    %v3987 = vsel %vm2841, %v3469, %v3590
    %v3988 = vsel %vm2841, %v3471, %v3592
    %v3989 = vsel %vm2841, %v3473, %v3594
    %v3990 = vsel %vm2841, %v3475, %v3596
    %v3991 = vsel %vm2841, %v3477, %v3598
    %v3992 = vsel %vm2841, %v3479, %v3600
    %v3993 = vsel %vm2841, %v3485, %v3602
    %v3994 = vsel %vm2841, %v3487, %v3604
    %v3995 = vsel %vm2841, %v3489, %v3606
    %v3996 = vsel %vm2841, %v3491, %v3608
    %v3997 = vsel %vm2841, %v3493, %v3610
    %v3998 = vsel %vm2841, %v3495, %v3612
    %v3999 = vsel %vm2841, %v3497, %v3614
    %v4000 = vsel %vm2841, %v3499, %v3616
    %vm4001 = vcmask 523264
    %v4002 = vsel %vm4001, %v3985, %v3682
    %v4003 = vsel %vm4001, %v3986, %v3684
    %v4004 = vsel %vm4001, %v3987, %v3686
    %v4005 = vsel %vm4001, %v3988, %v3688
    %v4006 = vsel %vm4001, %v3989, %v3690
    %v4007 = vsel %vm4001, %v3990, %v3692
    %v4008 = vsel %vm4001, %v3991, %v3694
    %v4009 = vsel %vm4001, %v3992, %v3696
    %v4010 = vsel %vm4001, %v3993, %v3698
    %v4011 = vsel %vm4001, %v3994, %v3700
    %v4012 = vsel %vm4001, %v3995, %v3702
    %v4013 = vsel %vm4001, %v3996, %v3704
    %v4014 = vsel %vm4001, %v3997, %v3706
    %v4015 = vsel %vm4001, %v3998, %v3708
    %v4016 = vsel %vm4001, %v3999, %v3710
    %v4017 = vsel %vm4001, %v4000, %v3712
    %vm4018 = vcmask 785408
    %v4019 = vsel %vm4018, %v4002, %v3732
    %v4020 = vsel %vm4018, %v4003, %v3734
    %v4021 = vsel %vm4018, %v4004, %v3736
    %v4022 = vsel %vm4018, %v4005, %v3738
    %v4023 = vsel %vm4018, %v4006, %v3740
    %v4024 = vsel %vm4018, %v4007, %v3742
    %v4025 = vsel %vm4018, %v4008, %v3744
    %v4026 = vsel %vm4018, %v4009, %v3746
    %v4027 = vsel %vm4018, %v4010, %v3748
    %v4028 = vsel %vm4018, %v4011, %v3750
    %v4029 = vsel %vm4018, %v4012, %v3752
    %v4030 = vsel %vm4018, %v4013, %v3754
    %v4031 = vsel %vm4018, %v4014, %v3756
    %v4032 = vsel %vm4018, %v4015, %v3758
    %v4033 = vsel %vm4018, %v4016, %v3760
    %v4034 = vsel %vm4018, %v4017, %v3762
    %v4035 = vsel %vm2841, %v3542, %v3810
    %v4036 = vsel %vm2841, %v3545, %v3812
    %v4037 = vsel %vm2841, %v3548, %v3814
    %v4038 = vsel %vm2841, %v3551, %v3816
    %v4039 = vsel %vm2841, %v3554, %v3818
    %v4040 = vsel %vm2841, %v3557, %v3820
    %v4041 = vsel %vm2841, %v3560, %v3822
    %v4042 = vsel %vm2841, %v3783, %v3824
    %v4043 = vsel %vm2841, %v3566, %v3826
    %v4044 = vsel %vm2841, %v3569, %v3828
    %v4045 = vsel %vm2841, %v3572, %v3830
    %v4046 = vsel %vm2841, %v3575, %v3832
    %v4047 = vsel %vm2841, %v3578, %v3834
    %v4048 = vsel %vm2841, %v3581, %v3836
    %v4049 = vsel %vm2841, %v3584, %v3838
    %v4050 = vsel %vm2841, %v3786, %v3840
    %v4051 = vsel %vm4001, %v4035, %v3860
    %v4052 = vsel %vm4001, %v4036, %v3862
    %v4053 = vsel %vm4001, %v4037, %v3864
    %v4054 = vsel %vm4001, %v4038, %v3866
    %v4055 = vsel %vm4001, %v4039, %v3868
    %v4056 = vsel %vm4001, %v4040, %v3870
    %v4057 = vsel %vm4001, %v4041, %v3872
    %v4058 = vsel %vm4001, %v4042, %v3874
    %v4059 = vsel %vm4001, %v4043, %v3876
    %v4060 = vsel %vm4001, %v4044, %v3878
    %v4061 = vsel %vm4001, %v4045, %v3880
    %v4062 = vsel %vm4001, %v4046, %v3882
    %v4063 = vsel %vm4001, %v4047, %v3884
    %v4064 = vsel %vm4001, %v4048, %v3886
    %v4065 = vsel %vm4001, %v4049, %v3888
    %v4066 = vsel %vm4001, %v4050, %v3890
    %v4067 = vsel %vm4018, %v4051, %v3916
    %v4068 = vsel %vm4018, %v4052, %v3918
    %v4069 = vsel %vm4018, %v4053, %v3920
    %v4070 = vsel %vm4018, %v4054, %v3922
    %v4071 = vsel %vm4018, %v4055, %v3924
    %v4072 = vsel %vm4018, %v4056, %v3926
    %v4073 = vsel %vm4018, %v4057, %v3928
    %v4074 = vsel %vm4018, %v4058, %v3930
    %v4075 = vsel %vm4018, %v4059, %v3932
    %v4076 = vsel %vm4018, %v4060, %v3934
    %v4077 = vsel %vm4018, %v4061, %v3936
    %v4078 = vsel %vm4018, %v4062, %v3938
    %v4079 = vsel %vm4018, %v4063, %v3940
    %v4080 = vsel %vm4018, %v4064, %v3942
    %v4081 = vsel %vm4018, %v4065, %v3944
    %v4082 = vsel %vm4018, %v4066, %v3946
    %v4083 = vpack.c.bf16 %v4020, %v4019
    %v4084 = vpack.c.bf16 %v4068, %v4067
    %v4085 = vpack.c.bf16 %v3644, %v3641
    %v4086 = vpack.c.bf16 %v4022, %v4021
    %v4087 = vpack.c.bf16 %v4070, %v4069
    %v4088 = vpack.c.bf16 %v3650, %v3647
    %v4089 = vpack.c.bf16 %v4024, %v4023
    %v4090 = vpack.c.bf16 %v4072, %v4071
    %v4091 = vpack.c.bf16 %v3656, %v3653
    %v4092 = vpack.c.bf16 %v4026, %v4025
    %v4093 = vpack.c.bf16 %v4074, %v4073
    %v4094 = vpack.c.bf16 %v3965, %v3805
    %v4095 = vpack.c.bf16 %v4028, %v4027
    %v4096 = vpack.c.bf16 %v4076, %v4075
    %v4097 = vpack.c.bf16 %v3668, %v3665
    %v4098 = vpack.c.bf16 %v4030, %v4029
    %v4099 = vpack.c.bf16 %v4078, %v4077
    %v4100 = vpack.c.bf16 %v3674, %v3671
    %v4101 = vpack.c.bf16 %v4032, %v4031
    %v4102 = vpack.c.bf16 %v4080, %v4079
    %v4103 = vpack.c.bf16 %v3680, %v3677
    %v4104 = vpack.c.bf16 %v4034, %v4033
    %v4105 = vpack.c.bf16 %v4082, %v4081
    %v4106 = vpack.c.bf16 %v3968, %v3808
    %v4107 = vld [vmem:[%s3] sm:$0xf]
    %v4108 = vld [vmem:[%s3 + $0x4] sm:$0xf]
    %v4109 = vld [vmem:[%s3 + $0x8] sm:$0xf]
    %v4110 = vld [vmem:[%s3 + $0xc] sm:$0xf]
    %v4111 = vld [vmem:[%s3 + $0x10] sm:$0xf]
    %v4112 = vld [vmem:[%s3 + $0x14] sm:$0xf]
    %v4113 = vld [vmem:[%s3 + $0x18] sm:$0xf]
    %v4114 = vld [vmem:[%s3 + $0x1c] sm:$0xf]
    %v4115 = vld [vmem:[%s3 + $0x20] sm:$0xf]
    %v4116 = vld [vmem:[%s3 + $0x24] sm:$0xf]
    %v4117 = vld [vmem:[%s3 + $0x28] sm:$0xf]
    %v4118 = vld [vmem:[%s3 + $0x2c] sm:$0xf]
    %v4119 = vld [vmem:[%s3 + $0x30] sm:$0xf]
    %v4120 = vld [vmem:[%s3 + $0x34] sm:$0xf]
    %v4121 = vld [vmem:[%s3 + $0x38] sm:$0xf]
    %v4122 = vld [vmem:[%s3 + $0x3c] sm:$0xf]
    %v4123 = vld [vmem:[%s3 + $0x40] sm:$0xf]
    %v4124 = vld [vmem:[%s3 + $0x44] sm:$0xf]
    %v4125 = vld [vmem:[%s3 + $0x48] sm:$0xf]
    %v4126 = vld [vmem:[%s3 + $0x4c] sm:$0xf]
    %v4127 = vld [vmem:[%s3 + $0x50] sm:$0xf]
    %v4128 = vld [vmem:[%s3 + $0x54] sm:$0xf]
    %v4129 = vld [vmem:[%s3 + $0x58] sm:$0xf]
    %v4130 = vld [vmem:[%s3 + $0x5c] sm:$0xf]
    %v4131 = vld [vmem:[%s3 + $0x60] sm:$0xf]
    %v4132 = vld [vmem:[%s3 + $0x64] sm:$0xf]
    %v4133 = vld [vmem:[%s3 + $0x68] sm:$0xf]
    %v4134 = vld [vmem:[%s3 + $0x6c] sm:$0xf]
    %v4135 = vld [vmem:[%s3 + $0x70] sm:$0xf]
    %v4136 = vld [vmem:[%s3 + $0x74] sm:$0xf]
    %v4137 = vld [vmem:[%s3 + $0x78] sm:$0xf]
    %v4138 = vld [vmem:[%s3 + $0x7c] sm:$0xf]
    %v4139 = vld [vmem:[%s3 + $0x80] sm:$0xf]
    %v4140 = vld [vmem:[%s3 + $0x84] sm:$0xf]
    %v4141 = vld [vmem:[%s3 + $0x88] sm:$0xf]
    %v4142 = vld [vmem:[%s3 + $0x8c] sm:$0xf]
    %v4179 = vunpack.c.l.b16 %v4107
    %v4180 = vunpack.c.l.b16 %v4108
    %v4181 = vunpack.c.l.b16 %v4109
    %v4182 = vunpack.c.l.b16 %v4110
    %v4183 = vunpack.c.l.b16 %v4111
    %v4184 = vunpack.c.l.b16 %v4112
    %v4185 = vunpack.c.l.b16 %v4113
    %v4186 = vunpack.c.l.b16 %v4114
    %v4187 = vunpack.c.l.b16 %v4115
    %v4188 = vunpack.c.l.b16 %v4116
    %v4189 = vunpack.c.l.b16 %v4117
    %v4190 = vunpack.c.l.b16 %v4118
    %v4191 = vunpack.c.l.b16 %v4119
    %v4192 = vunpack.c.l.b16 %v4120
    %v4193 = vunpack.c.l.b16 %v4121
    %v4194 = vunpack.c.l.b16 %v4122
    %v4195 = vunpack.c.l.b16 %v4123
    %v4196 = vunpack.c.l.b16 %v4124
    %v4197 = vunpack.c.l.b16 %v4125
    %v4198 = vunpack.c.l.b16 %v4126
    %v4199 = vunpack.c.l.b16 %v4127
    %v4200 = vunpack.c.l.b16 %v4128
    %v4201 = vunpack.c.l.b16 %v4129
    %v4202 = vunpack.c.l.b16 %v4130
    %v4203 = vunpack.c.l.b16 %v4131
    %v4204 = vunpack.c.l.b16 %v4132
    %v4205 = vunpack.c.l.b16 %v4133
    %v4206 = vunpack.c.l.b16 %v4134
    %v4207 = vunpack.c.l.b16 %v4135
    %v4208 = vunpack.c.l.b16 %v4136
    %v4209 = vunpack.c.l.b16 %v4137
    %v4210 = vunpack.c.l.b16 %v4138
    %v4211 = vunpack.c.l.b16 %v4139
    %v4212 = vunpack.c.l.b16 %v4140
    %v4213 = vunpack.c.l.b16 %v4141
    %v4214 = vunpack.c.l.b16 %v4142
    %v4215 = vpack.c.b16 %v4180, %v4179
    %v4216 = vpack.c.b16 %v4182, %v4181
    %v4217 = vpack.c.b16 %v4184, %v4183
    %v4218 = vpack.c.b16 %v4186, %v4185
    %v4219 = vpack.c.b16 %v4188, %v4187
    %v4220 = vpack.c.b16 %v4190, %v4189
    %v4221 = vpack.c.b16 %v4192, %v4191
    %v4222 = vpack.c.b16 %v4194, %v4193
    %v4223 = vpack.c.b16 %v4196, %v4195
    %v4224 = vpack.c.b16 %v4198, %v4197
    %v4225 = vpack.c.b16 %v4200, %v4199
    %v4226 = vpack.c.b16 %v4202, %v4201
    %v4227 = vpack.c.b16 %v4204, %v4203
    %v4228 = vpack.c.b16 %v4206, %v4205
    %v4229 = vpack.c.b16 %v4208, %v4207
    %v4230 = vpack.c.b16 %v4210, %v4209
    %v4231 = vpack.c.b16 %v4212, %v4211
    %v4232 = vpack.c.b16 %v4214, %v4213
    %v4252 = vsel %vm2841, %v4085, 0
    %v4255 = vsel %vm2841, %v4088, 0
    %v4258 = vsel %vm2841, %v4091, 0
    %v4261 = vsel %vm2841, %v4094, 0
    %v4264 = vsel %vm2841, %v4097, 0
    %v4267 = vsel %vm2841, %v4100, 0
    %v4270 = vsel %vm2841, %v4103, 0
    %v4273 = vsel %vm2841, %v4106, 0
    %4275 = vmatpush.bf16.msra.mxu0 %v4222
    %4276 = vmatpush.bf16.msra.mxu0 %v4221
    %4277 = vmatpush.bf16.msra.mxu0 %v4220
    %4278 = vmatpush.bf16.msra.mxu0 %v4219
    %4279 = vmatpush.bf16.msra.mxu0 %v4218
    %4280 = vmatpush.bf16.msra.mxu0 %v4217
    %4281 = vmatpush.bf16.msra.mxu0 %v4216
    %4282 = vmatpush.bf16.msra.mxu0 %v4215
    %4283 = vmatmul.bf16.gmra.mxu0 %v4083
    %v4284 = vpop.f32.mrf.mxu0
    %v4285 = vadd.f32 0.0, %v4284
    %v4286 = vpop.f32.mrf.mxu0
    %v4287 = vadd.f32 0.0, %v4286
    %4288 = vmatmul.bf16.gmra.mxu0 %v4086
    %v4289 = vpop.f32.mrf.mxu0
    %v4290 = vadd.f32 0.0, %v4289
    %v4291 = vpop.f32.mrf.mxu0
    %v4292 = vadd.f32 0.0, %v4291
    %4293 = vmatmul.bf16.gmra.mxu0 %v4089
    %v4294 = vpop.f32.mrf.mxu0
    %v4295 = vadd.f32 0.0, %v4294
    %v4296 = vpop.f32.mrf.mxu0
    %v4297 = vadd.f32 0.0, %v4296
    %4298 = vmatmul.bf16.gmra.mxu0 %v4092
    %v4299 = vpop.f32.mrf.mxu0
    %v4300 = vadd.f32 0.0, %v4299
    %v4301 = vpop.f32.mrf.mxu0
    %v4302 = vadd.f32 0.0, %v4301
    %4303 = vmatmul.bf16.gmra.mxu0 %v4095
    %v4304 = vpop.f32.mrf.mxu0
    %v4305 = vadd.f32 0.0, %v4304
    %v4306 = vpop.f32.mrf.mxu0
    %v4307 = vadd.f32 0.0, %v4306
    %4308 = vmatmul.bf16.gmra.mxu0 %v4098
    %v4309 = vpop.f32.mrf.mxu0
    %v4310 = vadd.f32 0.0, %v4309
    %v4311 = vpop.f32.mrf.mxu0
    %v4312 = vadd.f32 0.0, %v4311
    %4313 = vmatmul.bf16.gmra.mxu0 %v4101
    %v4314 = vpop.f32.mrf.mxu0
    %v4315 = vadd.f32 0.0, %v4314
    %v4316 = vpop.f32.mrf.mxu0
    %v4317 = vadd.f32 0.0, %v4316
    %4318 = vmatmul.bf16.gmra.mxu0 %v4104
    %v4319 = vpop.f32.mrf.mxu0
    %v4320 = vadd.f32 0.0, %v4319
    %v4321 = vpop.f32.mrf.mxu0
    %v4322 = vadd.f32 0.0, %v4321
    %4323 = vdwg.mxu0
    %4324 = vmatpush.bf16.msra.mxu0 %v4230
    %4325 = vmatpush.bf16.msra.mxu0 %v4229
    %4326 = vmatpush.bf16.msra.mxu0 %v4228
    %4327 = vmatpush.bf16.msra.mxu0 %v4227
    %4328 = vmatpush.bf16.msra.mxu0 %v4226
    %4329 = vmatpush.bf16.msra.mxu0 %v4225
    %4330 = vmatpush.bf16.msra.mxu0 %v4224
    %4331 = vmatpush.bf16.msra.mxu0 %v4223
    %4332 = vmatmul.bf16.gmra.mxu0 %v4084
    %v4333 = vpop.f32.mrf.mxu0
    %v4334 = vadd.f32 %v4285, %v4333
    %v4335 = vpop.f32.mrf.mxu0
    %v4336 = vadd.f32 %v4287, %v4335
    %4337 = vmatmul.bf16.gmra.mxu0 %v4087
    %v4338 = vpop.f32.mrf.mxu0
    %v4339 = vadd.f32 %v4290, %v4338
    %v4340 = vpop.f32.mrf.mxu0
    %v4341 = vadd.f32 %v4292, %v4340
    %4342 = vmatmul.bf16.gmra.mxu0 %v4090
    %v4343 = vpop.f32.mrf.mxu0
    %v4344 = vadd.f32 %v4295, %v4343
    %v4345 = vpop.f32.mrf.mxu0
    %v4346 = vadd.f32 %v4297, %v4345
    %4347 = vmatmul.bf16.gmra.mxu0 %v4093
    %v4348 = vpop.f32.mrf.mxu0
    %v4349 = vadd.f32 %v4300, %v4348
    %v4350 = vpop.f32.mrf.mxu0
    %v4351 = vadd.f32 %v4302, %v4350
    %4352 = vmatmul.bf16.gmra.mxu0 %v4096
    %v4353 = vpop.f32.mrf.mxu0
    %v4354 = vadd.f32 %v4305, %v4353
    %v4355 = vpop.f32.mrf.mxu0
    %v4356 = vadd.f32 %v4307, %v4355
    %4357 = vmatmul.bf16.gmra.mxu0 %v4099
    %v4358 = vpop.f32.mrf.mxu0
    %v4359 = vadd.f32 %v4310, %v4358
    %v4360 = vpop.f32.mrf.mxu0
    %v4361 = vadd.f32 %v4312, %v4360
    %4362 = vmatmul.bf16.gmra.mxu0 %v4102
    %v4363 = vpop.f32.mrf.mxu0
    %v4364 = vadd.f32 %v4315, %v4363
    %v4365 = vpop.f32.mrf.mxu0
    %v4366 = vadd.f32 %v4317, %v4365
    %4367 = vmatmul.bf16.gmra.mxu0 %v4105
    %v4368 = vpop.f32.mrf.mxu0
    %v4369 = vadd.f32 %v4320, %v4368
    %v4370 = vpop.f32.mrf.mxu0
    %v4371 = vadd.f32 %v4322, %v4370
    %4372 = vdwg.mxu0
    %4373 = vmatpush.bf16.msra.mxu0 0
    %4374 = vmatpush.bf16.msra.mxu0 0
    %4375 = vmatpush.bf16.msra.mxu0 0
    %4376 = vmatpush.bf16.msra.mxu0 0
    %4377 = vmatpush.bf16.msra.mxu0 0
    %4378 = vmatpush.bf16.msra.mxu0 0
    %4379 = vmatpush.bf16.msra.mxu0 %v4232
    %4380 = vmatpush.bf16.msra.mxu0 %v4231
    %4381 = vmatmul.bf16.gmra.mxu0 %v4252
    %v4382 = vpop.f32.mrf.mxu0
    %v4383 = vadd.f32 %v4334, %v4382
    %v4384 = vpop.f32.mrf.mxu0
    %v4385 = vadd.f32 %v4336, %v4384
    %4386 = vmatmul.bf16.gmra.mxu0 %v4255
    %v4387 = vpop.f32.mrf.mxu0
    %v4388 = vadd.f32 %v4339, %v4387
    %v4389 = vpop.f32.mrf.mxu0
    %v4390 = vadd.f32 %v4341, %v4389
    %4391 = vmatmul.bf16.gmra.mxu0 %v4258
    %v4392 = vpop.f32.mrf.mxu0
    %v4393 = vadd.f32 %v4344, %v4392
    %v4394 = vpop.f32.mrf.mxu0
    %v4395 = vadd.f32 %v4346, %v4394
    %4396 = vmatmul.bf16.gmra.mxu0 %v4261
    %v4397 = vpop.f32.mrf.mxu0
    %v4398 = vadd.f32 %v4349, %v4397
    %v4399 = vpop.f32.mrf.mxu0
    %v4400 = vadd.f32 %v4351, %v4399
    %4401 = vmatmul.bf16.gmra.mxu0 %v4264
    %v4402 = vpop.f32.mrf.mxu0
    %v4403 = vadd.f32 %v4354, %v4402
    %v4404 = vpop.f32.mrf.mxu0
    %v4405 = vadd.f32 %v4356, %v4404
    %4406 = vmatmul.bf16.gmra.mxu0 %v4267
    %v4407 = vpop.f32.mrf.mxu0
    %v4408 = vadd.f32 %v4359, %v4407
    %v4409 = vpop.f32.mrf.mxu0
    %v4410 = vadd.f32 %v4361, %v4409
    %4411 = vmatmul.bf16.gmra.mxu0 %v4270
    %v4412 = vpop.f32.mrf.mxu0
    %v4413 = vadd.f32 %v4364, %v4412
    %v4414 = vpop.f32.mrf.mxu0
    %v4415 = vadd.f32 %v4366, %v4414
    %4416 = vmatmul.bf16.gmra.mxu0 %v4273
    %v4417 = vpop.f32.mrf.mxu0
    %v4418 = vadd.f32 %v4369, %v4417
    %v4419 = vpop.f32.mrf.mxu0
    %v4420 = vadd.f32 %v4371, %v4419
    %4421 = vdwg.mxu0
    %v4422 = vmax.f32 %v4383, %v4385
    %v4423 = vmax.f32 %v4388, %v4390
    %v4424 = vmax.f32 %v4393, %v4395
    %v4425 = vmax.f32 %v4398, %v4400
    %v4426 = vmax.f32 %v4403, %v4405
    %v4427 = vmax.f32 %v4408, %v4410
    %v4428 = vmax.f32 %v4413, %v4415
    %v4429 = vmax.f32 %v4418, %v4420
    %4430 = vst.msk [vmem:[#allocation5] sm:$0xff] %vm4001, %v4422
    %4431 = vst.msk [vmem:[#allocation5 + $0x8] sm:$0xff] %vm4001, %v4423
    %4432 = vst.msk [vmem:[#allocation5 + $0x10] sm:$0xff] %vm4001, %v4424
    %4433 = vst.msk [vmem:[#allocation5 + $0x18] sm:$0xff] %vm4001, %v4425
    %4434 = vst.msk [vmem:[#allocation5 + $0x20] sm:$0xff] %vm4001, %v4426
    %4435 = vst.msk [vmem:[#allocation5 + $0x28] sm:$0xff] %vm4001, %v4427
    %4436 = vst.msk [vmem:[#allocation5 + $0x30] sm:$0xff] %vm4001, %v4428
    %4437 = vst.msk [vmem:[#allocation5 + $0x38] sm:$0xff] %vm4001, %v4429
    %v4438 = vld [vmem:[#allocation5] ss:$2 sm:$0xf]
    %s4439 = scalar_lea.vmem [#allocation5], 8
    %v4440 = vld [vmem:[%s4439] ss:$2 sm:$0xf]
    %s4441 = scalar_lea.vmem [#allocation5], 16
    %v4442 = vld [vmem:[%s4441] ss:$2 sm:$0xf]
    %s4443 = scalar_lea.vmem [#allocation5], 24
    %v4444 = vld [vmem:[%s4443] ss:$2 sm:$0xf]
    %s4445 = scalar_lea.vmem [#allocation5], 32
    %v4446 = vld [vmem:[%s4445] ss:$2 sm:$0xf]
    %s4447 = scalar_lea.vmem [#allocation5], 40
    %v4448 = vld [vmem:[%s4447] ss:$2 sm:$0xf]
    %s4449 = scalar_lea.vmem [#allocation5], 48
    %v4450 = vld [vmem:[%s4449] ss:$2 sm:$0xf]
    %s4451 = scalar_lea.vmem [#allocation5], 56
    %v4452 = vld [vmem:[%s4451] ss:$2 sm:$0xf]
    %s4453 = scalar_lea.vmem [#allocation5], 1
    %v4454 = vld [vmem:[%s4453] ss:$2 sm:$0xf]
    %s4455 = scalar_lea.vmem [#allocation5], 9
    %v4456 = vld [vmem:[%s4455] ss:$2 sm:$0xf]
    %s4457 = scalar_lea.vmem [#allocation5], 17
    %v4458 = vld [vmem:[%s4457] ss:$2 sm:$0xf]
    %s4459 = scalar_lea.vmem [#allocation5], 25
    %v4460 = vld [vmem:[%s4459] ss:$2 sm:$0xf]
    %s4461 = scalar_lea.vmem [#allocation5], 33
    %v4462 = vld [vmem:[%s4461] ss:$2 sm:$0xf]
    %s4463 = scalar_lea.vmem [#allocation5], 41
    %v4464 = vld [vmem:[%s4463] ss:$2 sm:$0xf]
    %s4465 = scalar_lea.vmem [#allocation5], 49
    %v4466 = vld [vmem:[%s4465] ss:$2 sm:$0xf]
    %s4467 = scalar_lea.vmem [#allocation5], 57
    %v4468 = vld [vmem:[%s4467] ss:$2 sm:$0xf]
    %v4469 = vmax.f32 %v4438, %v4454
    %v4470 = vmax.f32 %v4440, %v4456
    %v4471 = vmax.f32 %v4442, %v4458
    %v4472 = vmax.f32 %v4444, %v4460
    %v4473 = vmax.f32 %v4446, %v4462
    %v4474 = vmax.f32 %v4448, %v4464
    %v4475 = vmax.f32 %v4450, %v4466
    %v4476 = vmax.f32 %v4452, %v4468
    %v4477 = vld [vmem:[%s4] sm:$0x1]
    %v4479 = vperm.slane %v4477, 0
    %v4481 = vadd.f32 %v4469, %v4479
    %v4482 = vadd.f32 %v4470, %v4479
    %v4483 = vadd.f32 %v4471, %v4479
    %v4484 = vadd.f32 %v4472, %v4479
    %v4485 = vadd.f32 %v4473, %v4479
    %v4486 = vadd.f32 %v4474, %v4479
    %v4487 = vadd.f32 %v4475, %v4479
    %v4488 = vadd.f32 %v4476, %v4479
    %v4489 = vmax.f32 %v4481, 0.0
    %v4490 = vmax.f32 %v4482, 0.0
    %v4491 = vmax.f32 %v4483, 0.0
    %v4492 = vmax.f32 %v4484, 0.0
    %v4493 = vmax.f32 %v4485, 0.0
    %v4494 = vmax.f32 %v4486, 0.0
    %v4495 = vmax.f32 %v4487, 0.0
    %v4496 = vmax.f32 %v4488, 0.0
    %v4499 = vrot.slane %v4493, 7
    %vm4500 = vcmask 1041409
    %v4501 = vsel %vm4500, %v4499, %v4489
    %v4503 = vrot.slane %v4489, 1
    %v4504 = vsel %vm4500, %v4493, %v4503
    %4505 = vrot.lane.b32.xlu0 %v4504, 64
    %v4506 = vpop.permute.xlu0 %4505
    %v4508 = vrot.slane %v4489, 2
    %v4509 = vrot.slane %v4493, 1
    %v4510 = vsel %vm4500, %v4509, %v4508
    %v4512 = vrot.slane %v4489, 3
    %v4513 = vrot.slane %v4493, 2
    %v4514 = vsel %vm4500, %v4513, %v4512
    %4515 = vrot.lane.b32.xlu0 %v4514, 64
    %v4516 = vpop.permute.xlu0 %4515
    %v4520 = vrot.slane %v4494, 7
    %v4521 = vsel %vm4500, %v4520, %v4490
    %v4523 = vrot.slane %v4490, 1
    %v4524 = vsel %vm4500, %v4494, %v4523
    %4525 = vrot.lane.b32.xlu0 %v4524, 64
    %v4526 = vpop.permute.xlu0 %4525
    %v4528 = vrot.slane %v4490, 2
    %v4529 = vrot.slane %v4494, 1
    %v4530 = vsel %vm4500, %v4529, %v4528
    %v4532 = vrot.slane %v4490, 3
    %v4533 = vrot.slane %v4494, 2
    %v4534 = vsel %vm4500, %v4533, %v4532
    %4535 = vrot.lane.b32.xlu0 %v4534, 64
    %v4536 = vpop.permute.xlu0 %4535
    %v4540 = vrot.slane %v4495, 7
    %v4541 = vsel %vm4500, %v4540, %v4491
    %v4543 = vrot.slane %v4491, 1
    %v4544 = vsel %vm4500, %v4495, %v4543
    %4545 = vrot.lane.b32.xlu0 %v4544, 64
    %v4546 = vpop.permute.xlu0 %4545
    %v4548 = vrot.slane %v4491, 2
    %v4549 = vrot.slane %v4495, 1
    %v4550 = vsel %vm4500, %v4549, %v4548
    %v4552 = vrot.slane %v4491, 3
    %v4553 = vrot.slane %v4495, 2
    %v4554 = vsel %vm4500, %v4553, %v4552
    %4555 = vrot.lane.b32.xlu0 %v4554, 64
    %v4556 = vpop.permute.xlu0 %4555
    %v4560 = vrot.slane %v4496, 7
    %v4561 = vsel %vm4500, %v4560, %v4492
    %v4563 = vrot.slane %v4492, 1
    %v4564 = vsel %vm4500, %v4496, %v4563
    %4565 = vrot.lane.b32.xlu0 %v4564, 64
    %v4566 = vpop.permute.xlu0 %4565
    %v4568 = vrot.slane %v4492, 2
    %v4569 = vrot.slane %v4496, 1
    %v4570 = vsel %vm4500, %v4569, %v4568
    %v4572 = vrot.slane %v4492, 3
    %v4573 = vrot.slane %v4496, 2
    %v4574 = vsel %vm4500, %v4573, %v4572
    %4575 = vrot.lane.b32.xlu0 %v4574, 64
    %v4576 = vpop.permute.xlu0 %4575
    %v4578 = vsel %vm4001, %v4501, %v4506
    %v4579 = vsel %vm4001, %v4510, %v4516
    %v4580 = vsel %vm4001, %v4521, %v4526
    %v4581 = vsel %vm4001, %v4530, %v4536
    %v4582 = vsel %vm4001, %v4541, %v4546
    %v4583 = vsel %vm4001, %v4550, %v4556
    %v4584 = vsel %vm4001, %v4561, %v4566
    %v4585 = vsel %vm4001, %v4570, %v4576
    %v4586 = vpack.c.bf16 %v4578, %v4578
    %v4587 = vpack.c.bf16 %v4579, %v4579
    %v4588 = vpack.c.bf16 %v4580, %v4580
    %v4589 = vpack.c.bf16 %v4581, %v4581
    %v4590 = vpack.c.bf16 %v4582, %v4582
    %v4591 = vpack.c.bf16 %v4583, %v4583
    %v4592 = vpack.c.bf16 %v4584, %v4584
    %v4593 = vpack.c.bf16 %v4585, %v4585
    %v4594 = vld [vmem:[%s5] sm:$0xf]
    %v4595 = vld [vmem:[%s5 + $0x4] sm:$0xf]
    %v4596 = vld [vmem:[%s5 + $0x8] sm:$0xf]
    %v4597 = vld [vmem:[%s5 + $0xc] sm:$0xf]
    %v4598 = vld [vmem:[%s5 + $0x10] sm:$0xf]
    %v4599 = vld [vmem:[%s5 + $0x14] sm:$0xf]
    %v4600 = vld [vmem:[%s5 + $0x18] sm:$0xf]
    %v4601 = vld [vmem:[%s5 + $0x1c] sm:$0xf]
    %v4602 = vld [vmem:[%s5 + $0x20] sm:$0xf]
    %v4603 = vld [vmem:[%s5 + $0x24] sm:$0xf]
    %v4604 = vld [vmem:[%s5 + $0x28] sm:$0xf]
    %v4605 = vld [vmem:[%s5 + $0x2c] sm:$0xf]
    %v4606 = vld [vmem:[%s5 + $0x30] sm:$0xf]
    %v4607 = vld [vmem:[%s5 + $0x34] sm:$0xf]
    %v4608 = vld [vmem:[%s5 + $0x38] sm:$0xf]
    %v4609 = vld [vmem:[%s5 + $0x3c] sm:$0xf]
    %v4610 = vld [vmem:[%s5 + $0x40] sm:$0xf]
    %v4611 = vld [vmem:[%s5 + $0x44] sm:$0xf]
    %v4612 = vld [vmem:[%s5 + $0x48] sm:$0xf]
    %v4613 = vld [vmem:[%s5 + $0x4c] sm:$0xf]
    %v4614 = vld [vmem:[%s5 + $0x50] sm:$0xf]
    %v4615 = vld [vmem:[%s5 + $0x54] sm:$0xf]
    %v4616 = vld [vmem:[%s5 + $0x58] sm:$0xf]
    %v4617 = vld [vmem:[%s5 + $0x5c] sm:$0xf]
    %v4618 = vld [vmem:[%s5 + $0x60] sm:$0xf]
    %v4619 = vld [vmem:[%s5 + $0x64] sm:$0xf]
    %v4620 = vld [vmem:[%s5 + $0x68] sm:$0xf]
    %v4621 = vld [vmem:[%s5 + $0x6c] sm:$0xf]
    %v4622 = vld [vmem:[%s5 + $0x70] sm:$0xf]
    %v4623 = vld [vmem:[%s5 + $0x74] sm:$0xf]
    %v4624 = vld [vmem:[%s5 + $0x78] sm:$0xf]
    %v4625 = vld [vmem:[%s5 + $0x7c] sm:$0xf]
    %v4626 = vld [vmem:[%s5 + $0x80] sm:$0xf]
    %v4627 = vld [vmem:[%s5 + $0x84] sm:$0xf]
    %v4628 = vld [vmem:[%s5 + $0x88] sm:$0xf]
    %v4629 = vld [vmem:[%s5 + $0x8c] sm:$0xf]
    %v4630 = vld [vmem:[%s5 + $0x90] sm:$0xf]
    %v4631 = vld [vmem:[%s5 + $0x94] sm:$0xf]
    %v4632 = vld [vmem:[%s5 + $0x98] sm:$0xf]
    %v4633 = vld [vmem:[%s5 + $0x9c] sm:$0xf]
    %v4634 = vld [vmem:[%s5 + $0xa0] sm:$0xf]
    %v4635 = vld [vmem:[%s5 + $0xa4] sm:$0xf]
    %v4636 = vld [vmem:[%s5 + $0xa8] sm:$0xf]
    %v4637 = vld [vmem:[%s5 + $0xac] sm:$0xf]
    %v4638 = vld [vmem:[%s5 + $0xb0] sm:$0xf]
    %v4639 = vld [vmem:[%s5 + $0xb4] sm:$0xf]
    %v4640 = vld [vmem:[%s5 + $0xb8] sm:$0xf]
    %v4641 = vld [vmem:[%s5 + $0xbc] sm:$0xf]
    %v4642 = vld [vmem:[%s5 + $0xc0] sm:$0xf]
    %v4643 = vld [vmem:[%s5 + $0xc4] sm:$0xf]
    %v4644 = vld [vmem:[%s5 + $0xc8] sm:$0xf]
    %v4645 = vld [vmem:[%s5 + $0xcc] sm:$0xf]
    %v4646 = vld [vmem:[%s5 + $0xd0] sm:$0xf]
    %v4647 = vld [vmem:[%s5 + $0xd4] sm:$0xf]
    %v4648 = vld [vmem:[%s5 + $0xd8] sm:$0xf]
    %v4649 = vld [vmem:[%s5 + $0xdc] sm:$0xf]
    %v4650 = vld [vmem:[%s5 + $0xe0] sm:$0xf]
    %v4651 = vld [vmem:[%s5 + $0xe4] sm:$0xf]
    %v4652 = vld [vmem:[%s5 + $0xe8] sm:$0xf]
    %v4653 = vld [vmem:[%s5 + $0xec] sm:$0xf]
    %v4654 = vld [vmem:[%s5 + $0xf0] sm:$0xf]
    %v4655 = vld [vmem:[%s5 + $0xf4] sm:$0xf]
    %v4656 = vld [vmem:[%s5 + $0xf8] sm:$0xf]
    %v4657 = vld [vmem:[%s5 + $0xfc] sm:$0xf]
    %v4658 = vld [vmem:[%s5 + $0x100] sm:$0xf]
    %v4659 = vld [vmem:[%s5 + $0x104] sm:$0xf]
    %v4660 = vld [vmem:[%s5 + $0x108] sm:$0xf]
    %v4661 = vld [vmem:[%s5 + $0x10c] sm:$0xf]
    %v4662 = vld [vmem:[%s5 + $0x110] sm:$0xf]
    %v4663 = vld [vmem:[%s5 + $0x114] sm:$0xf]
    %v4664 = vld [vmem:[%s5 + $0x118] sm:$0xf]
    %v4665 = vld [vmem:[%s5 + $0x11c] sm:$0xf]
    %v4666 = vld [vmem:[%s5 + $0x120] sm:$0xf]
    %v4667 = vld [vmem:[%s5 + $0x124] sm:$0xf]
    %v4668 = vld [vmem:[%s5 + $0x128] sm:$0xf]
    %v4669 = vld [vmem:[%s5 + $0x12c] sm:$0xf]
    %v4670 = vld [vmem:[%s5 + $0x130] sm:$0xf]
    %v4671 = vld [vmem:[%s5 + $0x134] sm:$0xf]
    %v4672 = vld [vmem:[%s5 + $0x138] sm:$0xf]
    %v4673 = vld [vmem:[%s5 + $0x13c] sm:$0xf]
    %v4674 = vld [vmem:[%s5 + $0x140] sm:$0xf]
    %v4675 = vld [vmem:[%s5 + $0x144] sm:$0xf]
    %v4676 = vld [vmem:[%s5 + $0x148] sm:$0xf]
    %v4677 = vld [vmem:[%s5 + $0x14c] sm:$0xf]
    %v4678 = vld [vmem:[%s5 + $0x150] sm:$0xf]
    %v4679 = vld [vmem:[%s5 + $0x154] sm:$0xf]
    %v4680 = vld [vmem:[%s5 + $0x158] sm:$0xf]
    %v4681 = vld [vmem:[%s5 + $0x15c] sm:$0xf]
    %v4682 = vld [vmem:[%s5 + $0x160] sm:$0xf]
    %v4683 = vld [vmem:[%s5 + $0x164] sm:$0xf]
    %v4684 = vld [vmem:[%s5 + $0x168] sm:$0xf]
    %v4685 = vld [vmem:[%s5 + $0x16c] sm:$0xf]
    %v4686 = vld [vmem:[%s5 + $0x170] sm:$0xf]
    %v4687 = vld [vmem:[%s5 + $0x174] sm:$0xf]
    %v4688 = vld [vmem:[%s5 + $0x178] sm:$0xf]
    %v4689 = vld [vmem:[%s5 + $0x17c] sm:$0xf]
    %v4690 = vld [vmem:[%s5 + $0x180] sm:$0xf]
    %v4691 = vld [vmem:[%s5 + $0x184] sm:$0xf]
    %v4692 = vld [vmem:[%s5 + $0x188] sm:$0xf]
    %v4693 = vld [vmem:[%s5 + $0x18c] sm:$0xf]
    %v4694 = vld [vmem:[%s5 + $0x190] sm:$0xf]
    %v4695 = vld [vmem:[%s5 + $0x194] sm:$0xf]
    %v4696 = vld [vmem:[%s5 + $0x198] sm:$0xf]
    %v4697 = vld [vmem:[%s5 + $0x19c] sm:$0xf]
    %v4698 = vld [vmem:[%s5 + $0x1a0] sm:$0xf]
    %v4699 = vld [vmem:[%s5 + $0x1a4] sm:$0xf]
    %v4700 = vld [vmem:[%s5 + $0x1a8] sm:$0xf]
    %v4701 = vld [vmem:[%s5 + $0x1ac] sm:$0xf]
    %v4702 = vld [vmem:[%s5 + $0x1b0] sm:$0xf]
    %v4703 = vld [vmem:[%s5 + $0x1b4] sm:$0xf]
    %v4704 = vld [vmem:[%s5 + $0x1b8] sm:$0xf]
    %v4705 = vld [vmem:[%s5 + $0x1bc] sm:$0xf]
    %v4706 = vld [vmem:[%s5 + $0x1c0] sm:$0xf]
    %v4707 = vld [vmem:[%s5 + $0x1c4] sm:$0xf]
    %v4708 = vld [vmem:[%s5 + $0x1c8] sm:$0xf]
    %v4709 = vld [vmem:[%s5 + $0x1cc] sm:$0xf]
    %v4710 = vld [vmem:[%s5 + $0x1d0] sm:$0xf]
    %v4711 = vld [vmem:[%s5 + $0x1d4] sm:$0xf]
    %v4712 = vld [vmem:[%s5 + $0x1d8] sm:$0xf]
    %v4713 = vld [vmem:[%s5 + $0x1dc] sm:$0xf]
    %v4714 = vld [vmem:[%s5 + $0x1e0] sm:$0xf]
    %v4715 = vld [vmem:[%s5 + $0x1e4] sm:$0xf]
    %v4716 = vld [vmem:[%s5 + $0x1e8] sm:$0xf]
    %v4717 = vld [vmem:[%s5 + $0x1ec] sm:$0xf]
    %v4718 = vld [vmem:[%s5 + $0x1f0] sm:$0xf]
    %v4719 = vld [vmem:[%s5 + $0x1f4] sm:$0xf]
    %v4720 = vld [vmem:[%s5 + $0x1f8] sm:$0xf]
    %v4721 = vld [vmem:[%s5 + $0x1fc] sm:$0xf]
    %v4722 = vld [vmem:[%s6] sm:$0x1]
    %v4724 = vperm.slane %v4722, 0
    %v4854 = vunpack.c.l.b16 %v4594
    %v4855 = vunpack.c.l.b16 %v4595
    %v4856 = vunpack.c.l.b16 %v4596
    %v4857 = vunpack.c.l.b16 %v4597
    %v4858 = vunpack.c.l.b16 %v4598
    %v4859 = vunpack.c.l.b16 %v4599
    %v4860 = vunpack.c.l.b16 %v4600
    %v4861 = vunpack.c.l.b16 %v4601
    %v4862 = vunpack.c.l.b16 %v4602
    %v4863 = vunpack.c.l.b16 %v4603
    %v4864 = vunpack.c.l.b16 %v4604
    %v4865 = vunpack.c.l.b16 %v4605
    %v4866 = vunpack.c.l.b16 %v4606
    %v4867 = vunpack.c.l.b16 %v4607
    %v4868 = vunpack.c.l.b16 %v4608
    %v4869 = vunpack.c.l.b16 %v4609
    %v4870 = vunpack.c.l.b16 %v4610
    %v4871 = vunpack.c.l.b16 %v4611
    %v4872 = vunpack.c.l.b16 %v4612
    %v4873 = vunpack.c.l.b16 %v4613
    %v4874 = vunpack.c.l.b16 %v4614
    %v4875 = vunpack.c.l.b16 %v4615
    %v4876 = vunpack.c.l.b16 %v4616
    %v4877 = vunpack.c.l.b16 %v4617
    %v4878 = vunpack.c.l.b16 %v4618
    %v4879 = vunpack.c.l.b16 %v4619
    %v4880 = vunpack.c.l.b16 %v4620
    %v4881 = vunpack.c.l.b16 %v4621
    %v4882 = vunpack.c.l.b16 %v4622
    %v4883 = vunpack.c.l.b16 %v4623
    %v4884 = vunpack.c.l.b16 %v4624
    %v4885 = vunpack.c.l.b16 %v4625
    %v4886 = vunpack.c.l.b16 %v4626
    %v4887 = vunpack.c.l.b16 %v4627
    %v4888 = vunpack.c.l.b16 %v4628
    %v4889 = vunpack.c.l.b16 %v4629
    %v4890 = vunpack.c.l.b16 %v4630
    %v4891 = vunpack.c.l.b16 %v4631
    %v4892 = vunpack.c.l.b16 %v4632
    %v4893 = vunpack.c.l.b16 %v4633
    %v4894 = vunpack.c.l.b16 %v4634
    %v4895 = vunpack.c.l.b16 %v4635
    %v4896 = vunpack.c.l.b16 %v4636
    %v4897 = vunpack.c.l.b16 %v4637
    %v4898 = vunpack.c.l.b16 %v4638
    %v4899 = vunpack.c.l.b16 %v4639
    %v4900 = vunpack.c.l.b16 %v4640
    %v4901 = vunpack.c.l.b16 %v4641
    %v4902 = vunpack.c.l.b16 %v4642
    %v4903 = vunpack.c.l.b16 %v4643
    %v4904 = vunpack.c.l.b16 %v4644
    %v4905 = vunpack.c.l.b16 %v4645
    %v4906 = vunpack.c.l.b16 %v4646
    %v4907 = vunpack.c.l.b16 %v4647
    %v4908 = vunpack.c.l.b16 %v4648
    %v4909 = vunpack.c.l.b16 %v4649
    %v4910 = vunpack.c.l.b16 %v4650
    %v4911 = vunpack.c.l.b16 %v4651
    %v4912 = vunpack.c.l.b16 %v4652
    %v4913 = vunpack.c.l.b16 %v4653
    %v4914 = vunpack.c.l.b16 %v4654
    %v4915 = vunpack.c.l.b16 %v4655
    %v4916 = vunpack.c.l.b16 %v4656
    %v4917 = vunpack.c.l.b16 %v4657
    %v4918 = vunpack.c.l.b16 %v4658
    %v4919 = vunpack.c.l.b16 %v4659
    %v4920 = vunpack.c.l.b16 %v4660
    %v4921 = vunpack.c.l.b16 %v4661
    %v4922 = vunpack.c.l.b16 %v4662
    %v4923 = vunpack.c.l.b16 %v4663
    %v4924 = vunpack.c.l.b16 %v4664
    %v4925 = vunpack.c.l.b16 %v4665
    %v4926 = vunpack.c.l.b16 %v4666
    %v4927 = vunpack.c.l.b16 %v4667
    %v4928 = vunpack.c.l.b16 %v4668
    %v4929 = vunpack.c.l.b16 %v4669
    %v4930 = vunpack.c.l.b16 %v4670
    %v4931 = vunpack.c.l.b16 %v4671
    %v4932 = vunpack.c.l.b16 %v4672
    %v4933 = vunpack.c.l.b16 %v4673
    %v4934 = vunpack.c.l.b16 %v4674
    %v4935 = vunpack.c.l.b16 %v4675
    %v4936 = vunpack.c.l.b16 %v4676
    %v4937 = vunpack.c.l.b16 %v4677
    %v4938 = vunpack.c.l.b16 %v4678
    %v4939 = vunpack.c.l.b16 %v4679
    %v4940 = vunpack.c.l.b16 %v4680
    %v4941 = vunpack.c.l.b16 %v4681
    %v4942 = vunpack.c.l.b16 %v4682
    %v4943 = vunpack.c.l.b16 %v4683
    %v4944 = vunpack.c.l.b16 %v4684
    %v4945 = vunpack.c.l.b16 %v4685
    %v4946 = vunpack.c.l.b16 %v4686
    %v4947 = vunpack.c.l.b16 %v4687
    %v4948 = vunpack.c.l.b16 %v4688
    %v4949 = vunpack.c.l.b16 %v4689
    %v4950 = vunpack.c.l.b16 %v4690
    %v4951 = vunpack.c.l.b16 %v4691
    %v4952 = vunpack.c.l.b16 %v4692
    %v4953 = vunpack.c.l.b16 %v4693
    %v4954 = vunpack.c.l.b16 %v4694
    %v4955 = vunpack.c.l.b16 %v4695
    %v4956 = vunpack.c.l.b16 %v4696
    %v4957 = vunpack.c.l.b16 %v4697
    %v4958 = vunpack.c.l.b16 %v4698
    %v4959 = vunpack.c.l.b16 %v4699
    %v4960 = vunpack.c.l.b16 %v4700
    %v4961 = vunpack.c.l.b16 %v4701
    %v4962 = vunpack.c.l.b16 %v4702
    %v4963 = vunpack.c.l.b16 %v4703
    %v4964 = vunpack.c.l.b16 %v4704
    %v4965 = vunpack.c.l.b16 %v4705
    %v4966 = vunpack.c.l.b16 %v4706
    %v4967 = vunpack.c.l.b16 %v4707
    %v4968 = vunpack.c.l.b16 %v4708
    %v4969 = vunpack.c.l.b16 %v4709
    %v4970 = vunpack.c.l.b16 %v4710
    %v4971 = vunpack.c.l.b16 %v4711
    %v4972 = vunpack.c.l.b16 %v4712
    %v4973 = vunpack.c.l.b16 %v4713
    %v4974 = vunpack.c.l.b16 %v4714
    %v4975 = vunpack.c.l.b16 %v4715
    %v4976 = vunpack.c.l.b16 %v4716
    %v4977 = vunpack.c.l.b16 %v4717
    %v4978 = vunpack.c.l.b16 %v4718
    %v4979 = vunpack.c.l.b16 %v4719
    %v4980 = vunpack.c.l.b16 %v4720
    %v4981 = vunpack.c.l.b16 %v4721
    %v4982 = vpack.c.b16 %v4855, %v4854
    %v4983 = vpack.c.b16 %v4857, %v4856
    %v4984 = vpack.c.b16 %v4859, %v4858
    %v4985 = vpack.c.b16 %v4861, %v4860
    %v4986 = vpack.c.b16 %v4863, %v4862
    %v4987 = vpack.c.b16 %v4865, %v4864
    %v4988 = vpack.c.b16 %v4867, %v4866
    %v4989 = vpack.c.b16 %v4869, %v4868
    %v4990 = vpack.c.b16 %v4871, %v4870
    %v4991 = vpack.c.b16 %v4873, %v4872
    %v4992 = vpack.c.b16 %v4875, %v4874
    %v4993 = vpack.c.b16 %v4877, %v4876
    %v4994 = vpack.c.b16 %v4879, %v4878
    %v4995 = vpack.c.b16 %v4881, %v4880
    %v4996 = vpack.c.b16 %v4883, %v4882
    %v4997 = vpack.c.b16 %v4885, %v4884
    %v4998 = vpack.c.b16 %v4887, %v4886
    %v4999 = vpack.c.b16 %v4889, %v4888
    %v5000 = vpack.c.b16 %v4891, %v4890
    %v5001 = vpack.c.b16 %v4893, %v4892
    %v5002 = vpack.c.b16 %v4895, %v4894
    %v5003 = vpack.c.b16 %v4897, %v4896
    %v5004 = vpack.c.b16 %v4899, %v4898
    %v5005 = vpack.c.b16 %v4901, %v4900
    %v5006 = vpack.c.b16 %v4903, %v4902
    %v5007 = vpack.c.b16 %v4905, %v4904
    %v5008 = vpack.c.b16 %v4907, %v4906
    %v5009 = vpack.c.b16 %v4909, %v4908
    %v5010 = vpack.c.b16 %v4911, %v4910
    %v5011 = vpack.c.b16 %v4913, %v4912
    %v5012 = vpack.c.b16 %v4915, %v4914
    %v5013 = vpack.c.b16 %v4917, %v4916
    %v5014 = vpack.c.b16 %v4919, %v4918
    %v5015 = vpack.c.b16 %v4921, %v4920
    %v5016 = vpack.c.b16 %v4923, %v4922
    %v5017 = vpack.c.b16 %v4925, %v4924
    %v5018 = vpack.c.b16 %v4927, %v4926
    %v5019 = vpack.c.b16 %v4929, %v4928
    %v5020 = vpack.c.b16 %v4931, %v4930
    %v5021 = vpack.c.b16 %v4933, %v4932
    %v5022 = vpack.c.b16 %v4935, %v4934
    %v5023 = vpack.c.b16 %v4937, %v4936
    %v5024 = vpack.c.b16 %v4939, %v4938
    %v5025 = vpack.c.b16 %v4941, %v4940
    %v5026 = vpack.c.b16 %v4943, %v4942
    %v5027 = vpack.c.b16 %v4945, %v4944
    %v5028 = vpack.c.b16 %v4947, %v4946
    %v5029 = vpack.c.b16 %v4949, %v4948
    %v5030 = vpack.c.b16 %v4951, %v4950
    %v5031 = vpack.c.b16 %v4953, %v4952
    %v5032 = vpack.c.b16 %v4955, %v4954
    %v5033 = vpack.c.b16 %v4957, %v4956
    %v5034 = vpack.c.b16 %v4959, %v4958
    %v5035 = vpack.c.b16 %v4961, %v4960
    %v5036 = vpack.c.b16 %v4963, %v4962
    %v5037 = vpack.c.b16 %v4965, %v4964
    %v5038 = vpack.c.b16 %v4967, %v4966
    %v5039 = vpack.c.b16 %v4969, %v4968
    %v5040 = vpack.c.b16 %v4971, %v4970
    %v5041 = vpack.c.b16 %v4973, %v4972
    %v5042 = vpack.c.b16 %v4975, %v4974
    %v5043 = vpack.c.b16 %v4977, %v4976
    %v5044 = vpack.c.b16 %v4979, %v4978
    %v5045 = vpack.c.b16 %v4981, %v4980
    %5110 = vmatpush.bf16.msra.mxu0 %v4989
    %5111 = vmatpush.bf16.msra.mxu0 %v4988
    %5112 = vmatpush.bf16.msra.mxu0 %v4987
    %5113 = vmatpush.bf16.msra.mxu0 %v4986
    %5114 = vmatpush.bf16.msra.mxu0 %v4985
    %5115 = vmatpush.bf16.msra.mxu0 %v4984
    %5116 = vmatpush.bf16.msra.mxu0 %v4983
    %5117 = vmatpush.bf16.msra.mxu0 %v4982
    %5118 = vmatmul.bf16.gmra.mxu0 %v4586
    %v5119 = vpop.f32.mrf.mxu0
    %v5120 = vadd.f32 %v4724, %v5119
    %v5121 = vpop.f32.mrf.mxu0
    %5122 = vdwg.mxu0
    %5123 = vmatpush.bf16.msra.mxu0 %v4997
    %5124 = vmatpush.bf16.msra.mxu0 %v4996
    %5125 = vmatpush.bf16.msra.mxu0 %v4995
    %5126 = vmatpush.bf16.msra.mxu0 %v4994
    %5127 = vmatpush.bf16.msra.mxu0 %v4993
    %5128 = vmatpush.bf16.msra.mxu0 %v4992
    %5129 = vmatpush.bf16.msra.mxu0 %v4991
    %5130 = vmatpush.bf16.msra.mxu0 %v4990
    %5131 = vmatmul.bf16.gmra.mxu0 %v4587
    %v5132 = vpop.f32.mrf.mxu0
    %v5133 = vadd.f32 %v5120, %v5132
    %v5134 = vpop.f32.mrf.mxu0
    %5135 = vdwg.mxu0
    %5136 = vmatpush.bf16.msra.mxu0 %v5005
    %5137 = vmatpush.bf16.msra.mxu0 %v5004
    %5138 = vmatpush.bf16.msra.mxu0 %v5003
    %5139 = vmatpush.bf16.msra.mxu0 %v5002
    %5140 = vmatpush.bf16.msra.mxu0 %v5001
    %5141 = vmatpush.bf16.msra.mxu0 %v5000
    %5142 = vmatpush.bf16.msra.mxu0 %v4999
    %5143 = vmatpush.bf16.msra.mxu0 %v4998
    %5144 = vmatmul.bf16.gmra.mxu0 %v4588
    %v5145 = vpop.f32.mrf.mxu0
    %v5146 = vadd.f32 %v5133, %v5145
    %v5147 = vpop.f32.mrf.mxu0
    %5148 = vdwg.mxu0
    %5149 = vmatpush.bf16.msra.mxu0 %v5013
    %5150 = vmatpush.bf16.msra.mxu0 %v5012
    %5151 = vmatpush.bf16.msra.mxu0 %v5011
    %5152 = vmatpush.bf16.msra.mxu0 %v5010
    %5153 = vmatpush.bf16.msra.mxu0 %v5009
    %5154 = vmatpush.bf16.msra.mxu0 %v5008
    %5155 = vmatpush.bf16.msra.mxu0 %v5007
    %5156 = vmatpush.bf16.msra.mxu0 %v5006
    %5157 = vmatmul.bf16.gmra.mxu0 %v4589
    %v5158 = vpop.f32.mrf.mxu0
    %v5159 = vadd.f32 %v5146, %v5158
    %v5160 = vpop.f32.mrf.mxu0
    %5161 = vdwg.mxu0
    %5162 = vmatpush.bf16.msra.mxu0 %v5021
    %5163 = vmatpush.bf16.msra.mxu0 %v5020
    %5164 = vmatpush.bf16.msra.mxu0 %v5019
    %5165 = vmatpush.bf16.msra.mxu0 %v5018
    %5166 = vmatpush.bf16.msra.mxu0 %v5017
    %5167 = vmatpush.bf16.msra.mxu0 %v5016
    %5168 = vmatpush.bf16.msra.mxu0 %v5015
    %5169 = vmatpush.bf16.msra.mxu0 %v5014
    %5170 = vmatmul.bf16.gmra.mxu0 %v4590
    %v5171 = vpop.f32.mrf.mxu0
    %v5172 = vadd.f32 %v5159, %v5171
    %v5173 = vpop.f32.mrf.mxu0
    %5174 = vdwg.mxu0
    %5175 = vmatpush.bf16.msra.mxu0 %v5029
    %5176 = vmatpush.bf16.msra.mxu0 %v5028
    %5177 = vmatpush.bf16.msra.mxu0 %v5027
    %5178 = vmatpush.bf16.msra.mxu0 %v5026
    %5179 = vmatpush.bf16.msra.mxu0 %v5025
    %5180 = vmatpush.bf16.msra.mxu0 %v5024
    %5181 = vmatpush.bf16.msra.mxu0 %v5023
    %5182 = vmatpush.bf16.msra.mxu0 %v5022
    %5183 = vmatmul.bf16.gmra.mxu0 %v4591
    %v5184 = vpop.f32.mrf.mxu0
    %v5185 = vadd.f32 %v5172, %v5184
    %v5186 = vpop.f32.mrf.mxu0
    %5187 = vdwg.mxu0
    %5188 = vmatpush.bf16.msra.mxu0 %v5037
    %5189 = vmatpush.bf16.msra.mxu0 %v5036
    %5190 = vmatpush.bf16.msra.mxu0 %v5035
    %5191 = vmatpush.bf16.msra.mxu0 %v5034
    %5192 = vmatpush.bf16.msra.mxu0 %v5033
    %5193 = vmatpush.bf16.msra.mxu0 %v5032
    %5194 = vmatpush.bf16.msra.mxu0 %v5031
    %5195 = vmatpush.bf16.msra.mxu0 %v5030
    %5196 = vmatmul.bf16.gmra.mxu0 %v4592
    %v5197 = vpop.f32.mrf.mxu0
    %v5198 = vadd.f32 %v5185, %v5197
    %v5199 = vpop.f32.mrf.mxu0
    %5200 = vdwg.mxu0
    %5201 = vmatpush.bf16.msra.mxu0 %v5045
    %5202 = vmatpush.bf16.msra.mxu0 %v5044
    %5203 = vmatpush.bf16.msra.mxu0 %v5043
    %5204 = vmatpush.bf16.msra.mxu0 %v5042
    %5205 = vmatpush.bf16.msra.mxu0 %v5041
    %5206 = vmatpush.bf16.msra.mxu0 %v5040
    %5207 = vmatpush.bf16.msra.mxu0 %v5039
    %5208 = vmatpush.bf16.msra.mxu0 %v5038
    %5209 = vmatmul.bf16.gmra.mxu0 %v4593
    %v5210 = vpop.f32.mrf.mxu0
    %v5211 = vadd.f32 %v5198, %v5210
    %v5212 = vpop.f32.mrf.mxu0
    %5213 = vdwg.mxu0
    %v5214 = vmax.f32 %v5211, 0.0
    %v5215 = vpack.c.bf16 %v5214, %v5214
    %v5216 = vld [vmem:[%s7] sm:$0xf]
    %v5217 = vld [vmem:[%s7 + $0x4] sm:$0xf]
    %v5218 = vld [vmem:[%s7 + $0x8] sm:$0xf]
    %v5219 = vld [vmem:[%s7 + $0xc] sm:$0xf]
    %v5220 = vld [vmem:[%s7 + $0x10] sm:$0xf]
    %v5221 = vld [vmem:[%s7 + $0x14] sm:$0xf]
    %v5222 = vld [vmem:[%s7 + $0x18] sm:$0xf]
    %v5223 = vld [vmem:[%s7 + $0x1c] sm:$0xf]
    %v5224 = vld [vmem:[%s7 + $0x20] sm:$0xf]
    %v5225 = vld [vmem:[%s7 + $0x24] sm:$0xf]
    %v5226 = vld [vmem:[%s7 + $0x28] sm:$0xf]
    %v5227 = vld [vmem:[%s7 + $0x2c] sm:$0xf]
    %v5228 = vld [vmem:[%s7 + $0x30] sm:$0xf]
    %v5229 = vld [vmem:[%s7 + $0x34] sm:$0xf]
    %v5230 = vld [vmem:[%s7 + $0x38] sm:$0xf]
    %v5231 = vld [vmem:[%s7 + $0x3c] sm:$0xf]
    %v5232 = vld [vmem:[%s8] sm:$0x1]
    %v5234 = vperm.slane %v5232, 0
    %v5252 = vunpack.c.l.b16 %v5216
    %v5253 = vunpack.c.l.b16 %v5217
    %v5254 = vunpack.c.l.b16 %v5218
    %v5255 = vunpack.c.l.b16 %v5219
    %v5256 = vunpack.c.l.b16 %v5220
    %v5257 = vunpack.c.l.b16 %v5221
    %v5258 = vunpack.c.l.b16 %v5222
    %v5259 = vunpack.c.l.b16 %v5223
    %v5260 = vunpack.c.l.b16 %v5224
    %v5261 = vunpack.c.l.b16 %v5225
    %v5262 = vunpack.c.l.b16 %v5226
    %v5263 = vunpack.c.l.b16 %v5227
    %v5264 = vunpack.c.l.b16 %v5228
    %v5265 = vunpack.c.l.b16 %v5229
    %v5266 = vunpack.c.l.b16 %v5230
    %v5267 = vunpack.c.l.b16 %v5231
    %v5268 = vpack.c.b16 %v5253, %v5252
    %v5269 = vpack.c.b16 %v5255, %v5254
    %v5270 = vpack.c.b16 %v5257, %v5256
    %v5271 = vpack.c.b16 %v5259, %v5258
    %v5272 = vpack.c.b16 %v5261, %v5260
    %v5273 = vpack.c.b16 %v5263, %v5262
    %v5274 = vpack.c.b16 %v5265, %v5264
    %v5275 = vpack.c.b16 %v5267, %v5266
    %5284 = vmatpush.bf16.msra.mxu0 %v5275
    %5285 = vmatpush.bf16.msra.mxu0 %v5274
    %5286 = vmatpush.bf16.msra.mxu0 %v5273
    %5287 = vmatpush.bf16.msra.mxu0 %v5272
    %5288 = vmatpush.bf16.msra.mxu0 %v5271
    %5289 = vmatpush.bf16.msra.mxu0 %v5270
    %5290 = vmatpush.bf16.msra.mxu0 %v5269
    %5291 = vmatpush.bf16.msra.mxu0 %v5268
    %5292 = vmatmul.bf16.gmra.mxu0 %v5215
    %v5293 = vpop.f32.mrf.mxu0
    %v5294 = vadd.f32 %v5234, %v5293
    %v5295 = vpop.f32.mrf.mxu0
    %5296 = vdwg.mxu0
    %5297 = vst [vmem:[#allocation6] sm:$0x3] %v5294
    // Predicated region
    $region38: #{simple_cnn_forward.1} parent=1 // pred_check
      _
    $region39: #{simple_cnn_forward.1} parent=1 // pred_check_branch
      %5299 = sbr.rel (0) target = $region41
    $region40: #{simple_cnn_forward.1} parent=1 // pred_region
      %5301 = vsyncadd [#allocation7], 0
      %s5303 = sshll.u32 [#allocation6], 4
      %s5304 = int_to_ptr.vmem [resolvable:$true] %s5303
      %s5305 = sshll.u32 %s9, 4
      %s5306 = int_to_ptr.hbm [resolvable:$true] %s5305
      %5308 = dma.vmem_to_hbm [thread:$0]  %s5304, 32, %s5306, [#allocation7]
    $region41: #{simple_cnn_forward.1} parent=1 // pred_fallthru
      _
    // Predicated region
    $region42: #{simple_cnn_forward.1} parent=1 // pred_check
      _
    $region43: #{simple_cnn_forward.1} parent=1 // pred_check_branch
      %5310 = sbr.rel (0) target = $region45
    $region44: #{simple_cnn_forward.1} parent=1 // pred_region
      %5312 = dma.done [#allocation7], 32
    $region45: #{simple_cnn_forward.1} parent=1 // pred_fallthru
      _
    %5313 = vsyncpa [#allocation7], 1

</llo_original>
